<compile_context>
chip_gen: v7x
topology: tpu7x:2x2x1
jax: 0.10.0
libtpu: 0.0.40
codegen_flags: <defaults>
</compile_context>

<pallas_src>
import jax
import jax.numpy as jnp
from jax import lax
from jax.experimental import pallas as pl
from jax.experimental.pallas import tpu as pltpu


def _round_up(x, m):
    return (x + m - 1) // m * m


def _default_epilogue_dtype():
    """bf16 epilogue on v6e/v7x (bf16 VPU path); f32 on v5e and older."""
    try:
        kind = jax.devices()[0].device_kind.lower()
    except Exception:
        return jnp.float32
    if any(old in kind for old in ("v2", "v3", "v4", "v5")):
        return jnp.float32
    return jnp.bfloat16


# ----------------------------- Pallas kernel -------------------------------


def _make_cnn_text_kernel(*, TB, D, Kmax, NP, T_main, tail, t_chunk, ep_dtype):
    """Builds the fused conv+ReLU+time-max+fc1 kernel (constants closed over)."""
    n_full = T_main // t_chunk if t_chunk > 0 else 0
    rem = T_main - n_full * t_chunk
    use_fori = n_full > 4            # short chunk counts stay statically unrolled

    def kernel(emb_ref, w_ref, cb_ref, tmax_ref, fw_ref, fb_ref, out_ref):
        # emb_ref:  (TB, L_pad, D) bf16   activation tile (time padded by Kmax-1)
        # w_ref:    (Kmax, D, NP)  bf16   packed conv weights (per-shift slabs)
        # cb_ref:   (1, NP)        ep     packed conv bias
        # tmax_ref: (1, NP)        i32    last valid time index (L - K) per column
        # fw_ref:   (NP, CP)       bf16   fc1 weight
        # fb_ref:   (1, CP)        f32    fc1 bias
        # out_ref:  (TB, CP)       f32    logits (lane-dense; sliced in wrapper)

        # Hoisted once (JAX does not CSE broadcasts inside unrolled loops).
        cbias = cb_ref[...].reshape(1, 1, NP)                    # ep_dtype

        def conv_chunk(t0, tl):
            # im2col-free conv: Kmax accumulated MXU matmuls, bf16 in / f32 acc.
            x0 = emb_ref[:, pl.ds(t0, tl), :].reshape(TB * tl, D)
            acc = jnp.dot(x0, w_ref[0], preferred_element_type=jnp.float32)
            for k in range(1, Kmax):
                xk = emb_ref[:, pl.ds(t0 + k, tl), :].reshape(TB * tl, D)
                acc = acc + jnp.dot(xk, w_ref[k],
                                    preferred_element_type=jnp.float32)
            return acc.reshape(TB, tl, NP).astype(ep_dtype)

        def relu_max(feats, a):
            a = jnp.maximum(a + cbias, 0)
            return jnp.maximum(feats, jnp.max(a, axis=1))

        # Running max over time.  Zero init is exact: post-ReLU values are >= 0.
        feats = jnp.zeros((TB, NP), ep_dtype)

        # --- mask-free main region: t in [0, T_main) is valid for every K ---
        if use_fori:
            def body(i, f):
                t0 = i * t_chunk
                if t_chunk % 8 == 0:
                    t0 = pl.multiple_of(t0, 8)
                return relu_max(f, conv_chunk(t0, t_chunk))
            feats = lax.fori_loop(0, n_full, body, feats)
            if rem > 0:
                feats = relu_max(feats, conv_chunk(n_full * t_chunk, rem))
        else:
            t0 = 0
            while t0 < T_main:
                tl = min(t_chunk, T_main - t0)
                feats = relu_max(feats, conv_chunk(t0, tl))
                t0 += tl

        # --- masked tail: last Kmax-1 rows, per-column validity t <= L - K ---
        # Masking to 0 AFTER ReLU is exact only because post-ReLU >= 0 and the
        # running max is zero-initialized; keep this invariant.
        if tail > 0:
            a = jnp.maximum(conv_chunk(T_main, tail) + cbias, 0)
            t_ids = T_main + lax.broadcasted_iota(jnp.int32, (tail, NP), 0)
            valid = t_ids <= tmax_ref[...]                       # (tail, NP)
            a = jnp.where(valid, a, jnp.zeros((), a.dtype))
            feats = jnp.maximum(feats, jnp.max(a, axis=1))

        # --- fc1 fused in the tail: feats never leaves VMEM ---
        logits = jnp.dot(feats.astype(jnp.bfloat16), fw_ref[...],
                         preferred_element_type=jnp.float32) + fb_ref[...]
        out_ref[...] = logits

    return kernel


# ------------------------------ host wrapper --------------------------------


def cnn_text_forward(x_ids, params, *, batch_tile=64, epilogue_dtype=None):
    """Forward pass of CNN_text.  x_ids: (B, L) int32 -> (B, class_num) f32."""
    embed = params["embed"]                    # (V, D) f32
    conv_ws = params["conv_w"]                 # list of (K, D, Co)
    conv_bs = params["conv_b"]                 # list of (Co,)
    fc_w = params["fc_w"]                      # (F, C)  (PyTorch (C, F) transposed)
    fc_b = params["fc_b"]                      # (C,)

    B, L = x_ids.shape
    D = int(embed.shape[1])
    Ks = [int(w.shape[0]) for w in conv_ws]
    Co = int(conv_ws[0].shape[2])
    Kmax = max(Ks)
    N = len(Ks) * Co                           # true feature count
    NP = _round_up(N, 128)                     # lane-dense packed feature width
    C = int(fc_w.shape[1])
    CP = _round_up(C, 128)
    L_pad = L + Kmax - 1
    T = L
    T_main = max(L - Kmax + 1, 0)              # rows valid for ALL kernel sizes
    tail = T - T_main                          # rows needing per-column masking

    ep_dtype = epilogue_dtype if epilogue_dtype is not None else _default_epilogue_dtype()

    # --- batch tile: big enough to fill the MXU / amortize per-step overhead,
    #     capped so the double-buffered emb tile stays <= ~8 MiB (safe under
    #     v7x's 64 MiB VMEM).  For B > TB the grid has >= 2 steps, so the
    #     "parallel" axis can actually use both v7x TensorCores.
    row_bytes = L_pad * D * 2                                    # bf16 per batch row
    cap = max(8, ((8 << 20) // max(1, 2 * row_bytes)) // 8 * 8)
    TB = max(8, (min(int(batch_tile), cap) // 8) * 8)
    if B <= TB:
        TB = max(8, _round_up(B, 8))
    B_pad = _round_up(B, TB)

    # --- time chunk: M = TB*t_chunk >= 512 per matmul, f32 intermediate ~1 MiB.
    t_chunk = (1 << 20) // max(1, TB * NP * 4)
    t_chunk = max(t_chunk, -(-512 // TB))
    t_chunk = max(8, (t_chunk // 8) * 8)
    t_chunk = min(t_chunk, T_main) if T_main > 0 else 8

    # --- glue: pad the cheap int32 ids, single embedding gather at padded shape
    #     (no full-size activation pad/copy).  Junk rows / padded time positions
    #     only ever meet zero-padded weight slabs or the in-kernel tail mask.
    ids = jnp.pad(x_ids.astype(jnp.int32), ((0, B_pad - B), (0, Kmax - 1)))
    emb = embed[ids].astype(jnp.bfloat16)                        # (B_pad, L_pad, D)

    # --- pack conv weights/bias for all kernel sizes + last-valid-t row ---
    w_packed = jnp.zeros((Kmax, D, NP), jnp.float32)
    cb_packed = jnp.zeros((1, NP), jnp.float32)
    tmax = jnp.full((1, NP), -1, jnp.int32)
    for g, (wk, bk) in enumerate(zip(conv_ws, conv_bs)):
        K = int(wk.shape[0])
        c0 = g * Co
        w_packed = w_packed.at[:K, :, c0:c0 + Co].set(wk.astype(jnp.float32))
        cb_packed = cb_packed.at[0, c0:c0 + Co].set(bk.astype(jnp.float32))
        tmax = tmax.at[0, c0:c0 + Co].set(L - K)
    w_packed = w_packed.astype(jnp.bfloat16)
    cb_packed = cb_packed.astype(ep_dtype)

    fw_packed = (jnp.zeros((NP, CP), jnp.float32)
                 .at[:N, :C].set(fc_w.astype(jnp.float32)).astype(jnp.bfloat16))
    fb_packed = jnp.zeros((1, CP), jnp.float32).at[0, :C].set(
        fc_b.astype(jnp.float32))

    # --- VMEM budget (double-buffered operands + intermediates), capped for v7x ---
    ep_size = jnp.dtype(ep_dtype).itemsize
    emb_tile = TB * L_pad * D * 2
    consts = Kmax * D * NP * 2 + NP * ep_size + NP * 4 + NP * CP * 2 + CP * 4
    out_tile = TB * CP * 4
    inter = 3 * TB * t_chunk * NP * 4 + Kmax * TB * t_chunk * D * 2
    vmem_need = 2 * emb_tile + 2 * consts + 2 * out_tile + inter + (4 << 20)
    vmem_limit = int(min(64 << 20, max(32 << 20, vmem_need)))

    kernel = _make_cnn_text_kernel(TB=TB, D=D, Kmax=Kmax, NP=NP, T_main=T_main,
                                   tail=tail, t_chunk=t_chunk, ep_dtype=ep_dtype)

    out = pl.pallas_call(
        kernel,
        out_shape=jax.ShapeDtypeStruct((B_pad, CP), jnp.float32),
        grid=(B_pad // TB,),
        in_specs=[
            pl.BlockSpec((TB, L_pad, D), lambda i: (i, 0, 0)),   # activation tile
            pl.BlockSpec((Kmax, D, NP), lambda i: (0, 0, 0)),    # packed conv weight
            pl.BlockSpec((1, NP), lambda i: (0, 0)),             # packed conv bias
            pl.BlockSpec((1, NP), lambda i: (0, 0)),             # last-valid-t per col
            pl.BlockSpec((NP, CP), lambda i: (0, 0)),            # fc1 weight
            pl.BlockSpec((1, CP), lambda i: (0, 0)),             # fc1 bias
        ],
        out_specs=pl.BlockSpec((TB, CP), lambda i: (i, 0)),
        compiler_params=pltpu.CompilerParams(
            dimension_semantics=("parallel",),
            vmem_limit_bytes=vmem_limit,
        ),
    )(emb, w_packed, cb_packed, tmax, fw_packed, fb_packed)

    return out[:B, :C]


# ---------------------------- params & reference ----------------------------


def init_params(key, embed_num, embed_dim, class_num, kernel_num, kernel_sizes):
    keys = jax.random.split(key, 3 + 2 * len(kernel_sizes))
    params = {}
    params["embed"] = jax.random.normal(keys[0], (embed_num, embed_dim),
                                        jnp.float32)
    conv_w, conv_b = [], []
    for i, K in enumerate(kernel_sizes):
        # PyTorch conv weight is (Co, 1, K, D); stored here as (K, D, Co).
        w = 0.1 * jax.random.normal(keys[1 + 2 * i],
                                    (K, embed_dim, kernel_num), jnp.float32)
        b = 0.1 * jax.random.normal(keys[2 + 2 * i], (kernel_num,), jnp.float32)
        conv_w.append(w)
        conv_b.append(b)
    params["conv_w"] = conv_w
    params["conv_b"] = conv_b
    F_in = len(kernel_sizes) * kernel_num
    # PyTorch fc1.weight is (C, F); stored transposed (F, C).
    params["fc_w"] = 0.1 * jax.random.normal(keys[-2], (F_in, class_num),
                                             jnp.float32)
    params["fc_b"] = 0.1 * jax.random.normal(keys[-1], (class_num,),
                                             jnp.float32)
    return params


def cnn_text_reference(x_ids, params):
    """Pure-jnp f32 reference mirroring the PyTorch forward."""
    emb = params["embed"][x_ids].astype(jnp.float32)          # (B, L, D)
    B, L, D = emb.shape
    pooled = []
    for (w_kdc, b) in zip(params["conv_w"], params["conv_b"]):
        K, _, Co = w_kdc.shape
        T = L - K + 1
        acc = jnp.zeros((B, T, Co), jnp.float32)
        for k in range(K):
            acc = acc + jnp.einsum("btd,dc->btc", emb[:, k:k + T, :], w_kdc[k])
        acc = jnp.maximum(acc + b[None, None, :], 0.0)
        pooled.append(jnp.max(acc, axis=1))
    feats = jnp.concatenate(pooled, axis=1)
    return feats @ params["fc_w"] + params["fc_b"][None, :]


if __name__ == "__main__":
    # Small shapes consistent with the module.
    embed_num, embed_dim = 50, 32
    class_num, kernel_num = 5, 8
    kernel_sizes = (3, 4, 5)
    B, L = 4, 16

    key = jax.random.PRNGKey(0)
    pkey, xkey = jax.random.split(key)
    params = init_params(pkey, embed_num, embed_dim, class_num, kernel_num,
                         kernel_sizes)
    x_ids = jax.random.randint(xkey, (B, L), 0, embed_num, dtype=jnp.int32)

    logits = cnn_text_forward(x_ids, params)
    logits = jax.block_until_ready(logits)

    ref = cnn_text_reference(x_ids, params)
    assert logits.shape == (B, class_num)
    # bf16 matmul inputs (+ bf16 epilogue on v6e/v7x) with f32 accumulation ->
    # loosened tolerance vs the f32 reference.
    err = float(jnp.max(jnp.abs(logits - ref)))
    assert jnp.allclose(logits, ref, atol=5e-2, rtol=5e-2), err

    print("KERNEL_OK")
</pallas_src>

<mosaic_0001>
module attributes {stable_mosaic.version = 11 : i64} {
  func.func @kernel(%arg0: i32, %arg1: memref<8x20x32xbf16, #tpu.memory_space<vmem>>, %arg2: memref<5x32x128xbf16, #tpu.memory_space<vmem>>, %arg3: memref<1x128xbf16, #tpu.memory_space<vmem>>, %arg4: memref<1x128xi32, #tpu.memory_space<vmem>>, %arg5: memref<128x128xbf16, #tpu.memory_space<vmem>>, %arg6: memref<1x128xf32, #tpu.memory_space<vmem>>, %arg7: memref<8x128xf32, #tpu.memory_space<vmem>>) attributes {dimension_semantics = [#tpu.dimension_semantics<parallel>], iteration_bounds = array<i64: 1>, scalar_prefetch = 0 : i64, scratch_operands = 0 : i64, tpu.core_type = #tpu.core_type<tc>, window_params = [{transform_indices = @transform_0, window_bounds = array<i64: 8, 20, 32>}, {pipeline_mode = #tpu.pipeline_mode<synchronous>, transform_indices = @transform_1, window_bounds = array<i64: 5, 32, 128>}, {pipeline_mode = #tpu.pipeline_mode<synchronous>, transform_indices = @transform_2, window_bounds = array<i64: 1, 128>}, {pipeline_mode = #tpu.pipeline_mode<synchronous>, transform_indices = @transform_3, window_bounds = array<i64: 1, 128>}, {pipeline_mode = #tpu.pipeline_mode<synchronous>, transform_indices = @transform_4, window_bounds = array<i64: 128, 128>}, {pipeline_mode = #tpu.pipeline_mode<synchronous>, transform_indices = @transform_5, window_bounds = array<i64: 1, 128>}, {transform_indices = @transform_6, window_bounds = array<i64: 8, 128>}]} {
    %c0 = arith.constant 0 : index
    %c0_0 = arith.constant 0 : index
    %0 = vector.load %arg3[%c0, %c0_0] : memref<1x128xbf16, #tpu.memory_space<vmem>>, vector<1x128xbf16>
    %1 = vector.shape_cast %0 : vector<1x128xbf16> to vector<1x1x128xbf16>
    %cst = arith.constant 0.000000e+00 : bf16
    %2 = vector.broadcast %cst : bf16 to vector<8x128xbf16>
    %c0_1 = arith.constant 0 : index
    %c0_2 = arith.constant 0 : index
    %c0_3 = arith.constant 0 : index
    %3 = vector.load %arg1[%c0_1, %c0_2, %c0_3] : memref<8x20x32xbf16, #tpu.memory_space<vmem>>, vector<8x12x32xbf16>
    %4 = vector.shape_cast %3 : vector<8x12x32xbf16> to vector<96x32xbf16>
    %c0_4 = arith.constant 0 : index
    %c0_5 = arith.constant 0 : index
    %c0_6 = arith.constant 0 : index
    %5 = vector.load %arg2[%c0_4, %c0_5, %c0_6] : memref<5x32x128xbf16, #tpu.memory_space<vmem>>, vector<1x32x128xbf16>
    %6 = vector.shape_cast %5 : vector<1x32x128xbf16> to vector<32x128xbf16>
    %cst_7 = arith.constant dense<0.000000e+00> : vector<96x128xf32>
    %7 = tpu.matmul %4, %6, %cst_7 {dimension_numbers = #tpu.dot_dimension_numbers<[1], [0], [0], [1], [0, 0, 1, 1], [], []>} : vector<96x32xbf16>, vector<32x128xbf16>, vector<96x128xf32> -> vector<96x128xf32>
    %c0_8 = arith.constant 0 : index
    %c1 = arith.constant 1 : index
    %c0_9 = arith.constant 0 : index
    %8 = vector.load %arg1[%c0_8, %c1, %c0_9] : memref<8x20x32xbf16, #tpu.memory_space<vmem>>, vector<8x12x32xbf16>
    %9 = vector.shape_cast %8 : vector<8x12x32xbf16> to vector<96x32xbf16>
    %c1_10 = arith.constant 1 : index
    %c0_11 = arith.constant 0 : index
    %c0_12 = arith.constant 0 : index
    %10 = vector.load %arg2[%c1_10, %c0_11, %c0_12] : memref<5x32x128xbf16, #tpu.memory_space<vmem>>, vector<1x32x128xbf16>
    %11 = vector.shape_cast %10 : vector<1x32x128xbf16> to vector<32x128xbf16>
    %cst_13 = arith.constant dense<0.000000e+00> : vector<96x128xf32>
    %12 = tpu.matmul %9, %11, %cst_13 {dimension_numbers = #tpu.dot_dimension_numbers<[1], [0], [0], [1], [0, 0, 1, 1], [], []>} : vector<96x32xbf16>, vector<32x128xbf16>, vector<96x128xf32> -> vector<96x128xf32>
    %13 = arith.addf %7, %12 : vector<96x128xf32>
    %c0_14 = arith.constant 0 : index
    %c2 = arith.constant 2 : index
    %c0_15 = arith.constant 0 : index
    %14 = vector.load %arg1[%c0_14, %c2, %c0_15] : memref<8x20x32xbf16, #tpu.memory_space<vmem>>, vector<8x12x32xbf16>
    %15 = vector.shape_cast %14 : vector<8x12x32xbf16> to vector<96x32xbf16>
    %c2_16 = arith.constant 2 : index
    %c0_17 = arith.constant 0 : index
    %c0_18 = arith.constant 0 : index
    %16 = vector.load %arg2[%c2_16, %c0_17, %c0_18] : memref<5x32x128xbf16, #tpu.memory_space<vmem>>, vector<1x32x128xbf16>
    %17 = vector.shape_cast %16 : vector<1x32x128xbf16> to vector<32x128xbf16>
    %cst_19 = arith.constant dense<0.000000e+00> : vector<96x128xf32>
    %18 = tpu.matmul %15, %17, %cst_19 {dimension_numbers = #tpu.dot_dimension_numbers<[1], [0], [0], [1], [0, 0, 1, 1], [], []>} : vector<96x32xbf16>, vector<32x128xbf16>, vector<96x128xf32> -> vector<96x128xf32>
    %19 = arith.addf %13, %18 : vector<96x128xf32>
    %c0_20 = arith.constant 0 : index
    %c3 = arith.constant 3 : index
    %c0_21 = arith.constant 0 : index
    %20 = vector.load %arg1[%c0_20, %c3, %c0_21] : memref<8x20x32xbf16, #tpu.memory_space<vmem>>, vector<8x12x32xbf16>
    %21 = vector.shape_cast %20 : vector<8x12x32xbf16> to vector<96x32xbf16>
    %c3_22 = arith.constant 3 : index
    %c0_23 = arith.constant 0 : index
    %c0_24 = arith.constant 0 : index
    %22 = vector.load %arg2[%c3_22, %c0_23, %c0_24] : memref<5x32x128xbf16, #tpu.memory_space<vmem>>, vector<1x32x128xbf16>
    %23 = vector.shape_cast %22 : vector<1x32x128xbf16> to vector<32x128xbf16>
    %cst_25 = arith.constant dense<0.000000e+00> : vector<96x128xf32>
    %24 = tpu.matmul %21, %23, %cst_25 {dimension_numbers = #tpu.dot_dimension_numbers<[1], [0], [0], [1], [0, 0, 1, 1], [], []>} : vector<96x32xbf16>, vector<32x128xbf16>, vector<96x128xf32> -> vector<96x128xf32>
    %25 = arith.addf %19, %24 : vector<96x128xf32>
    %c0_26 = arith.constant 0 : index
    %c4 = arith.constant 4 : index
    %c0_27 = arith.constant 0 : index
    %26 = vector.load %arg1[%c0_26, %c4, %c0_27] : memref<8x20x32xbf16, #tpu.memory_space<vmem>>, vector<8x12x32xbf16>
    %27 = vector.shape_cast %26 : vector<8x12x32xbf16> to vector<96x32xbf16>
    %c4_28 = arith.constant 4 : index
    %c0_29 = arith.constant 0 : index
    %c0_30 = arith.constant 0 : index
    %28 = vector.load %arg2[%c4_28, %c0_29, %c0_30] : memref<5x32x128xbf16, #tpu.memory_space<vmem>>, vector<1x32x128xbf16>
    %29 = vector.shape_cast %28 : vector<1x32x128xbf16> to vector<32x128xbf16>
    %cst_31 = arith.constant dense<0.000000e+00> : vector<96x128xf32>
    %30 = tpu.matmul %27, %29, %cst_31 {dimension_numbers = #tpu.dot_dimension_numbers<[1], [0], [0], [1], [0, 0, 1, 1], [], []>} : vector<96x32xbf16>, vector<32x128xbf16>, vector<96x128xf32> -> vector<96x128xf32>
    %31 = arith.addf %25, %30 : vector<96x128xf32>
    %32 = vector.shape_cast %31 : vector<96x128xf32> to vector<8x12x128xf32>
    %33 = arith.truncf %32 : vector<8x12x128xf32> to vector<8x12x128xbf16>
    %34 = vector.broadcast %1 : vector<1x1x128xbf16> to vector<8x12x128xbf16>
    %35 = arith.addf %33, %34 : vector<8x12x128xbf16>
    %cst_32 = arith.constant 0.000000e+00 : bf16
    %36 = vector.broadcast %cst_32 : bf16 to vector<8x12x128xbf16>
    %37 = arith.maximumf %35, %36 : vector<8x12x128xbf16>
    %cst_33 = arith.constant dense<0xFF80> : vector<8x128xbf16>
    %38 = vector.multi_reduction <maximumf>, %37, %cst_33 [1] : vector<8x12x128xbf16> to vector<8x128xbf16>
    %39 = arith.maximumf %2, %38 : vector<8x128xbf16>
    %c0_34 = arith.constant 0 : index
    %c12 = arith.constant 12 : index
    %c0_35 = arith.constant 0 : index
    %40 = vector.load %arg1[%c0_34, %c12, %c0_35] : memref<8x20x32xbf16, #tpu.memory_space<vmem>>, vector<8x4x32xbf16>
    %41 = vector.shape_cast %40 : vector<8x4x32xbf16> to vector<32x32xbf16>
    %c0_36 = arith.constant 0 : index
    %c0_37 = arith.constant 0 : index
    %c0_38 = arith.constant 0 : index
    %42 = vector.load %arg2[%c0_36, %c0_37, %c0_38] : memref<5x32x128xbf16, #tpu.memory_space<vmem>>, vector<1x32x128xbf16>
    %43 = vector.shape_cast %42 : vector<1x32x128xbf16> to vector<32x128xbf16>
    %cst_39 = arith.constant dense<0.000000e+00> : vector<32x128xf32>
    %44 = tpu.matmul %41, %43, %cst_39 {dimension_numbers = #tpu.dot_dimension_numbers<[1], [0], [0], [1], [0, 0, 1, 1], [], []>} : vector<32x32xbf16>, vector<32x128xbf16>, vector<32x128xf32> -> vector<32x128xf32>
    %c0_40 = arith.constant 0 : index
    %c13 = arith.constant 13 : index
    %c0_41 = arith.constant 0 : index
    %45 = vector.load %arg1[%c0_40, %c13, %c0_41] : memref<8x20x32xbf16, #tpu.memory_space<vmem>>, vector<8x4x32xbf16>
    %46 = vector.shape_cast %45 : vector<8x4x32xbf16> to vector<32x32xbf16>
    %c1_42 = arith.constant 1 : index
    %c0_43 = arith.constant 0 : index
    %c0_44 = arith.constant 0 : index
    %47 = vector.load %arg2[%c1_42, %c0_43, %c0_44] : memref<5x32x128xbf16, #tpu.memory_space<vmem>>, vector<1x32x128xbf16>
    %48 = vector.shape_cast %47 : vector<1x32x128xbf16> to vector<32x128xbf16>
    %cst_45 = arith.constant dense<0.000000e+00> : vector<32x128xf32>
    %49 = tpu.matmul %46, %48, %cst_45 {dimension_numbers = #tpu.dot_dimension_numbers<[1], [0], [0], [1], [0, 0, 1, 1], [], []>} : vector<32x32xbf16>, vector<32x128xbf16>, vector<32x128xf32> -> vector<32x128xf32>
    %50 = arith.addf %44, %49 : vector<32x128xf32>
    %c0_46 = arith.constant 0 : index
    %c14 = arith.constant 14 : index
    %c0_47 = arith.constant 0 : index
    %51 = vector.load %arg1[%c0_46, %c14, %c0_47] : memref<8x20x32xbf16, #tpu.memory_space<vmem>>, vector<8x4x32xbf16>
    %52 = vector.shape_cast %51 : vector<8x4x32xbf16> to vector<32x32xbf16>
    %c2_48 = arith.constant 2 : index
    %c0_49 = arith.constant 0 : index
    %c0_50 = arith.constant 0 : index
    %53 = vector.load %arg2[%c2_48, %c0_49, %c0_50] : memref<5x32x128xbf16, #tpu.memory_space<vmem>>, vector<1x32x128xbf16>
    %54 = vector.shape_cast %53 : vector<1x32x128xbf16> to vector<32x128xbf16>
    %cst_51 = arith.constant dense<0.000000e+00> : vector<32x128xf32>
    %55 = tpu.matmul %52, %54, %cst_51 {dimension_numbers = #tpu.dot_dimension_numbers<[1], [0], [0], [1], [0, 0, 1, 1], [], []>} : vector<32x32xbf16>, vector<32x128xbf16>, vector<32x128xf32> -> vector<32x128xf32>
    %56 = arith.addf %50, %55 : vector<32x128xf32>
    %c0_52 = arith.constant 0 : index
    %c15 = arith.constant 15 : index
    %c0_53 = arith.constant 0 : index
    %57 = vector.load %arg1[%c0_52, %c15, %c0_53] : memref<8x20x32xbf16, #tpu.memory_space<vmem>>, vector<8x4x32xbf16>
    %58 = vector.shape_cast %57 : vector<8x4x32xbf16> to vector<32x32xbf16>
    %c3_54 = arith.constant 3 : index
    %c0_55 = arith.constant 0 : index
    %c0_56 = arith.constant 0 : index
    %59 = vector.load %arg2[%c3_54, %c0_55, %c0_56] : memref<5x32x128xbf16, #tpu.memory_space<vmem>>, vector<1x32x128xbf16>
    %60 = vector.shape_cast %59 : vector<1x32x128xbf16> to vector<32x128xbf16>
    %cst_57 = arith.constant dense<0.000000e+00> : vector<32x128xf32>
    %61 = tpu.matmul %58, %60, %cst_57 {dimension_numbers = #tpu.dot_dimension_numbers<[1], [0], [0], [1], [0, 0, 1, 1], [], []>} : vector<32x32xbf16>, vector<32x128xbf16>, vector<32x128xf32> -> vector<32x128xf32>
    %62 = arith.addf %56, %61 : vector<32x128xf32>
    %c0_58 = arith.constant 0 : index
    %c16 = arith.constant 16 : index
    %c0_59 = arith.constant 0 : index
    %63 = vector.load %arg1[%c0_58, %c16, %c0_59] : memref<8x20x32xbf16, #tpu.memory_space<vmem>>, vector<8x4x32xbf16>
    %64 = vector.shape_cast %63 : vector<8x4x32xbf16> to vector<32x32xbf16>
    %c4_60 = arith.constant 4 : index
    %c0_61 = arith.constant 0 : index
    %c0_62 = arith.constant 0 : index
    %65 = vector.load %arg2[%c4_60, %c0_61, %c0_62] : memref<5x32x128xbf16, #tpu.memory_space<vmem>>, vector<1x32x128xbf16>
    %66 = vector.shape_cast %65 : vector<1x32x128xbf16> to vector<32x128xbf16>
    %cst_63 = arith.constant dense<0.000000e+00> : vector<32x128xf32>
    %67 = tpu.matmul %64, %66, %cst_63 {dimension_numbers = #tpu.dot_dimension_numbers<[1], [0], [0], [1], [0, 0, 1, 1], [], []>} : vector<32x32xbf16>, vector<32x128xbf16>, vector<32x128xf32> -> vector<32x128xf32>
    %68 = arith.addf %62, %67 : vector<32x128xf32>
    %69 = vector.shape_cast %68 : vector<32x128xf32> to vector<8x4x128xf32>
    %70 = arith.truncf %69 : vector<8x4x128xf32> to vector<8x4x128xbf16>
    %71 = vector.broadcast %1 : vector<1x1x128xbf16> to vector<8x4x128xbf16>
    %72 = arith.addf %70, %71 : vector<8x4x128xbf16>
    %cst_64 = arith.constant 0.000000e+00 : bf16
    %73 = vector.broadcast %cst_64 : bf16 to vector<8x4x128xbf16>
    %74 = arith.maximumf %72, %73 : vector<8x4x128xbf16>
    %75 = tpu.iota {dimensions = array<i32: 0>} : vector<4x128xi32>
    %c12_i32 = arith.constant 12 : i32
    %76 = vector.broadcast %c12_i32 : i32 to vector<4x128xi32>
    %77 = arith.addi %76, %75 : vector<4x128xi32>
    %c0_65 = arith.constant 0 : index
    %c0_66 = arith.constant 0 : index
    %78 = vector.load %arg4[%c0_65, %c0_66] : memref<1x128xi32, #tpu.memory_space<vmem>>, vector<1x128xi32>
    %79 = vector.broadcast %78 : vector<1x128xi32> to vector<4x128xi32>
    %80 = arith.cmpi sle, %77, %79 : vector<4x128xi32>
    %cst_67 = arith.constant 0.000000e+00 : bf16
    %81 = vector.shape_cast %80 : vector<4x128xi1> to vector<1x4x128xi1>
    %82 = vector.broadcast %81 : vector<1x4x128xi1> to vector<8x4x128xi1>
    %83 = vector.broadcast %cst_67 : bf16 to vector<8x4x128xbf16>
    %84 = arith.select %82, %74, %83 : vector<8x4x128xi1>, vector<8x4x128xbf16>
    %cst_68 = arith.constant dense<0xFF80> : vector<8x128xbf16>
    %85 = vector.multi_reduction <maximumf>, %84, %cst_68 [1] : vector<8x4x128xbf16> to vector<8x128xbf16>
    %86 = arith.maximumf %39, %85 : vector<8x128xbf16>
    %c0_69 = arith.constant 0 : index
    %c0_70 = arith.constant 0 : index
    %87 = vector.load %arg5[%c0_69, %c0_70] : memref<128x128xbf16, #tpu.memory_space<vmem>>, vector<128x128xbf16>
    %cst_71 = arith.constant dense<0.000000e+00> : vector<8x128xf32>
    %88 = tpu.matmul %86, %87, %cst_71 {dimension_numbers = #tpu.dot_dimension_numbers<[1], [0], [0], [1], [0, 0, 1, 1], [], []>} : vector<8x128xbf16>, vector<128x128xbf16>, vector<8x128xf32> -> vector<8x128xf32>
    %c0_72 = arith.constant 0 : index
    %c0_73 = arith.constant 0 : index
    %89 = vector.load %arg6[%c0_72, %c0_73] : memref<1x128xf32, #tpu.memory_space<vmem>>, vector<1x128xf32>
    %90 = vector.broadcast %89 : vector<1x128xf32> to vector<8x128xf32>
    %91 = arith.addf %88, %90 : vector<8x128xf32>
    %c0_74 = arith.constant 0 : index
    %c0_75 = arith.constant 0 : index
    %92 = vector.load %arg7[%c0_74, %c0_75] : memref<8x128xf32, #tpu.memory_space<vmem>>, vector<8x128xf32>
    tpu.vector_store %arg7[%c0_74, %c0_75], %91 {strides = array<i32>} : memref<8x128xf32, #tpu.memory_space<vmem>>, vector<8x128xf32>,
    return
  }
  func.func @transform_0(%arg0: i32) -> (i32, i32, i32) {
    %c0_i32 = arith.constant 0 : i32
    %c0_i32_0 = arith.constant 0 : i32
    %c0_i32_1 = arith.constant 0 : i32
    return %arg0, %c0_i32, %c0_i32_0 : i32, i32, i32
  }
  func.func @transform_1(%arg0: i32) -> (i32, i32, i32) {
    %c0_i32 = arith.constant 0 : i32
    %c0_i32_0 = arith.constant 0 : i32
    %c0_i32_1 = arith.constant 0 : i32
    %c0_i32_2 = arith.constant 0 : i32
    return %c0_i32, %c0_i32_0, %c0_i32_1 : i32, i32, i32
  }
  func.func @transform_2(%arg0: i32) -> (i32, i32) {
    %c0_i32 = arith.constant 0 : i32
    %c0_i32_0 = arith.constant 0 : i32
    %c0_i32_1 = arith.constant 0 : i32
    return %c0_i32, %c0_i32_0 : i32, i32
  }
  func.func @transform_3(%arg0: i32) -> (i32, i32) {
    %c0_i32 = arith.constant 0 : i32
    %c0_i32_0 = arith.constant 0 : i32
    %c0_i32_1 = arith.constant 0 : i32
    return %c0_i32, %c0_i32_0 : i32, i32
  }
  func.func @transform_4(%arg0: i32) -> (i32, i32) {
    %c0_i32 = arith.constant 0 : i32
    %c0_i32_0 = arith.constant 0 : i32
    %c0_i32_1 = arith.constant 0 : i32
    return %c0_i32, %c0_i32_0 : i32, i32
  }
  func.func @transform_5(%arg0: i32) -> (i32, i32) {
    %c0_i32 = arith.constant 0 : i32
    %c0_i32_0 = arith.constant 0 : i32
    %c0_i32_1 = arith.constant 0 : i32
    return %c0_i32, %c0_i32_0 : i32, i32
  }
  func.func @transform_6(%arg0: i32) -> (i32, i32) {
    %c0_i32 = arith.constant 0 : i32
    %c0_i32_0 = arith.constant 0 : i32
    return %arg0, %c0_i32 : i32, i32
  }
}

</mosaic_0001>

<llo_original>
// kernel: tpu_custom_call.1
$region0: #{tpu_custom_call.1}
  #allocation0 [shape = 'u32[]', space=smem, size = 0x4, offset = 0x4, fixed_abs, tag = 'smem constant byte address 0x4 - core index']
  #allocation1 [shape = 'u32[144,128]{1,0:T(1,128)}', space=vmem, size = 0x12000, scoped, tag = 'internal scratch']
  %s0 = inlined_call_operand.vmem [shape: bf16[8,20,32], index: 0, kind: input, shape index: {}]
  %s1 = inlined_call_operand.vmem [shape: bf16[5,32,128], index: 1, kind: input, shape index: {}]
  %s2 = inlined_call_operand.vmem [shape: bf16[1,128], index: 2, kind: input, shape index: {}]
  %s3 = inlined_call_operand.vmem [shape: s32[1,128], index: 3, kind: input, shape index: {}]
  %s4 = inlined_call_operand.vmem [shape: bf16[128,128], index: 4, kind: input, shape index: {}]
  %s5 = inlined_call_operand.vmem [shape: f32[1,128], index: 5, kind: input, shape index: {}]
  %s6 = inlined_call_operand.hbm [shape: f32[8,128], index: 6, kind: output, shape index: {}]
  %s7 = sld [smem:[#allocation0]]
  $region34: #{tpu_custom_call.1} parent=0
    _
  %s9 = ssub.s32 1, %s7
  %s10 = scalar_select 0, %s9, %s7
  $region1: #{tpu_custom_call.1} parent=0
    #allocation2 [shape = 'u8[4096]{0}', space=vmem, size = 0x1000, scoped, tag = 'output window, operand 0, single buffered']
    #allocation3 [shape = 's32[1]{0}', space=sflag, size = 0x4, scoped, tag = 'scoped memory for tpu_custom_call.1']
    %11 = vsyncpa [#allocation3], 0
    // Predicated region
    $region2: #{tpu_custom_call.1} parent=1 // pred_check
      _
    $region3: #{tpu_custom_call.1} parent=1 // pred_check_branch
      %13 = sbr.rel (0) target = $region5
    $region4: #{tpu_custom_call.1} parent=1 // pred_region
      _
    $region5: #{tpu_custom_call.1} parent=1 // pred_fallthru
      _
    // Predicated region
    $region6: #{tpu_custom_call.1} parent=1 // pred_check
      _
    $region7: #{tpu_custom_call.1} parent=1 // pred_check_branch
      %15 = sbr.rel (0) target = $region9
    $region8: #{tpu_custom_call.1} parent=1 // pred_region
      _
    $region9: #{tpu_custom_call.1} parent=1 // pred_fallthru
      _
    // Predicated region
    $region10: #{tpu_custom_call.1} parent=1 // pred_check
      _
    $region11: #{tpu_custom_call.1} parent=1 // pred_check_branch
      %17 = sbr.rel (0) target = $region13
    $region12: #{tpu_custom_call.1} parent=1 // pred_region
      _
    $region13: #{tpu_custom_call.1} parent=1 // pred_fallthru
      _
    // Predicated region
    $region14: #{tpu_custom_call.1} parent=1 // pred_check
      _
    $region15: #{tpu_custom_call.1} parent=1 // pred_check_branch
      %19 = sbr.rel (0) target = $region17
    $region16: #{tpu_custom_call.1} parent=1 // pred_region
      _
    $region17: #{tpu_custom_call.1} parent=1 // pred_fallthru
      _
    // Predicated region
    $region18: #{tpu_custom_call.1} parent=1 // pred_check
      _
    $region19: #{tpu_custom_call.1} parent=1 // pred_check_branch
      %21 = sbr.rel (0) target = $region21
    $region20: #{tpu_custom_call.1} parent=1 // pred_region
      _
    $region21: #{tpu_custom_call.1} parent=1 // pred_fallthru
      _
    // Predicated region
    $region22: #{tpu_custom_call.1} parent=1 // pred_check
      _
    $region23: #{tpu_custom_call.1} parent=1 // pred_check_branch
      %23 = sbr.rel (0) target = $region25
    $region24: #{tpu_custom_call.1} parent=1 // pred_region
      _
    $region25: #{tpu_custom_call.1} parent=1 // pred_fallthru
      _
    %v26 = vld [vmem:[%s2] sm:$0x1]
    %v27 = vld [vmem:[%s0] sm:$0xf]
    %v28 = vld [vmem:[%s0 + $0x4] sm:$0x3]
    %v29 = vld [vmem:[%s0 + $0xc] sm:$0xf]
    %v30 = vld [vmem:[%s0 + $0x10] sm:$0x3]
    %v31 = vld [vmem:[%s0 + $0x18] sm:$0xf]
    %v32 = vld [vmem:[%s0 + $0x1c] sm:$0x3]
    %v33 = vld [vmem:[%s0 + $0x24] sm:$0xf]
    %v34 = vld [vmem:[%s0 + $0x28] sm:$0x3]
    %v35 = vld [vmem:[%s0 + $0x30] sm:$0xf]
    %v36 = vld [vmem:[%s0 + $0x34] sm:$0x3]
    %v37 = vld [vmem:[%s0 + $0x3c] sm:$0xf]
    %v38 = vld [vmem:[%s0 + $0x40] sm:$0x3]
    %v39 = vld [vmem:[%s0 + $0x48] sm:$0xf]
    %v40 = vld [vmem:[%s0 + $0x4c] sm:$0x3]
    %v41 = vld [vmem:[%s0 + $0x54] sm:$0xf]
    %v42 = vld [vmem:[%s0 + $0x58] sm:$0x3]
    %v60 = vunpack.c.l.s4 1983009808
    %v61 = vunpack.c.0.s8 %v60
    %v62 = vlaneseq
    %v63 = vshrl.u32 %v62, 7
    %v64 = vsub.s32 %v61, %v63
    %v65 = vrot.slane %v27, %v64
    %v66 = vcombine.high %v65, %v65
    %v68 = vunpack.c.l.s4 1983009808
    %v69 = vunpack.c.0.s8 %v68
    %v70 = vlaneseq
    %v71 = vshrl.u32 %v70, 7
    %v72 = vsub.s32 %v69, %v71
    %v73 = vrot.slane %v28, %v72
    %v75 = vunpack.c.l.s4 1983009808
    %v76 = vunpack.c.0.s8 %v75
    %v77 = vlaneseq
    %v78 = vshrl.u32 %v77, 7
    %v79 = vsub.s32 %v76, %v78
    %v80 = vrot.slane %v29, %v79
    %v81 = vcombine.high %v80, %v80
    %v83 = vunpack.c.l.s4 1983009808
    %v84 = vunpack.c.0.s8 %v83
    %v85 = vlaneseq
    %v86 = vshrl.u32 %v85, 7
    %v87 = vsub.s32 %v84, %v86
    %v88 = vrot.slane %v30, %v87
    %v90 = vunpack.c.l.s4 1983009808
    %v91 = vunpack.c.0.s8 %v90
    %v92 = vlaneseq
    %v93 = vshrl.u32 %v92, 7
    %v94 = vsub.s32 %v91, %v93
    %v95 = vrot.slane %v31, %v94
    %v96 = vcombine.high %v95, %v95
    %v98 = vunpack.c.l.s4 1983009808
    %v99 = vunpack.c.0.s8 %v98
    %v100 = vlaneseq
    %v101 = vshrl.u32 %v100, 7
    %v102 = vsub.s32 %v99, %v101
    %v103 = vrot.slane %v32, %v102
    %v105 = vunpack.c.l.s4 1983009808
    %v106 = vunpack.c.0.s8 %v105
    %v107 = vlaneseq
    %v108 = vshrl.u32 %v107, 7
    %v109 = vsub.s32 %v106, %v108
    %v110 = vrot.slane %v33, %v109
    %v111 = vcombine.high %v110, %v110
    %v113 = vunpack.c.l.s4 1983009808
    %v114 = vunpack.c.0.s8 %v113
    %v115 = vlaneseq
    %v116 = vshrl.u32 %v115, 7
    %v117 = vsub.s32 %v114, %v116
    %v118 = vrot.slane %v34, %v117
    %v120 = vunpack.c.l.s4 1983009808
    %v121 = vunpack.c.0.s8 %v120
    %v122 = vlaneseq
    %v123 = vshrl.u32 %v122, 7
    %v124 = vsub.s32 %v121, %v123
    %v125 = vrot.slane %v35, %v124
    %v126 = vcombine.high %v125, %v125
    %v128 = vunpack.c.l.s4 1983009808
    %v129 = vunpack.c.0.s8 %v128
    %v130 = vlaneseq
    %v131 = vshrl.u32 %v130, 7
    %v132 = vsub.s32 %v129, %v131
    %v133 = vrot.slane %v36, %v132
    %v135 = vunpack.c.l.s4 1983009808
    %v136 = vunpack.c.0.s8 %v135
    %v137 = vlaneseq
    %v138 = vshrl.u32 %v137, 7
    %v139 = vsub.s32 %v136, %v138
    %v140 = vrot.slane %v37, %v139
    %v141 = vcombine.high %v140, %v140
    %v143 = vunpack.c.l.s4 1983009808
    %v144 = vunpack.c.0.s8 %v143
    %v145 = vlaneseq
    %v146 = vshrl.u32 %v145, 7
    %v147 = vsub.s32 %v144, %v146
    %v148 = vrot.slane %v38, %v147
    %v150 = vunpack.c.l.s4 1983009808
    %v151 = vunpack.c.0.s8 %v150
    %v152 = vlaneseq
    %v153 = vshrl.u32 %v152, 7
    %v154 = vsub.s32 %v151, %v153
    %v155 = vrot.slane %v39, %v154
    %v156 = vcombine.high %v155, %v155
    %v158 = vunpack.c.l.s4 1983009808
    %v159 = vunpack.c.0.s8 %v158
    %v160 = vlaneseq
    %v161 = vshrl.u32 %v160, 7
    %v162 = vsub.s32 %v159, %v161
    %v163 = vrot.slane %v40, %v162
    %v165 = vunpack.c.l.s4 1983009808
    %v166 = vunpack.c.0.s8 %v165
    %v167 = vlaneseq
    %v168 = vshrl.u32 %v167, 7
    %v169 = vsub.s32 %v166, %v168
    %v170 = vrot.slane %v41, %v169
    %v171 = vcombine.high %v170, %v170
    %v173 = vunpack.c.l.s4 1983009808
    %v174 = vunpack.c.0.s8 %v173
    %v175 = vlaneseq
    %v176 = vshrl.u32 %v175, 7
    %v177 = vsub.s32 %v174, %v176
    %v178 = vrot.slane %v42, %v177
    %v179 = vld [vmem:[%s1] sm:$0xf]
    %v180 = vld [vmem:[%s1 + $0x4] sm:$0xf]
    %v181 = vld [vmem:[%s1 + $0x8] sm:$0xf]
    %v182 = vld [vmem:[%s1 + $0xc] sm:$0xf]
    %v183 = vld [vmem:[%s0 + $0x4] sm:$0x7]
    %v184 = vld [vmem:[%s0 + $0x10] sm:$0x7]
    %v185 = vld [vmem:[%s0 + $0x1c] sm:$0x7]
    %v186 = vld [vmem:[%s0 + $0x28] sm:$0x7]
    %v187 = vld [vmem:[%s0 + $0x34] sm:$0x7]
    %v188 = vld [vmem:[%s0 + $0x40] sm:$0x7]
    %v189 = vld [vmem:[%s0 + $0x4c] sm:$0x7]
    %v190 = vld [vmem:[%s0 + $0x58] sm:$0x7]
    %v200 = vunpack.c.l.s4 1983009808
    %v201 = vunpack.c.0.s8 %v200
    %v202 = vlaneseq
    %v203 = vshrl.u32 %v202, 7
    %v204 = vsub.s32 %v201, %v203
    %v205 = vrot.slane %v183, %v204
    %v206 = vcombine.high %v205, %v205
    %v208 = vunpack.c.l.s4 1983009808
    %v209 = vunpack.c.0.s8 %v208
    %v210 = vlaneseq
    %v211 = vshrl.u32 %v210, 7
    %v212 = vsub.s32 %v209, %v211
    %v213 = vrot.slane %v184, %v212
    %v214 = vcombine.high %v213, %v213
    %v216 = vunpack.c.l.s4 1983009808
    %v217 = vunpack.c.0.s8 %v216
    %v218 = vlaneseq
    %v219 = vshrl.u32 %v218, 7
    %v220 = vsub.s32 %v217, %v219
    %v221 = vrot.slane %v185, %v220
    %v222 = vcombine.high %v221, %v221
    %v224 = vunpack.c.l.s4 1983009808
    %v225 = vunpack.c.0.s8 %v224
    %v226 = vlaneseq
    %v227 = vshrl.u32 %v226, 7
    %v228 = vsub.s32 %v225, %v227
    %v229 = vrot.slane %v186, %v228
    %v230 = vcombine.high %v229, %v229
    %v232 = vunpack.c.l.s4 1983009808
    %v233 = vunpack.c.0.s8 %v232
    %v234 = vlaneseq
    %v235 = vshrl.u32 %v234, 7
    %v236 = vsub.s32 %v233, %v235
    %v237 = vrot.slane %v187, %v236
    %v238 = vcombine.high %v237, %v237
    %v240 = vunpack.c.l.s4 1983009808
    %v241 = vunpack.c.0.s8 %v240
    %v242 = vlaneseq
    %v243 = vshrl.u32 %v242, 7
    %v244 = vsub.s32 %v241, %v243
    %v245 = vrot.slane %v188, %v244
    %v246 = vcombine.high %v245, %v245
    %v248 = vunpack.c.l.s4 1983009808
    %v249 = vunpack.c.0.s8 %v248
    %v250 = vlaneseq
    %v251 = vshrl.u32 %v250, 7
    %v252 = vsub.s32 %v249, %v251
    %v253 = vrot.slane %v189, %v252
    %v254 = vcombine.high %v253, %v253
    %v256 = vunpack.c.l.s4 1983009808
    %v257 = vunpack.c.0.s8 %v256
    %v258 = vlaneseq
    %v259 = vshrl.u32 %v258, 7
    %v260 = vsub.s32 %v257, %v259
    %v261 = vrot.slane %v190, %v260
    %v262 = vcombine.high %v261, %v261
    %vm263 = vsmask.f32 1280
    %vm264 = vsmask.f32 3336
    %vm265 = vmor %vm263, %vm264
    %vm266 = vsmask.f32 5392
    %vm267 = vmor %vm265, %vm266
    %vm268 = vsmask.f32 7448
    %vm269 = vmor %vm267, %vm268
    %v271 = vshrl.u32 %v65, 16
    %v273 = vrot.slane %v271, 6
    %v274 = vshll.u32 %v65, 16
    %v276 = vrot.slane %v274, 7
    %v277 = vor.u32 %v273, %v276
    %v278 = vrot.slane %v277, 2
    %v280 = vshll.u32 %v66, 16
    %v282 = vrot.slane %v280, 7
    %v283 = vsel %vm269, %v278, %v282
    %v284 = vshrl.u32 %v66, 16
    %v286 = vrot.slane %v284, 6
    %v287 = vor.u32 %v286, %v282
    %v288 = vrot.slane %v287, 2
    %v290 = vshll.u32 %v205, 16
    %v292 = vrot.slane %v290, 7
    %v293 = vsel %vm269, %v288, %v292
    %v294 = vshrl.u32 %v205, 16
    %v296 = vrot.slane %v294, 6
    %v297 = vor.u32 %v296, %v292
    %v298 = vrot.slane %v297, 2
    %v300 = vshll.u32 %v206, 16
    %v302 = vrot.slane %v300, 7
    %v303 = vsel %vm269, %v298, %v302
    %v305 = vshrl.u32 %v80, 16
    %v307 = vrot.slane %v305, 6
    %v308 = vshll.u32 %v80, 16
    %v310 = vrot.slane %v308, 7
    %v311 = vor.u32 %v307, %v310
    %v312 = vrot.slane %v311, 2
    %v314 = vshll.u32 %v81, 16
    %v316 = vrot.slane %v314, 7
    %v317 = vsel %vm269, %v312, %v316
    %v318 = vshrl.u32 %v81, 16
    %v320 = vrot.slane %v318, 6
    %v321 = vor.u32 %v320, %v316
    %v322 = vrot.slane %v321, 2
    %v324 = vshll.u32 %v213, 16
    %v326 = vrot.slane %v324, 7
    %v327 = vsel %vm269, %v322, %v326
    %v328 = vshrl.u32 %v213, 16
    %v330 = vrot.slane %v328, 6
    %v331 = vor.u32 %v330, %v326
    %v332 = vrot.slane %v331, 2
    %v334 = vshll.u32 %v214, 16
    %v336 = vrot.slane %v334, 7
    %v337 = vsel %vm269, %v332, %v336
    %v339 = vshrl.u32 %v95, 16
    %v341 = vrot.slane %v339, 6
    %v342 = vshll.u32 %v95, 16
    %v344 = vrot.slane %v342, 7
    %v345 = vor.u32 %v341, %v344
    %v346 = vrot.slane %v345, 2
    %v348 = vshll.u32 %v96, 16
    %v350 = vrot.slane %v348, 7
    %v351 = vsel %vm269, %v346, %v350
    %v352 = vshrl.u32 %v96, 16
    %v354 = vrot.slane %v352, 6
    %v355 = vor.u32 %v354, %v350
    %v356 = vrot.slane %v355, 2
    %v358 = vshll.u32 %v221, 16
    %v360 = vrot.slane %v358, 7
    %v361 = vsel %vm269, %v356, %v360
    %v362 = vshrl.u32 %v221, 16
    %v364 = vrot.slane %v362, 6
    %v365 = vor.u32 %v364, %v360
    %v366 = vrot.slane %v365, 2
    %v368 = vshll.u32 %v222, 16
    %v370 = vrot.slane %v368, 7
    %v371 = vsel %vm269, %v366, %v370
    %v373 = vshrl.u32 %v110, 16
    %v375 = vrot.slane %v373, 6
    %v376 = vshll.u32 %v110, 16
    %v378 = vrot.slane %v376, 7
    %v379 = vor.u32 %v375, %v378
    %v380 = vrot.slane %v379, 2
    %v382 = vshll.u32 %v111, 16
    %v384 = vrot.slane %v382, 7
    %v385 = vsel %vm269, %v380, %v384
    %v386 = vshrl.u32 %v111, 16
    %v388 = vrot.slane %v386, 6
    %v389 = vor.u32 %v388, %v384
    %v390 = vrot.slane %v389, 2
    %v392 = vshll.u32 %v229, 16
    %v394 = vrot.slane %v392, 7
    %v395 = vsel %vm269, %v390, %v394
    %v396 = vshrl.u32 %v229, 16
    %v398 = vrot.slane %v396, 6
    %v399 = vor.u32 %v398, %v394
    %v400 = vrot.slane %v399, 2
    %v402 = vshll.u32 %v230, 16
    %v404 = vrot.slane %v402, 7
    %v405 = vsel %vm269, %v400, %v404
    %v407 = vshrl.u32 %v125, 16
    %v409 = vrot.slane %v407, 6
    %v410 = vshll.u32 %v125, 16
    %v412 = vrot.slane %v410, 7
    %v413 = vor.u32 %v409, %v412
    %v414 = vrot.slane %v413, 2
    %v416 = vshll.u32 %v126, 16
    %v418 = vrot.slane %v416, 7
    %v419 = vsel %vm269, %v414, %v418
    %v420 = vshrl.u32 %v126, 16
    %v422 = vrot.slane %v420, 6
    %v423 = vor.u32 %v422, %v418
    %v424 = vrot.slane %v423, 2
    %v426 = vshll.u32 %v237, 16
    %v428 = vrot.slane %v426, 7
    %v429 = vsel %vm269, %v424, %v428
    %v430 = vshrl.u32 %v237, 16
    %v432 = vrot.slane %v430, 6
    %v433 = vor.u32 %v432, %v428
    %v434 = vrot.slane %v433, 2
    %v436 = vshll.u32 %v238, 16
    %v438 = vrot.slane %v436, 7
    %v439 = vsel %vm269, %v434, %v438
    %v441 = vshrl.u32 %v140, 16
    %v443 = vrot.slane %v441, 6
    %v444 = vshll.u32 %v140, 16
    %v446 = vrot.slane %v444, 7
    %v447 = vor.u32 %v443, %v446
    %v448 = vrot.slane %v447, 2
    %v450 = vshll.u32 %v141, 16
    %v452 = vrot.slane %v450, 7
    %v453 = vsel %vm269, %v448, %v452
    %v454 = vshrl.u32 %v141, 16
    %v456 = vrot.slane %v454, 6
    %v457 = vor.u32 %v456, %v452
    %v458 = vrot.slane %v457, 2
    %v460 = vshll.u32 %v245, 16
    %v462 = vrot.slane %v460, 7
    %v463 = vsel %vm269, %v458, %v462
    %v464 = vshrl.u32 %v245, 16
    %v466 = vrot.slane %v464, 6
    %v467 = vor.u32 %v466, %v462
    %v468 = vrot.slane %v467, 2
    %v470 = vshll.u32 %v246, 16
    %v472 = vrot.slane %v470, 7
    %v473 = vsel %vm269, %v468, %v472
    %v475 = vshrl.u32 %v155, 16
    %v477 = vrot.slane %v475, 6
    %v478 = vshll.u32 %v155, 16
    %v480 = vrot.slane %v478, 7
    %v481 = vor.u32 %v477, %v480
    %v482 = vrot.slane %v481, 2
    %v484 = vshll.u32 %v156, 16
    %v486 = vrot.slane %v484, 7
    %v487 = vsel %vm269, %v482, %v486
    %v488 = vshrl.u32 %v156, 16
    %v490 = vrot.slane %v488, 6
    %v491 = vor.u32 %v490, %v486
    %v492 = vrot.slane %v491, 2
    %v494 = vshll.u32 %v253, 16
    %v496 = vrot.slane %v494, 7
    %v497 = vsel %vm269, %v492, %v496
    %v498 = vshrl.u32 %v253, 16
    %v500 = vrot.slane %v498, 6
    %v501 = vor.u32 %v500, %v496
    %v502 = vrot.slane %v501, 2
    %v504 = vshll.u32 %v254, 16
    %v506 = vrot.slane %v504, 7
    %v507 = vsel %vm269, %v502, %v506
    %v509 = vshrl.u32 %v170, 16
    %v511 = vrot.slane %v509, 6
    %v512 = vshll.u32 %v170, 16
    %v514 = vrot.slane %v512, 7
    %v515 = vor.u32 %v511, %v514
    %v516 = vrot.slane %v515, 2
    %v518 = vshll.u32 %v171, 16
    %v520 = vrot.slane %v518, 7
    %v521 = vsel %vm269, %v516, %v520
    %v522 = vshrl.u32 %v171, 16
    %v524 = vrot.slane %v522, 6
    %v525 = vor.u32 %v524, %v520
    %v526 = vrot.slane %v525, 2
    %v528 = vshll.u32 %v261, 16
    %v530 = vrot.slane %v528, 7
    %v531 = vsel %vm269, %v526, %v530
    %v532 = vshrl.u32 %v261, 16
    %v534 = vrot.slane %v532, 6
    %v535 = vor.u32 %v534, %v530
    %v536 = vrot.slane %v535, 2
    %v538 = vshll.u32 %v262, 16
    %v540 = vrot.slane %v538, 7
    %v541 = vsel %vm269, %v536, %v540
    %s542 = scalar_lea.vmem %s1, 16
    %v543 = vld [vmem:[%s542] sm:$0xf]
    %v544 = vld [vmem:[%s542 + $0x4] sm:$0xf]
    %v545 = vld [vmem:[%s542 + $0x8] sm:$0xf]
    %v546 = vld [vmem:[%s542 + $0xc] sm:$0xf]
    %v547 = vcombine.low %v283, %v293
    %v548 = vcombine.low %v303, %v317
    %v550 = vunpack.c.l.s4 1983009808
    %v551 = vunpack.c.0.s8 %v550
    %v552 = vlaneseq
    %v553 = vshrl.u32 %v552, 7
    %v554 = vsub.s32 %v551, %v553
    %v555 = vrot.slane %v547, %v554
    %v557 = vunpack.c.l.s4 1983009808
    %v558 = vunpack.c.0.s8 %v557
    %v559 = vlaneseq
    %v560 = vshrl.u32 %v559, 7
    %v561 = vsub.s32 %v558, %v560
    %v562 = vrot.slane %v548, %v561
    %v563 = vcombine.low %v555, %v562
    %v564 = vcombine.low %v327, %v337
    %v565 = vcombine.low %v351, %v361
    %v567 = vunpack.c.l.s4 1983009808
    %v568 = vunpack.c.0.s8 %v567
    %v569 = vlaneseq
    %v570 = vshrl.u32 %v569, 7
    %v571 = vsub.s32 %v568, %v570
    %v572 = vrot.slane %v564, %v571
    %v574 = vunpack.c.l.s4 1983009808
    %v575 = vunpack.c.0.s8 %v574
    %v576 = vlaneseq
    %v577 = vshrl.u32 %v576, 7
    %v578 = vsub.s32 %v575, %v577
    %v579 = vrot.slane %v565, %v578
    %v580 = vcombine.low %v572, %v579
    %v581 = vcombine.low %v371, %v385
    %v582 = vcombine.low %v395, %v405
    %v584 = vunpack.c.l.s4 1983009808
    %v585 = vunpack.c.0.s8 %v584
    %v586 = vlaneseq
    %v587 = vshrl.u32 %v586, 7
    %v588 = vsub.s32 %v585, %v587
    %v589 = vrot.slane %v581, %v588
    %v591 = vunpack.c.l.s4 1983009808
    %v592 = vunpack.c.0.s8 %v591
    %v593 = vlaneseq
    %v594 = vshrl.u32 %v593, 7
    %v595 = vsub.s32 %v592, %v594
    %v596 = vrot.slane %v582, %v595
    %v597 = vcombine.low %v589, %v596
    %v598 = vcombine.low %v419, %v429
    %v599 = vcombine.low %v439, %v453
    %v601 = vunpack.c.l.s4 1983009808
    %v602 = vunpack.c.0.s8 %v601
    %v603 = vlaneseq
    %v604 = vshrl.u32 %v603, 7
    %v605 = vsub.s32 %v602, %v604
    %v606 = vrot.slane %v598, %v605
    %v608 = vunpack.c.l.s4 1983009808
    %v609 = vunpack.c.0.s8 %v608
    %v610 = vlaneseq
    %v611 = vshrl.u32 %v610, 7
    %v612 = vsub.s32 %v609, %v611
    %v613 = vrot.slane %v599, %v612
    %v614 = vcombine.low %v606, %v613
    %v615 = vcombine.low %v463, %v473
    %v616 = vcombine.low %v487, %v497
    %v618 = vunpack.c.l.s4 1983009808
    %v619 = vunpack.c.0.s8 %v618
    %v620 = vlaneseq
    %v621 = vshrl.u32 %v620, 7
    %v622 = vsub.s32 %v619, %v621
    %v623 = vrot.slane %v615, %v622
    %v625 = vunpack.c.l.s4 1983009808
    %v626 = vunpack.c.0.s8 %v625
    %v627 = vlaneseq
    %v628 = vshrl.u32 %v627, 7
    %v629 = vsub.s32 %v626, %v628
    %v630 = vrot.slane %v616, %v629
    %v631 = vcombine.low %v623, %v630
    %v632 = vcombine.low %v507, %v521
    %v633 = vcombine.low %v531, %v541
    %v635 = vunpack.c.l.s4 1983009808
    %v636 = vunpack.c.0.s8 %v635
    %v637 = vlaneseq
    %v638 = vshrl.u32 %v637, 7
    %v639 = vsub.s32 %v636, %v638
    %v640 = vrot.slane %v632, %v639
    %v642 = vunpack.c.l.s4 1983009808
    %v643 = vunpack.c.0.s8 %v642
    %v644 = vlaneseq
    %v645 = vshrl.u32 %v644, 7
    %v646 = vsub.s32 %v643, %v645
    %v647 = vrot.slane %v633, %v646
    %v648 = vcombine.low %v640, %v647
    %v653 = vunpack.c.l.b16 %v543
    %v654 = vunpack.c.l.b16 %v544
    %v655 = vunpack.c.l.b16 %v545
    %v656 = vunpack.c.l.b16 %v546
    %v657 = vpack.c.b16 %v654, %v653
    %v658 = vpack.c.b16 %v656, %v655
    %vm661 = vcmask 261120
    %v663 = vsel %vm661, %v563, 0
    %v666 = vsel %vm661, %v580, 0
    %v669 = vsel %vm661, %v597, 0
    %v672 = vsel %vm661, %v614, 0
    %v675 = vsel %vm661, %v631, 0
    %v678 = vsel %vm661, %v648, 0
    %680 = vmatprep.subr.bf16.mxu0 0
    %681 = vmatpush1.bf16.msra.mxu0 %v657
    %682 = vmatprep.subr.bf16.mxu0 0
    %683 = vmatpush1.bf16.msra.mxu0 %v658
    %684 = vmatprep.subr.bf16.mxu0 0
    %685 = vmatpush1.bf16.msra.mxu0 0
    %686 = vmatprep.subr.bf16.mxu0 0
    %687 = vmatpush1.bf16.msra.mxu0 0
    %688 = vmatprep.subr.bf16.mxu0 0
    %689 = vmatpush1.bf16.msra.mxu0 0
    %690 = vmatprep.subr.bf16.mxu0 0
    %691 = vmatpush1.bf16.msra.mxu0 0
    %692 = vmatprep.subr.bf16.mxu0 0
    %693 = vmatpush1.bf16.msra.mxu0 0
    %694 = vmatprep.subr.bf16.mxu0 0
    %695 = vmatpush1.bf16.msra.mxu0 0
    %696 = vmatprep.subr.bf16.mxu0 0
    %697 = vmatpush1.bf16.msra.mxu0 0
    %698 = vmatprep.subr.bf16.mxu0 0
    %699 = vmatpush1.bf16.msra.mxu0 0
    %700 = vmatprep.subr.bf16.mxu0 0
    %701 = vmatpush1.bf16.msra.mxu0 0
    %702 = vmatprep.subr.bf16.mxu0 0
    %703 = vmatpush1.bf16.msra.mxu0 0
    %704 = vmatprep.subr.bf16.mxu0 0
    %705 = vmatpush1.bf16.msra.mxu0 0
    %706 = vmatprep.subr.bf16.mxu0 0
    %707 = vmatpush1.bf16.msra.mxu0 0
    %708 = vmatprep.subr.bf16.mxu0 0
    %709 = vmatpush1.bf16.msra.mxu0 0
    %710 = vmatprep.subr.bf16.mxu0 0
    %711 = vmatpush1.bf16.msra.mxu0 0
    %712 = vmatprep.mubr.bf16.mxu0 0
    %713 = vmatmul.mubr.bf16.gmra.mrb[0].mxu0 %v663
    %v714 = vpop.f32.mrb[0].mxu0
    %v715 = vadd.f32 0.0, %v714
    %v716 = vpop.f32.mrb[0].mxu0
    %v717 = vpop.f32.mrb[0].mxu0
    %v718 = vadd.f32 0.0, %v717
    %v719 = vpop.f32.mrb[0].mxu0
    %720 = vmatprep.mubr.bf16.mxu0 0
    %721 = vmatmul.mubr.bf16.gmra.mrb[0].mxu0 %v666
    %v722 = vpop.f32.mrb[0].mxu0
    %v723 = vadd.f32 0.0, %v722
    %v724 = vpop.f32.mrb[0].mxu0
    %v725 = vpop.f32.mrb[0].mxu0
    %v726 = vadd.f32 0.0, %v725
    %v727 = vpop.f32.mrb[0].mxu0
    %728 = vmatprep.mubr.bf16.mxu0 0
    %729 = vmatmul.mubr.bf16.gmra.mrb[0].mxu0 %v669
    %v730 = vpop.f32.mrb[0].mxu0
    %v731 = vadd.f32 0.0, %v730
    %v732 = vpop.f32.mrb[0].mxu0
    %v733 = vpop.f32.mrb[0].mxu0
    %v734 = vadd.f32 0.0, %v733
    %v735 = vpop.f32.mrb[0].mxu0
    %736 = vmatprep.mubr.bf16.mxu0 0
    %737 = vmatmul.mubr.bf16.gmra.mrb[0].mxu0 %v672
    %v738 = vpop.f32.mrb[0].mxu0
    %v739 = vadd.f32 0.0, %v738
    %v740 = vpop.f32.mrb[0].mxu0
    %v741 = vpop.f32.mrb[0].mxu0
    %v742 = vadd.f32 0.0, %v741
    %v743 = vpop.f32.mrb[0].mxu0
    %744 = vmatprep.mubr.bf16.mxu0 0
    %745 = vmatmul.mubr.bf16.gmra.mrb[0].mxu0 %v675
    %v746 = vpop.f32.mrb[0].mxu0
    %v747 = vadd.f32 0.0, %v746
    %v748 = vpop.f32.mrb[0].mxu0
    %v749 = vpop.f32.mrb[0].mxu0
    %v750 = vadd.f32 0.0, %v749
    %v751 = vpop.f32.mrb[0].mxu0
    %752 = vmatprep.mubr.bf16.mxu0 0
    %753 = vmatmul.mubr.bf16.gmra.mrb[0].mxu0 %v678
    %v754 = vpop.f32.mrb[0].mxu0
    %v755 = vadd.f32 0.0, %v754
    %v756 = vpop.f32.mrb[0].mxu0
    %v757 = vpop.f32.mrb[0].mxu0
    %v758 = vadd.f32 0.0, %v757
    %v759 = vpop.f32.mrb[0].mxu0
    %760 = vdwg.mxu0
    %v761 = vcombine.low %v65, %v66
    %v762 = vcombine.low %v73, %v80
    %v764 = vunpack.c.l.s4 1983009808
    %v765 = vunpack.c.0.s8 %v764
    %v766 = vlaneseq
    %v767 = vshrl.u32 %v766, 7
    %v768 = vsub.s32 %v765, %v767
    %v769 = vrot.slane %v761, %v768
    %v771 = vunpack.c.l.s4 1983009808
    %v772 = vunpack.c.0.s8 %v771
    %v773 = vlaneseq
    %v774 = vshrl.u32 %v773, 7
    %v775 = vsub.s32 %v772, %v774
    %v776 = vrot.slane %v762, %v775
    %v777 = vcombine.low %v769, %v776
    %v778 = vcombine.low %v81, %v88
    %v779 = vcombine.low %v95, %v96
    %v781 = vunpack.c.l.s4 1983009808
    %v782 = vunpack.c.0.s8 %v781
    %v783 = vlaneseq
    %v784 = vshrl.u32 %v783, 7
    %v785 = vsub.s32 %v782, %v784
    %v786 = vrot.slane %v778, %v785
    %v788 = vunpack.c.l.s4 1983009808
    %v789 = vunpack.c.0.s8 %v788
    %v790 = vlaneseq
    %v791 = vshrl.u32 %v790, 7
    %v792 = vsub.s32 %v789, %v791
    %v793 = vrot.slane %v779, %v792
    %v794 = vcombine.low %v786, %v793
    %v795 = vcombine.low %v103, %v110
    %v796 = vcombine.low %v111, %v118
    %v798 = vunpack.c.l.s4 1983009808
    %v799 = vunpack.c.0.s8 %v798
    %v800 = vlaneseq
    %v801 = vshrl.u32 %v800, 7
    %v802 = vsub.s32 %v799, %v801
    %v803 = vrot.slane %v795, %v802
    %v805 = vunpack.c.l.s4 1983009808
    %v806 = vunpack.c.0.s8 %v805
    %v807 = vlaneseq
    %v808 = vshrl.u32 %v807, 7
    %v809 = vsub.s32 %v806, %v808
    %v810 = vrot.slane %v796, %v809
    %v811 = vcombine.low %v803, %v810
    %v812 = vcombine.low %v125, %v126
    %v813 = vcombine.low %v133, %v140
    %v815 = vunpack.c.l.s4 1983009808
    %v816 = vunpack.c.0.s8 %v815
    %v817 = vlaneseq
    %v818 = vshrl.u32 %v817, 7
    %v819 = vsub.s32 %v816, %v818
    %v820 = vrot.slane %v812, %v819
    %v822 = vunpack.c.l.s4 1983009808
    %v823 = vunpack.c.0.s8 %v822
    %v824 = vlaneseq
    %v825 = vshrl.u32 %v824, 7
    %v826 = vsub.s32 %v823, %v825
    %v827 = vrot.slane %v813, %v826
    %v828 = vcombine.low %v820, %v827
    %v829 = vcombine.low %v141, %v148
    %v830 = vcombine.low %v155, %v156
    %v832 = vunpack.c.l.s4 1983009808
    %v833 = vunpack.c.0.s8 %v832
    %v834 = vlaneseq
    %v835 = vshrl.u32 %v834, 7
    %v836 = vsub.s32 %v833, %v835
    %v837 = vrot.slane %v829, %v836
    %v839 = vunpack.c.l.s4 1983009808
    %v840 = vunpack.c.0.s8 %v839
    %v841 = vlaneseq
    %v842 = vshrl.u32 %v841, 7
    %v843 = vsub.s32 %v840, %v842
    %v844 = vrot.slane %v830, %v843
    %v845 = vcombine.low %v837, %v844
    %v846 = vcombine.low %v163, %v170
    %v847 = vcombine.low %v171, %v178
    %v849 = vunpack.c.l.s4 1983009808
    %v850 = vunpack.c.0.s8 %v849
    %v851 = vlaneseq
    %v852 = vshrl.u32 %v851, 7
    %v853 = vsub.s32 %v850, %v852
    %v854 = vrot.slane %v846, %v853
    %v856 = vunpack.c.l.s4 1983009808
    %v857 = vunpack.c.0.s8 %v856
    %v858 = vlaneseq
    %v859 = vshrl.u32 %v858, 7
    %v860 = vsub.s32 %v857, %v859
    %v861 = vrot.slane %v847, %v860
    %v862 = vcombine.low %v854, %v861
    %v867 = vunpack.c.l.b16 %v179
    %v868 = vunpack.c.l.b16 %v180
    %v869 = vunpack.c.l.b16 %v181
    %v870 = vunpack.c.l.b16 %v182
    %v871 = vpack.c.b16 %v868, %v867
    %v872 = vpack.c.b16 %v870, %v869
    %v876 = vsel %vm661, %v777, 0
    %v879 = vsel %vm661, %v794, 0
    %v882 = vsel %vm661, %v811, 0
    %v885 = vsel %vm661, %v828, 0
    %v888 = vsel %vm661, %v845, 0
    %v891 = vsel %vm661, %v862, 0
    %893 = vmatprep.subr.bf16.mxu0 0
    %894 = vmatpush1.bf16.msra.mxu0 %v871
    %895 = vmatprep.subr.bf16.mxu0 0
    %896 = vmatpush1.bf16.msra.mxu0 %v872
    %897 = vmatprep.subr.bf16.mxu0 0
    %898 = vmatpush1.bf16.msra.mxu0 0
    %899 = vmatprep.subr.bf16.mxu0 0
    %900 = vmatpush1.bf16.msra.mxu0 0
    %901 = vmatprep.subr.bf16.mxu0 0
    %902 = vmatpush1.bf16.msra.mxu0 0
    %903 = vmatprep.subr.bf16.mxu0 0
    %904 = vmatpush1.bf16.msra.mxu0 0
    %905 = vmatprep.subr.bf16.mxu0 0
    %906 = vmatpush1.bf16.msra.mxu0 0
    %907 = vmatprep.subr.bf16.mxu0 0
    %908 = vmatpush1.bf16.msra.mxu0 0
    %909 = vmatprep.subr.bf16.mxu0 0
    %910 = vmatpush1.bf16.msra.mxu0 0
    %911 = vmatprep.subr.bf16.mxu0 0
    %912 = vmatpush1.bf16.msra.mxu0 0
    %913 = vmatprep.subr.bf16.mxu0 0
    %914 = vmatpush1.bf16.msra.mxu0 0
    %915 = vmatprep.subr.bf16.mxu0 0
    %916 = vmatpush1.bf16.msra.mxu0 0
    %917 = vmatprep.subr.bf16.mxu0 0
    %918 = vmatpush1.bf16.msra.mxu0 0
    %919 = vmatprep.subr.bf16.mxu0 0
    %920 = vmatpush1.bf16.msra.mxu0 0
    %921 = vmatprep.subr.bf16.mxu0 0
    %922 = vmatpush1.bf16.msra.mxu0 0
    %923 = vmatprep.subr.bf16.mxu0 0
    %924 = vmatpush1.bf16.msra.mxu0 0
    %925 = vmatprep.mubr.bf16.mxu0 0
    %926 = vmatmul.mubr.bf16.gmra.mrb[0].mxu0 %v876
    %v927 = vpop.f32.mrb[0].mxu0
    %v928 = vadd.f32 %v715, %v927
    %v929 = vpop.f32.mrb[0].mxu0
    %v930 = vpop.f32.mrb[0].mxu0
    %v931 = vadd.f32 %v718, %v930
    %v932 = vpop.f32.mrb[0].mxu0
    %933 = vmatprep.mubr.bf16.mxu0 0
    %934 = vmatmul.mubr.bf16.gmra.mrb[0].mxu0 %v879
    %v935 = vpop.f32.mrb[0].mxu0
    %v936 = vadd.f32 %v723, %v935
    %v937 = vpop.f32.mrb[0].mxu0
    %v938 = vpop.f32.mrb[0].mxu0
    %v939 = vadd.f32 %v726, %v938
    %v940 = vpop.f32.mrb[0].mxu0
    %941 = vmatprep.mubr.bf16.mxu0 0
    %942 = vmatmul.mubr.bf16.gmra.mrb[0].mxu0 %v882
    %v943 = vpop.f32.mrb[0].mxu0
    %v944 = vadd.f32 %v731, %v943
    %v945 = vpop.f32.mrb[0].mxu0
    %v946 = vpop.f32.mrb[0].mxu0
    %v947 = vadd.f32 %v734, %v946
    %v948 = vpop.f32.mrb[0].mxu0
    %949 = vmatprep.mubr.bf16.mxu0 0
    %950 = vmatmul.mubr.bf16.gmra.mrb[0].mxu0 %v885
    %v951 = vpop.f32.mrb[0].mxu0
    %v952 = vadd.f32 %v739, %v951
    %v953 = vpop.f32.mrb[0].mxu0
    %v954 = vpop.f32.mrb[0].mxu0
    %v955 = vadd.f32 %v742, %v954
    %v956 = vpop.f32.mrb[0].mxu0
    %957 = vmatprep.mubr.bf16.mxu0 0
    %958 = vmatmul.mubr.bf16.gmra.mrb[0].mxu0 %v888
    %v959 = vpop.f32.mrb[0].mxu0
    %v960 = vadd.f32 %v747, %v959
    %v961 = vpop.f32.mrb[0].mxu0
    %v962 = vpop.f32.mrb[0].mxu0
    %v963 = vadd.f32 %v750, %v962
    %v964 = vpop.f32.mrb[0].mxu0
    %965 = vmatprep.mubr.bf16.mxu0 0
    %966 = vmatmul.mubr.bf16.gmra.mrb[0].mxu0 %v891
    %v967 = vpop.f32.mrb[0].mxu0
    %v968 = vadd.f32 %v755, %v967
    %v969 = vpop.f32.mrb[0].mxu0
    %v970 = vpop.f32.mrb[0].mxu0
    %v971 = vadd.f32 %v758, %v970
    %v972 = vpop.f32.mrb[0].mxu0
    %973 = vdwg.mxu0
    %v974 = vld [vmem:[%s0] sm:$0xe]
    %v975 = vld [vmem:[%s0 + $0x4] sm:$0x7]
    %v976 = vld [vmem:[%s0 + $0xc] sm:$0xe]
    %v977 = vld [vmem:[%s0 + $0x10] sm:$0x7]
    %v978 = vld [vmem:[%s0 + $0x18] sm:$0xe]
    %v979 = vld [vmem:[%s0 + $0x1c] sm:$0x7]
    %v980 = vld [vmem:[%s0 + $0x24] sm:$0xe]
    %v981 = vld [vmem:[%s0 + $0x28] sm:$0x7]
    %v982 = vld [vmem:[%s0 + $0x30] sm:$0xe]
    %v983 = vld [vmem:[%s0 + $0x34] sm:$0x7]
    %v984 = vld [vmem:[%s0 + $0x3c] sm:$0xe]
    %v985 = vld [vmem:[%s0 + $0x40] sm:$0x7]
    %v986 = vld [vmem:[%s0 + $0x48] sm:$0xe]
    %v987 = vld [vmem:[%s0 + $0x4c] sm:$0x7]
    %v988 = vld [vmem:[%s0 + $0x54] sm:$0xe]
    %v989 = vld [vmem:[%s0 + $0x58] sm:$0x7]
    %v1007 = vunpack.c.l.s4 1983009808
    %v1008 = vunpack.c.0.s8 %v1007
    %v1009 = vlaneseq
    %v1010 = vshrl.u32 %v1009, 7
    %v1011 = vsub.s32 %v1008, %v1010
    %v1012 = vrot.slane %v974, %v1011
    %v1013 = vcombine.high %v1012, %v1012
    %v1015 = vunpack.c.l.s4 1983009808
    %v1016 = vunpack.c.0.s8 %v1015
    %v1017 = vlaneseq
    %v1018 = vshrl.u32 %v1017, 7
    %v1019 = vsub.s32 %v1016, %v1018
    %v1020 = vrot.slane %v975, %v1019
    %v1021 = vcombine.high %v1020, %v1020
    %v1023 = vunpack.c.l.s4 1983009808
    %v1024 = vunpack.c.0.s8 %v1023
    %v1025 = vlaneseq
    %v1026 = vshrl.u32 %v1025, 7
    %v1027 = vsub.s32 %v1024, %v1026
    %v1028 = vrot.slane %v976, %v1027
    %v1029 = vcombine.high %v1028, %v1028
    %v1031 = vunpack.c.l.s4 1983009808
    %v1032 = vunpack.c.0.s8 %v1031
    %v1033 = vlaneseq
    %v1034 = vshrl.u32 %v1033, 7
    %v1035 = vsub.s32 %v1032, %v1034
    %v1036 = vrot.slane %v977, %v1035
    %v1037 = vcombine.high %v1036, %v1036
    %v1039 = vunpack.c.l.s4 1983009808
    %v1040 = vunpack.c.0.s8 %v1039
    %v1041 = vlaneseq
    %v1042 = vshrl.u32 %v1041, 7
    %v1043 = vsub.s32 %v1040, %v1042
    %v1044 = vrot.slane %v978, %v1043
    %v1045 = vcombine.high %v1044, %v1044
    %v1047 = vunpack.c.l.s4 1983009808
    %v1048 = vunpack.c.0.s8 %v1047
    %v1049 = vlaneseq
    %v1050 = vshrl.u32 %v1049, 7
    %v1051 = vsub.s32 %v1048, %v1050
    %v1052 = vrot.slane %v979, %v1051
    %v1053 = vcombine.high %v1052, %v1052
    %v1055 = vunpack.c.l.s4 1983009808
    %v1056 = vunpack.c.0.s8 %v1055
    %v1057 = vlaneseq
    %v1058 = vshrl.u32 %v1057, 7
    %v1059 = vsub.s32 %v1056, %v1058
    %v1060 = vrot.slane %v980, %v1059
    %v1061 = vcombine.high %v1060, %v1060
    %v1063 = vunpack.c.l.s4 1983009808
    %v1064 = vunpack.c.0.s8 %v1063
    %v1065 = vlaneseq
    %v1066 = vshrl.u32 %v1065, 7
    %v1067 = vsub.s32 %v1064, %v1066
    %v1068 = vrot.slane %v981, %v1067
    %v1069 = vcombine.high %v1068, %v1068
    %v1071 = vunpack.c.l.s4 1983009808
    %v1072 = vunpack.c.0.s8 %v1071
    %v1073 = vlaneseq
    %v1074 = vshrl.u32 %v1073, 7
    %v1075 = vsub.s32 %v1072, %v1074
    %v1076 = vrot.slane %v982, %v1075
    %v1077 = vcombine.high %v1076, %v1076
    %v1079 = vunpack.c.l.s4 1983009808
    %v1080 = vunpack.c.0.s8 %v1079
    %v1081 = vlaneseq
    %v1082 = vshrl.u32 %v1081, 7
    %v1083 = vsub.s32 %v1080, %v1082
    %v1084 = vrot.slane %v983, %v1083
    %v1085 = vcombine.high %v1084, %v1084
    %v1087 = vunpack.c.l.s4 1983009808
    %v1088 = vunpack.c.0.s8 %v1087
    %v1089 = vlaneseq
    %v1090 = vshrl.u32 %v1089, 7
    %v1091 = vsub.s32 %v1088, %v1090
    %v1092 = vrot.slane %v984, %v1091
    %v1093 = vcombine.high %v1092, %v1092
    %v1095 = vunpack.c.l.s4 1983009808
    %v1096 = vunpack.c.0.s8 %v1095
    %v1097 = vlaneseq
    %v1098 = vshrl.u32 %v1097, 7
    %v1099 = vsub.s32 %v1096, %v1098
    %v1100 = vrot.slane %v985, %v1099
    %v1101 = vcombine.high %v1100, %v1100
    %v1103 = vunpack.c.l.s4 1983009808
    %v1104 = vunpack.c.0.s8 %v1103
    %v1105 = vlaneseq
    %v1106 = vshrl.u32 %v1105, 7
    %v1107 = vsub.s32 %v1104, %v1106
    %v1108 = vrot.slane %v986, %v1107
    %v1109 = vcombine.high %v1108, %v1108
    %v1111 = vunpack.c.l.s4 1983009808
    %v1112 = vunpack.c.0.s8 %v1111
    %v1113 = vlaneseq
    %v1114 = vshrl.u32 %v1113, 7
    %v1115 = vsub.s32 %v1112, %v1114
    %v1116 = vrot.slane %v987, %v1115
    %v1117 = vcombine.high %v1116, %v1116
    %v1119 = vunpack.c.l.s4 1983009808
    %v1120 = vunpack.c.0.s8 %v1119
    %v1121 = vlaneseq
    %v1122 = vshrl.u32 %v1121, 7
    %v1123 = vsub.s32 %v1120, %v1122
    %v1124 = vrot.slane %v988, %v1123
    %v1125 = vcombine.high %v1124, %v1124
    %v1127 = vunpack.c.l.s4 1983009808
    %v1128 = vunpack.c.0.s8 %v1127
    %v1129 = vlaneseq
    %v1130 = vshrl.u32 %v1129, 7
    %v1131 = vsub.s32 %v1128, %v1130
    %v1132 = vrot.slane %v989, %v1131
    %v1133 = vcombine.high %v1132, %v1132
    %vm1134 = vcmask 1040384
    %vm1135 = vcmask 1042434
    %vm1136 = vmor %vm1134, %vm1135
    %vm1137 = vcmask 1044484
    %vm1138 = vmor %vm1136, %vm1137
    %vm1139 = vcmask 1046534
    %vm1140 = vmor %vm1138, %vm1139
    %v1141 = vrot.slane %v1012, 7
    %v1142 = vrot.slane %v1141, 2
    %v1143 = vrot.slane %v1013, 7
    %v1144 = vsel %vm1140, %v1142, %v1143
    %v1145 = vrot.slane %v1143, 2
    %v1146 = vrot.slane %v1020, 7
    %v1147 = vsel %vm1140, %v1145, %v1146
    %v1148 = vrot.slane %v1146, 2
    %v1149 = vrot.slane %v1021, 7
    %v1150 = vsel %vm1140, %v1148, %v1149
    %v1151 = vrot.slane %v1028, 7
    %v1152 = vrot.slane %v1151, 2
    %v1153 = vrot.slane %v1029, 7
    %v1154 = vsel %vm1140, %v1152, %v1153
    %v1155 = vrot.slane %v1153, 2
    %v1156 = vrot.slane %v1036, 7
    %v1157 = vsel %vm1140, %v1155, %v1156
    %v1158 = vrot.slane %v1156, 2
    %v1159 = vrot.slane %v1037, 7
    %v1160 = vsel %vm1140, %v1158, %v1159
    %v1161 = vrot.slane %v1044, 7
    %v1162 = vrot.slane %v1161, 2
    %v1163 = vrot.slane %v1045, 7
    %v1164 = vsel %vm1140, %v1162, %v1163
    %v1165 = vrot.slane %v1163, 2
    %v1166 = vrot.slane %v1052, 7
    %v1167 = vsel %vm1140, %v1165, %v1166
    %v1168 = vrot.slane %v1166, 2
    %v1169 = vrot.slane %v1053, 7
    %v1170 = vsel %vm1140, %v1168, %v1169
    %v1171 = vrot.slane %v1060, 7
    %v1172 = vrot.slane %v1171, 2
    %v1173 = vrot.slane %v1061, 7
    %v1174 = vsel %vm1140, %v1172, %v1173
    %v1175 = vrot.slane %v1173, 2
    %v1176 = vrot.slane %v1068, 7
    %v1177 = vsel %vm1140, %v1175, %v1176
    %v1178 = vrot.slane %v1176, 2
    %v1179 = vrot.slane %v1069, 7
    %v1180 = vsel %vm1140, %v1178, %v1179
    %v1181 = vrot.slane %v1076, 7
    %v1182 = vrot.slane %v1181, 2
    %v1183 = vrot.slane %v1077, 7
    %v1184 = vsel %vm1140, %v1182, %v1183
    %v1185 = vrot.slane %v1183, 2
    %v1186 = vrot.slane %v1084, 7
    %v1187 = vsel %vm1140, %v1185, %v1186
    %v1188 = vrot.slane %v1186, 2
    %v1189 = vrot.slane %v1085, 7
    %v1190 = vsel %vm1140, %v1188, %v1189
    %v1191 = vrot.slane %v1092, 7
    %v1192 = vrot.slane %v1191, 2
    %v1193 = vrot.slane %v1093, 7
    %v1194 = vsel %vm1140, %v1192, %v1193
    %v1195 = vrot.slane %v1193, 2
    %v1196 = vrot.slane %v1100, 7
    %v1197 = vsel %vm1140, %v1195, %v1196
    %v1198 = vrot.slane %v1196, 2
    %v1199 = vrot.slane %v1101, 7
    %v1200 = vsel %vm1140, %v1198, %v1199
    %v1201 = vrot.slane %v1108, 7
    %v1202 = vrot.slane %v1201, 2
    %v1203 = vrot.slane %v1109, 7
    %v1204 = vsel %vm1140, %v1202, %v1203
    %v1205 = vrot.slane %v1203, 2
    %v1206 = vrot.slane %v1116, 7
    %v1207 = vsel %vm1140, %v1205, %v1206
    %v1208 = vrot.slane %v1206, 2
    %v1209 = vrot.slane %v1117, 7
    %v1210 = vsel %vm1140, %v1208, %v1209
    %v1211 = vrot.slane %v1124, 7
    %v1212 = vrot.slane %v1211, 2
    %v1213 = vrot.slane %v1125, 7
    %v1214 = vsel %vm1140, %v1212, %v1213
    %v1215 = vrot.slane %v1213, 2
    %v1216 = vrot.slane %v1132, 7
    %v1217 = vsel %vm1140, %v1215, %v1216
    %v1218 = vrot.slane %v1216, 2
    %v1219 = vrot.slane %v1133, 7
    %v1220 = vsel %vm1140, %v1218, %v1219
    %s1221 = scalar_lea.vmem %s1, 32
    %v1222 = vld [vmem:[%s1221] sm:$0xf]
    %v1223 = vld [vmem:[%s1221 + $0x4] sm:$0xf]
    %v1224 = vld [vmem:[%s1221 + $0x8] sm:$0xf]
    %v1225 = vld [vmem:[%s1221 + $0xc] sm:$0xf]
    %v1226 = vcombine.low %v1144, %v1147
    %v1227 = vcombine.low %v1150, %v1154
    %v1229 = vunpack.c.l.s4 1983009808
    %v1230 = vunpack.c.0.s8 %v1229
    %v1231 = vlaneseq
    %v1232 = vshrl.u32 %v1231, 7
    %v1233 = vsub.s32 %v1230, %v1232
    %v1234 = vrot.slane %v1226, %v1233
    %v1236 = vunpack.c.l.s4 1983009808
    %v1237 = vunpack.c.0.s8 %v1236
    %v1238 = vlaneseq
    %v1239 = vshrl.u32 %v1238, 7
    %v1240 = vsub.s32 %v1237, %v1239
    %v1241 = vrot.slane %v1227, %v1240
    %v1242 = vcombine.low %v1234, %v1241
    %v1243 = vcombine.low %v1157, %v1160
    %v1244 = vcombine.low %v1164, %v1167
    %v1246 = vunpack.c.l.s4 1983009808
    %v1247 = vunpack.c.0.s8 %v1246
    %v1248 = vlaneseq
    %v1249 = vshrl.u32 %v1248, 7
    %v1250 = vsub.s32 %v1247, %v1249
    %v1251 = vrot.slane %v1243, %v1250
    %v1253 = vunpack.c.l.s4 1983009808
    %v1254 = vunpack.c.0.s8 %v1253
    %v1255 = vlaneseq
    %v1256 = vshrl.u32 %v1255, 7
    %v1257 = vsub.s32 %v1254, %v1256
    %v1258 = vrot.slane %v1244, %v1257
    %v1259 = vcombine.low %v1251, %v1258
    %v1260 = vcombine.low %v1170, %v1174
    %v1261 = vcombine.low %v1177, %v1180
    %v1263 = vunpack.c.l.s4 1983009808
    %v1264 = vunpack.c.0.s8 %v1263
    %v1265 = vlaneseq
    %v1266 = vshrl.u32 %v1265, 7
    %v1267 = vsub.s32 %v1264, %v1266
    %v1268 = vrot.slane %v1260, %v1267
    %v1270 = vunpack.c.l.s4 1983009808
    %v1271 = vunpack.c.0.s8 %v1270
    %v1272 = vlaneseq
    %v1273 = vshrl.u32 %v1272, 7
    %v1274 = vsub.s32 %v1271, %v1273
    %v1275 = vrot.slane %v1261, %v1274
    %v1276 = vcombine.low %v1268, %v1275
    %v1277 = vcombine.low %v1184, %v1187
    %v1278 = vcombine.low %v1190, %v1194
    %v1280 = vunpack.c.l.s4 1983009808
    %v1281 = vunpack.c.0.s8 %v1280
    %v1282 = vlaneseq
    %v1283 = vshrl.u32 %v1282, 7
    %v1284 = vsub.s32 %v1281, %v1283
    %v1285 = vrot.slane %v1277, %v1284
    %v1287 = vunpack.c.l.s4 1983009808
    %v1288 = vunpack.c.0.s8 %v1287
    %v1289 = vlaneseq
    %v1290 = vshrl.u32 %v1289, 7
    %v1291 = vsub.s32 %v1288, %v1290
    %v1292 = vrot.slane %v1278, %v1291
    %v1293 = vcombine.low %v1285, %v1292
    %v1294 = vcombine.low %v1197, %v1200
    %v1295 = vcombine.low %v1204, %v1207
    %v1297 = vunpack.c.l.s4 1983009808
    %v1298 = vunpack.c.0.s8 %v1297
    %v1299 = vlaneseq
    %v1300 = vshrl.u32 %v1299, 7
    %v1301 = vsub.s32 %v1298, %v1300
    %v1302 = vrot.slane %v1294, %v1301
    %v1304 = vunpack.c.l.s4 1983009808
    %v1305 = vunpack.c.0.s8 %v1304
    %v1306 = vlaneseq
    %v1307 = vshrl.u32 %v1306, 7
    %v1308 = vsub.s32 %v1305, %v1307
    %v1309 = vrot.slane %v1295, %v1308
    %v1310 = vcombine.low %v1302, %v1309
    %v1311 = vcombine.low %v1210, %v1214
    %v1312 = vcombine.low %v1217, %v1220
    %v1314 = vunpack.c.l.s4 1983009808
    %v1315 = vunpack.c.0.s8 %v1314
    %v1316 = vlaneseq
    %v1317 = vshrl.u32 %v1316, 7
    %v1318 = vsub.s32 %v1315, %v1317
    %v1319 = vrot.slane %v1311, %v1318
    %v1321 = vunpack.c.l.s4 1983009808
    %v1322 = vunpack.c.0.s8 %v1321
    %v1323 = vlaneseq
    %v1324 = vshrl.u32 %v1323, 7
    %v1325 = vsub.s32 %v1322, %v1324
    %v1326 = vrot.slane %v1312, %v1325
    %v1327 = vcombine.low %v1319, %v1326
    %v1332 = vunpack.c.l.b16 %v1222
    %v1333 = vunpack.c.l.b16 %v1223
    %v1334 = vunpack.c.l.b16 %v1224
    %v1335 = vunpack.c.l.b16 %v1225
    %v1336 = vpack.c.b16 %v1333, %v1332
    %v1337 = vpack.c.b16 %v1335, %v1334
    %v1341 = vsel %vm661, %v1242, 0
    %v1344 = vsel %vm661, %v1259, 0
    %v1347 = vsel %vm661, %v1276, 0
    %v1350 = vsel %vm661, %v1293, 0
    %v1353 = vsel %vm661, %v1310, 0
    %v1356 = vsel %vm661, %v1327, 0
    %1358 = vmatprep.subr.bf16.mxu0 0
    %1359 = vmatpush1.bf16.msra.mxu0 %v1336
    %1360 = vmatprep.subr.bf16.mxu0 0
    %1361 = vmatpush1.bf16.msra.mxu0 %v1337
    %1362 = vmatprep.subr.bf16.mxu0 0
    %1363 = vmatpush1.bf16.msra.mxu0 0
    %1364 = vmatprep.subr.bf16.mxu0 0
    %1365 = vmatpush1.bf16.msra.mxu0 0
    %1366 = vmatprep.subr.bf16.mxu0 0
    %1367 = vmatpush1.bf16.msra.mxu0 0
    %1368 = vmatprep.subr.bf16.mxu0 0
    %1369 = vmatpush1.bf16.msra.mxu0 0
    %1370 = vmatprep.subr.bf16.mxu0 0
    %1371 = vmatpush1.bf16.msra.mxu0 0
    %1372 = vmatprep.subr.bf16.mxu0 0
    %1373 = vmatpush1.bf16.msra.mxu0 0
    %1374 = vmatprep.subr.bf16.mxu0 0
    %1375 = vmatpush1.bf16.msra.mxu0 0
    %1376 = vmatprep.subr.bf16.mxu0 0
    %1377 = vmatpush1.bf16.msra.mxu0 0
    %1378 = vmatprep.subr.bf16.mxu0 0
    %1379 = vmatpush1.bf16.msra.mxu0 0
    %1380 = vmatprep.subr.bf16.mxu0 0
    %1381 = vmatpush1.bf16.msra.mxu0 0
    %1382 = vmatprep.subr.bf16.mxu0 0
    %1383 = vmatpush1.bf16.msra.mxu0 0
    %1384 = vmatprep.subr.bf16.mxu0 0
    %1385 = vmatpush1.bf16.msra.mxu0 0
    %1386 = vmatprep.subr.bf16.mxu0 0
    %1387 = vmatpush1.bf16.msra.mxu0 0
    %1388 = vmatprep.subr.bf16.mxu0 0
    %1389 = vmatpush1.bf16.msra.mxu0 0
    %1390 = vmatprep.mubr.bf16.mxu0 0
    %1391 = vmatmul.mubr.bf16.gmra.mrb[0].mxu0 %v1341
    %v1392 = vpop.f32.mrb[0].mxu0
    %v1393 = vadd.f32 0.0, %v1392
    %v1394 = vpop.f32.mrb[0].mxu0
    %v1395 = vpop.f32.mrb[0].mxu0
    %v1396 = vadd.f32 0.0, %v1395
    %v1397 = vpop.f32.mrb[0].mxu0
    %1398 = vmatprep.mubr.bf16.mxu0 0
    %1399 = vmatmul.mubr.bf16.gmra.mrb[0].mxu0 %v1344
    %v1400 = vpop.f32.mrb[0].mxu0
    %v1401 = vadd.f32 0.0, %v1400
    %v1402 = vpop.f32.mrb[0].mxu0
    %v1403 = vpop.f32.mrb[0].mxu0
    %v1404 = vadd.f32 0.0, %v1403
    %v1405 = vpop.f32.mrb[0].mxu0
    %1406 = vmatprep.mubr.bf16.mxu0 0
    %1407 = vmatmul.mubr.bf16.gmra.mrb[0].mxu0 %v1347
    %v1408 = vpop.f32.mrb[0].mxu0
    %v1409 = vadd.f32 0.0, %v1408
    %v1410 = vpop.f32.mrb[0].mxu0
    %v1411 = vpop.f32.mrb[0].mxu0
    %v1412 = vadd.f32 0.0, %v1411
    %v1413 = vpop.f32.mrb[0].mxu0
    %1414 = vmatprep.mubr.bf16.mxu0 0
    %1415 = vmatmul.mubr.bf16.gmra.mrb[0].mxu0 %v1350
    %v1416 = vpop.f32.mrb[0].mxu0
    %v1417 = vadd.f32 0.0, %v1416
    %v1418 = vpop.f32.mrb[0].mxu0
    %v1419 = vpop.f32.mrb[0].mxu0
    %v1420 = vadd.f32 0.0, %v1419
    %v1421 = vpop.f32.mrb[0].mxu0
    %1422 = vmatprep.mubr.bf16.mxu0 0
    %1423 = vmatmul.mubr.bf16.gmra.mrb[0].mxu0 %v1353
    %v1424 = vpop.f32.mrb[0].mxu0
    %v1425 = vadd.f32 0.0, %v1424
    %v1426 = vpop.f32.mrb[0].mxu0
    %v1427 = vpop.f32.mrb[0].mxu0
    %v1428 = vadd.f32 0.0, %v1427
    %v1429 = vpop.f32.mrb[0].mxu0
    %1430 = vmatprep.mubr.bf16.mxu0 0
    %1431 = vmatmul.mubr.bf16.gmra.mrb[0].mxu0 %v1356
    %v1432 = vpop.f32.mrb[0].mxu0
    %v1433 = vadd.f32 0.0, %v1432
    %v1434 = vpop.f32.mrb[0].mxu0
    %v1435 = vpop.f32.mrb[0].mxu0
    %v1436 = vadd.f32 0.0, %v1435
    %v1437 = vpop.f32.mrb[0].mxu0
    %1438 = vdwg.mxu0
    %v1439 = vadd.f32 %v928, %v1393
    %v1440 = vadd.f32 %v931, %v1396
    %v1441 = vadd.f32 %v936, %v1401
    %v1442 = vadd.f32 %v939, %v1404
    %v1443 = vadd.f32 %v944, %v1409
    %v1444 = vadd.f32 %v947, %v1412
    %v1445 = vadd.f32 %v952, %v1417
    %v1446 = vadd.f32 %v955, %v1420
    %v1447 = vadd.f32 %v960, %v1425
    %v1448 = vadd.f32 %v963, %v1428
    %v1449 = vadd.f32 %v968, %v1433
    %v1450 = vadd.f32 %v971, %v1436
    %v1451 = vld [vmem:[%s0] sm:$0xe]
    %v1452 = vld [vmem:[%s0 + $0x4] sm:$0xf]
    %v1453 = vld [vmem:[%s0 + $0xc] sm:$0xe]
    %v1454 = vld [vmem:[%s0 + $0x10] sm:$0xf]
    %v1455 = vld [vmem:[%s0 + $0x18] sm:$0xe]
    %v1456 = vld [vmem:[%s0 + $0x1c] sm:$0xf]
    %v1457 = vld [vmem:[%s0 + $0x24] sm:$0xe]
    %v1458 = vld [vmem:[%s0 + $0x28] sm:$0xf]
    %v1459 = vld [vmem:[%s0 + $0x30] sm:$0xe]
    %v1460 = vld [vmem:[%s0 + $0x34] sm:$0xf]
    %v1461 = vld [vmem:[%s0 + $0x3c] sm:$0xe]
    %v1462 = vld [vmem:[%s0 + $0x40] sm:$0xf]
    %v1463 = vld [vmem:[%s0 + $0x48] sm:$0xe]
    %v1464 = vld [vmem:[%s0 + $0x4c] sm:$0xf]
    %v1465 = vld [vmem:[%s0 + $0x54] sm:$0xe]
    %v1466 = vld [vmem:[%s0 + $0x58] sm:$0xf]
    %v1484 = vunpack.c.l.s4 1983009808
    %v1485 = vunpack.c.0.s8 %v1484
    %v1486 = vlaneseq
    %v1487 = vshrl.u32 %v1486, 7
    %v1488 = vsub.s32 %v1485, %v1487
    %v1489 = vrot.slane %v1451, %v1488
    %v1490 = vcombine.high %v1489, %v1489
    %v1492 = vunpack.c.l.s4 1983009808
    %v1493 = vunpack.c.0.s8 %v1492
    %v1494 = vlaneseq
    %v1495 = vshrl.u32 %v1494, 7
    %v1496 = vsub.s32 %v1493, %v1495
    %v1497 = vrot.slane %v1452, %v1496
    %v1498 = vcombine.high %v1497, %v1497
    %v1500 = vunpack.c.l.s4 1983009808
    %v1501 = vunpack.c.0.s8 %v1500
    %v1502 = vlaneseq
    %v1503 = vshrl.u32 %v1502, 7
    %v1504 = vsub.s32 %v1501, %v1503
    %v1505 = vrot.slane %v1453, %v1504
    %v1506 = vcombine.high %v1505, %v1505
    %v1508 = vunpack.c.l.s4 1983009808
    %v1509 = vunpack.c.0.s8 %v1508
    %v1510 = vlaneseq
    %v1511 = vshrl.u32 %v1510, 7
    %v1512 = vsub.s32 %v1509, %v1511
    %v1513 = vrot.slane %v1454, %v1512
    %v1514 = vcombine.high %v1513, %v1513
    %v1516 = vunpack.c.l.s4 1983009808
    %v1517 = vunpack.c.0.s8 %v1516
    %v1518 = vlaneseq
    %v1519 = vshrl.u32 %v1518, 7
    %v1520 = vsub.s32 %v1517, %v1519
    %v1521 = vrot.slane %v1455, %v1520
    %v1522 = vcombine.high %v1521, %v1521
    %v1524 = vunpack.c.l.s4 1983009808
    %v1525 = vunpack.c.0.s8 %v1524
    %v1526 = vlaneseq
    %v1527 = vshrl.u32 %v1526, 7
    %v1528 = vsub.s32 %v1525, %v1527
    %v1529 = vrot.slane %v1456, %v1528
    %v1530 = vcombine.high %v1529, %v1529
    %v1532 = vunpack.c.l.s4 1983009808
    %v1533 = vunpack.c.0.s8 %v1532
    %v1534 = vlaneseq
    %v1535 = vshrl.u32 %v1534, 7
    %v1536 = vsub.s32 %v1533, %v1535
    %v1537 = vrot.slane %v1457, %v1536
    %v1538 = vcombine.high %v1537, %v1537
    %v1540 = vunpack.c.l.s4 1983009808
    %v1541 = vunpack.c.0.s8 %v1540
    %v1542 = vlaneseq
    %v1543 = vshrl.u32 %v1542, 7
    %v1544 = vsub.s32 %v1541, %v1543
    %v1545 = vrot.slane %v1458, %v1544
    %v1546 = vcombine.high %v1545, %v1545
    %v1548 = vunpack.c.l.s4 1983009808
    %v1549 = vunpack.c.0.s8 %v1548
    %v1550 = vlaneseq
    %v1551 = vshrl.u32 %v1550, 7
    %v1552 = vsub.s32 %v1549, %v1551
    %v1553 = vrot.slane %v1459, %v1552
    %v1554 = vcombine.high %v1553, %v1553
    %v1556 = vunpack.c.l.s4 1983009808
    %v1557 = vunpack.c.0.s8 %v1556
    %v1558 = vlaneseq
    %v1559 = vshrl.u32 %v1558, 7
    %v1560 = vsub.s32 %v1557, %v1559
    %v1561 = vrot.slane %v1460, %v1560
    %v1562 = vcombine.high %v1561, %v1561
    %v1564 = vunpack.c.l.s4 1983009808
    %v1565 = vunpack.c.0.s8 %v1564
    %v1566 = vlaneseq
    %v1567 = vshrl.u32 %v1566, 7
    %v1568 = vsub.s32 %v1565, %v1567
    %v1569 = vrot.slane %v1461, %v1568
    %v1570 = vcombine.high %v1569, %v1569
    %v1572 = vunpack.c.l.s4 1983009808
    %v1573 = vunpack.c.0.s8 %v1572
    %v1574 = vlaneseq
    %v1575 = vshrl.u32 %v1574, 7
    %v1576 = vsub.s32 %v1573, %v1575
    %v1577 = vrot.slane %v1462, %v1576
    %v1578 = vcombine.high %v1577, %v1577
    %v1580 = vunpack.c.l.s4 1983009808
    %v1581 = vunpack.c.0.s8 %v1580
    %v1582 = vlaneseq
    %v1583 = vshrl.u32 %v1582, 7
    %v1584 = vsub.s32 %v1581, %v1583
    %v1585 = vrot.slane %v1463, %v1584
    %v1586 = vcombine.high %v1585, %v1585
    %v1588 = vunpack.c.l.s4 1983009808
    %v1589 = vunpack.c.0.s8 %v1588
    %v1590 = vlaneseq
    %v1591 = vshrl.u32 %v1590, 7
    %v1592 = vsub.s32 %v1589, %v1591
    %v1593 = vrot.slane %v1464, %v1592
    %v1594 = vcombine.high %v1593, %v1593
    %v1596 = vunpack.c.l.s4 1983009808
    %v1597 = vunpack.c.0.s8 %v1596
    %v1598 = vlaneseq
    %v1599 = vshrl.u32 %v1598, 7
    %v1600 = vsub.s32 %v1597, %v1599
    %v1601 = vrot.slane %v1465, %v1600
    %v1602 = vcombine.high %v1601, %v1601
    %v1604 = vunpack.c.l.s4 1983009808
    %v1605 = vunpack.c.0.s8 %v1604
    %v1606 = vlaneseq
    %v1607 = vshrl.u32 %v1606, 7
    %v1608 = vsub.s32 %v1605, %v1607
    %v1609 = vrot.slane %v1466, %v1608
    %v1610 = vcombine.high %v1609, %v1609
    %vm1611 = vsmask.f32 256
    %vm1612 = vsmask.f32 2312
    %vm1613 = vmor %vm1611, %vm1612
    %vm1614 = vsmask.f32 4368
    %vm1615 = vmor %vm1613, %vm1614
    %vm1616 = vsmask.f32 6424
    %vm1617 = vmor %vm1615, %vm1616
    %v1619 = vshrl.u32 %v1489, 16
    %v1621 = vrot.slane %v1619, 7
    %v1622 = vrot.slane %v1621, 2
    %v1624 = vshrl.u32 %v1490, 16
    %v1626 = vrot.slane %v1624, 7
    %v1627 = vshll.u32 %v1490, 16
    %v1629 = vor.u32 %v1626, %v1627
    %v1630 = vsel %vm1617, %v1622, %v1629
    %v1631 = vrot.slane %v1626, 2
    %v1633 = vshrl.u32 %v1497, 16
    %v1635 = vrot.slane %v1633, 7
    %v1636 = vshll.u32 %v1497, 16
    %v1638 = vor.u32 %v1635, %v1636
    %v1639 = vsel %vm1617, %v1631, %v1638
    %v1640 = vrot.slane %v1635, 2
    %v1642 = vshrl.u32 %v1498, 16
    %v1644 = vrot.slane %v1642, 7
    %v1645 = vshll.u32 %v1498, 16
    %v1647 = vor.u32 %v1644, %v1645
    %v1648 = vsel %vm1617, %v1640, %v1647
    %v1650 = vshrl.u32 %v1505, 16
    %v1652 = vrot.slane %v1650, 7
    %v1653 = vrot.slane %v1652, 2
    %v1655 = vshrl.u32 %v1506, 16
    %v1657 = vrot.slane %v1655, 7
    %v1658 = vshll.u32 %v1506, 16
    %v1660 = vor.u32 %v1657, %v1658
    %v1661 = vsel %vm1617, %v1653, %v1660
    %v1662 = vrot.slane %v1657, 2
    %v1664 = vshrl.u32 %v1513, 16
    %v1666 = vrot.slane %v1664, 7
    %v1667 = vshll.u32 %v1513, 16
    %v1669 = vor.u32 %v1666, %v1667
    %v1670 = vsel %vm1617, %v1662, %v1669
    %v1671 = vrot.slane %v1666, 2
    %v1673 = vshrl.u32 %v1514, 16
    %v1675 = vrot.slane %v1673, 7
    %v1676 = vshll.u32 %v1514, 16
    %v1678 = vor.u32 %v1675, %v1676
    %v1679 = vsel %vm1617, %v1671, %v1678
    %v1681 = vshrl.u32 %v1521, 16
    %v1683 = vrot.slane %v1681, 7
    %v1684 = vrot.slane %v1683, 2
    %v1686 = vshrl.u32 %v1522, 16
    %v1688 = vrot.slane %v1686, 7
    %v1689 = vshll.u32 %v1522, 16
    %v1691 = vor.u32 %v1688, %v1689
    %v1692 = vsel %vm1617, %v1684, %v1691
    %v1693 = vrot.slane %v1688, 2
    %v1695 = vshrl.u32 %v1529, 16
    %v1697 = vrot.slane %v1695, 7
    %v1698 = vshll.u32 %v1529, 16
    %v1700 = vor.u32 %v1697, %v1698
    %v1701 = vsel %vm1617, %v1693, %v1700
    %v1702 = vrot.slane %v1697, 2
    %v1704 = vshrl.u32 %v1530, 16
    %v1706 = vrot.slane %v1704, 7
    %v1707 = vshll.u32 %v1530, 16
    %v1709 = vor.u32 %v1706, %v1707
    %v1710 = vsel %vm1617, %v1702, %v1709
    %v1712 = vshrl.u32 %v1537, 16
    %v1714 = vrot.slane %v1712, 7
    %v1715 = vrot.slane %v1714, 2
    %v1717 = vshrl.u32 %v1538, 16
    %v1719 = vrot.slane %v1717, 7
    %v1720 = vshll.u32 %v1538, 16
    %v1722 = vor.u32 %v1719, %v1720
    %v1723 = vsel %vm1617, %v1715, %v1722
    %v1724 = vrot.slane %v1719, 2
    %v1726 = vshrl.u32 %v1545, 16
    %v1728 = vrot.slane %v1726, 7
    %v1729 = vshll.u32 %v1545, 16
    %v1731 = vor.u32 %v1728, %v1729
    %v1732 = vsel %vm1617, %v1724, %v1731
    %v1733 = vrot.slane %v1728, 2
    %v1735 = vshrl.u32 %v1546, 16
    %v1737 = vrot.slane %v1735, 7
    %v1738 = vshll.u32 %v1546, 16
    %v1740 = vor.u32 %v1737, %v1738
    %v1741 = vsel %vm1617, %v1733, %v1740
    %v1743 = vshrl.u32 %v1553, 16
    %v1745 = vrot.slane %v1743, 7
    %v1746 = vrot.slane %v1745, 2
    %v1748 = vshrl.u32 %v1554, 16
    %v1750 = vrot.slane %v1748, 7
    %v1751 = vshll.u32 %v1554, 16
    %v1753 = vor.u32 %v1750, %v1751
    %v1754 = vsel %vm1617, %v1746, %v1753
    %v1755 = vrot.slane %v1750, 2
    %v1757 = vshrl.u32 %v1561, 16
    %v1759 = vrot.slane %v1757, 7
    %v1760 = vshll.u32 %v1561, 16
    %v1762 = vor.u32 %v1759, %v1760
    %v1763 = vsel %vm1617, %v1755, %v1762
    %v1764 = vrot.slane %v1759, 2
    %v1766 = vshrl.u32 %v1562, 16
    %v1768 = vrot.slane %v1766, 7
    %v1769 = vshll.u32 %v1562, 16
    %v1771 = vor.u32 %v1768, %v1769
    %v1772 = vsel %vm1617, %v1764, %v1771
    %v1774 = vshrl.u32 %v1569, 16
    %v1776 = vrot.slane %v1774, 7
    %v1777 = vrot.slane %v1776, 2
    %v1779 = vshrl.u32 %v1570, 16
    %v1781 = vrot.slane %v1779, 7
    %v1782 = vshll.u32 %v1570, 16
    %v1784 = vor.u32 %v1781, %v1782
    %v1785 = vsel %vm1617, %v1777, %v1784
    %v1786 = vrot.slane %v1781, 2
    %v1788 = vshrl.u32 %v1577, 16
    %v1790 = vrot.slane %v1788, 7
    %v1791 = vshll.u32 %v1577, 16
    %v1793 = vor.u32 %v1790, %v1791
    %v1794 = vsel %vm1617, %v1786, %v1793
    %v1795 = vrot.slane %v1790, 2
    %v1797 = vshrl.u32 %v1578, 16
    %v1799 = vrot.slane %v1797, 7
    %v1800 = vshll.u32 %v1578, 16
    %v1802 = vor.u32 %v1799, %v1800
    %v1803 = vsel %vm1617, %v1795, %v1802
    %v1805 = vshrl.u32 %v1585, 16
    %v1807 = vrot.slane %v1805, 7
    %v1808 = vrot.slane %v1807, 2
    %v1810 = vshrl.u32 %v1586, 16
    %v1812 = vrot.slane %v1810, 7
    %v1813 = vshll.u32 %v1586, 16
    %v1815 = vor.u32 %v1812, %v1813
    %v1816 = vsel %vm1617, %v1808, %v1815
    %v1817 = vrot.slane %v1812, 2
    %v1819 = vshrl.u32 %v1593, 16
    %v1821 = vrot.slane %v1819, 7
    %v1822 = vshll.u32 %v1593, 16
    %v1824 = vor.u32 %v1821, %v1822
    %v1825 = vsel %vm1617, %v1817, %v1824
    %v1826 = vrot.slane %v1821, 2
    %v1828 = vshrl.u32 %v1594, 16
    %v1830 = vrot.slane %v1828, 7
    %v1831 = vshll.u32 %v1594, 16
    %v1833 = vor.u32 %v1830, %v1831
    %v1834 = vsel %vm1617, %v1826, %v1833
    %v1836 = vshrl.u32 %v1601, 16
    %v1838 = vrot.slane %v1836, 7
    %v1839 = vrot.slane %v1838, 2
    %v1841 = vshrl.u32 %v1602, 16
    %v1843 = vrot.slane %v1841, 7
    %v1844 = vshll.u32 %v1602, 16
    %v1846 = vor.u32 %v1843, %v1844
    %v1847 = vsel %vm1617, %v1839, %v1846
    %v1848 = vrot.slane %v1843, 2
    %v1850 = vshrl.u32 %v1609, 16
    %v1852 = vrot.slane %v1850, 7
    %v1853 = vshll.u32 %v1609, 16
    %v1855 = vor.u32 %v1852, %v1853
    %v1856 = vsel %vm1617, %v1848, %v1855
    %v1857 = vrot.slane %v1852, 2
    %v1859 = vshrl.u32 %v1610, 16
    %v1861 = vrot.slane %v1859, 7
    %v1862 = vshll.u32 %v1610, 16
    %v1864 = vor.u32 %v1861, %v1862
    %v1865 = vsel %vm1617, %v1857, %v1864
    %s1866 = scalar_lea.vmem %s1, 48
    %v1867 = vld [vmem:[%s1866] sm:$0xf]
    %v1868 = vld [vmem:[%s1866 + $0x4] sm:$0xf]
    %v1869 = vld [vmem:[%s1866 + $0x8] sm:$0xf]
    %v1870 = vld [vmem:[%s1866 + $0xc] sm:$0xf]
    %v1871 = vcombine.low %v1630, %v1639
    %v1872 = vcombine.low %v1648, %v1661
    %v1874 = vunpack.c.l.s4 1983009808
    %v1875 = vunpack.c.0.s8 %v1874
    %v1876 = vlaneseq
    %v1877 = vshrl.u32 %v1876, 7
    %v1878 = vsub.s32 %v1875, %v1877
    %v1879 = vrot.slane %v1871, %v1878
    %v1881 = vunpack.c.l.s4 1983009808
    %v1882 = vunpack.c.0.s8 %v1881
    %v1883 = vlaneseq
    %v1884 = vshrl.u32 %v1883, 7
    %v1885 = vsub.s32 %v1882, %v1884
    %v1886 = vrot.slane %v1872, %v1885
    %v1887 = vcombine.low %v1879, %v1886
    %v1888 = vcombine.low %v1670, %v1679
    %v1889 = vcombine.low %v1692, %v1701
    %v1891 = vunpack.c.l.s4 1983009808
    %v1892 = vunpack.c.0.s8 %v1891
    %v1893 = vlaneseq
    %v1894 = vshrl.u32 %v1893, 7
    %v1895 = vsub.s32 %v1892, %v1894
    %v1896 = vrot.slane %v1888, %v1895
    %v1898 = vunpack.c.l.s4 1983009808
    %v1899 = vunpack.c.0.s8 %v1898
    %v1900 = vlaneseq
    %v1901 = vshrl.u32 %v1900, 7
    %v1902 = vsub.s32 %v1899, %v1901
    %v1903 = vrot.slane %v1889, %v1902
    %v1904 = vcombine.low %v1896, %v1903
    %v1905 = vcombine.low %v1710, %v1723
    %v1906 = vcombine.low %v1732, %v1741
    %v1908 = vunpack.c.l.s4 1983009808
    %v1909 = vunpack.c.0.s8 %v1908
    %v1910 = vlaneseq
    %v1911 = vshrl.u32 %v1910, 7
    %v1912 = vsub.s32 %v1909, %v1911
    %v1913 = vrot.slane %v1905, %v1912
    %v1915 = vunpack.c.l.s4 1983009808
    %v1916 = vunpack.c.0.s8 %v1915
    %v1917 = vlaneseq
    %v1918 = vshrl.u32 %v1917, 7
    %v1919 = vsub.s32 %v1916, %v1918
    %v1920 = vrot.slane %v1906, %v1919
    %v1921 = vcombine.low %v1913, %v1920
    %v1922 = vcombine.low %v1754, %v1763
    %v1923 = vcombine.low %v1772, %v1785
    %v1925 = vunpack.c.l.s4 1983009808
    %v1926 = vunpack.c.0.s8 %v1925
    %v1927 = vlaneseq
    %v1928 = vshrl.u32 %v1927, 7
    %v1929 = vsub.s32 %v1926, %v1928
    %v1930 = vrot.slane %v1922, %v1929
    %v1932 = vunpack.c.l.s4 1983009808
    %v1933 = vunpack.c.0.s8 %v1932
    %v1934 = vlaneseq
    %v1935 = vshrl.u32 %v1934, 7
    %v1936 = vsub.s32 %v1933, %v1935
    %v1937 = vrot.slane %v1923, %v1936
    %v1938 = vcombine.low %v1930, %v1937
    %v1939 = vcombine.low %v1794, %v1803
    %v1940 = vcombine.low %v1816, %v1825
    %v1942 = vunpack.c.l.s4 1983009808
    %v1943 = vunpack.c.0.s8 %v1942
    %v1944 = vlaneseq
    %v1945 = vshrl.u32 %v1944, 7
    %v1946 = vsub.s32 %v1943, %v1945
    %v1947 = vrot.slane %v1939, %v1946
    %v1949 = vunpack.c.l.s4 1983009808
    %v1950 = vunpack.c.0.s8 %v1949
    %v1951 = vlaneseq
    %v1952 = vshrl.u32 %v1951, 7
    %v1953 = vsub.s32 %v1950, %v1952
    %v1954 = vrot.slane %v1940, %v1953
    %v1955 = vcombine.low %v1947, %v1954
    %v1956 = vcombine.low %v1834, %v1847
    %v1957 = vcombine.low %v1856, %v1865
    %v1959 = vunpack.c.l.s4 1983009808
    %v1960 = vunpack.c.0.s8 %v1959
    %v1961 = vlaneseq
    %v1962 = vshrl.u32 %v1961, 7
    %v1963 = vsub.s32 %v1960, %v1962
    %v1964 = vrot.slane %v1956, %v1963
    %v1966 = vunpack.c.l.s4 1983009808
    %v1967 = vunpack.c.0.s8 %v1966
    %v1968 = vlaneseq
    %v1969 = vshrl.u32 %v1968, 7
    %v1970 = vsub.s32 %v1967, %v1969
    %v1971 = vrot.slane %v1957, %v1970
    %v1972 = vcombine.low %v1964, %v1971
    %v1977 = vunpack.c.l.b16 %v1867
    %v1978 = vunpack.c.l.b16 %v1868
    %v1979 = vunpack.c.l.b16 %v1869
    %v1980 = vunpack.c.l.b16 %v1870
    %v1981 = vpack.c.b16 %v1978, %v1977
    %v1982 = vpack.c.b16 %v1980, %v1979
    %v1986 = vsel %vm661, %v1887, 0
    %v1989 = vsel %vm661, %v1904, 0
    %v1992 = vsel %vm661, %v1921, 0
    %v1995 = vsel %vm661, %v1938, 0
    %v1998 = vsel %vm661, %v1955, 0
    %v2001 = vsel %vm661, %v1972, 0
    %2003 = vmatprep.subr.bf16.mxu0 0
    %2004 = vmatpush1.bf16.msra.mxu0 %v1981
    %2005 = vmatprep.subr.bf16.mxu0 0
    %2006 = vmatpush1.bf16.msra.mxu0 %v1982
    %2007 = vmatprep.subr.bf16.mxu0 0
    %2008 = vmatpush1.bf16.msra.mxu0 0
    %2009 = vmatprep.subr.bf16.mxu0 0
    %2010 = vmatpush1.bf16.msra.mxu0 0
    %2011 = vmatprep.subr.bf16.mxu0 0
    %2012 = vmatpush1.bf16.msra.mxu0 0
    %2013 = vmatprep.subr.bf16.mxu0 0
    %2014 = vmatpush1.bf16.msra.mxu0 0
    %2015 = vmatprep.subr.bf16.mxu0 0
    %2016 = vmatpush1.bf16.msra.mxu0 0
    %2017 = vmatprep.subr.bf16.mxu0 0
    %2018 = vmatpush1.bf16.msra.mxu0 0
    %2019 = vmatprep.subr.bf16.mxu0 0
    %2020 = vmatpush1.bf16.msra.mxu0 0
    %2021 = vmatprep.subr.bf16.mxu0 0
    %2022 = vmatpush1.bf16.msra.mxu0 0
    %2023 = vmatprep.subr.bf16.mxu0 0
    %2024 = vmatpush1.bf16.msra.mxu0 0
    %2025 = vmatprep.subr.bf16.mxu0 0
    %2026 = vmatpush1.bf16.msra.mxu0 0
    %2027 = vmatprep.subr.bf16.mxu0 0
    %2028 = vmatpush1.bf16.msra.mxu0 0
    %2029 = vmatprep.subr.bf16.mxu0 0
    %2030 = vmatpush1.bf16.msra.mxu0 0
    %2031 = vmatprep.subr.bf16.mxu0 0
    %2032 = vmatpush1.bf16.msra.mxu0 0
    %2033 = vmatprep.subr.bf16.mxu0 0
    %2034 = vmatpush1.bf16.msra.mxu0 0
    %2035 = vmatprep.mubr.bf16.mxu0 0
    %2036 = vmatmul.mubr.bf16.gmra.mrb[0].mxu0 %v1986
    %v2037 = vpop.f32.mrb[0].mxu0
    %v2038 = vadd.f32 0.0, %v2037
    %v2039 = vpop.f32.mrb[0].mxu0
    %v2040 = vpop.f32.mrb[0].mxu0
    %v2041 = vadd.f32 0.0, %v2040
    %v2042 = vpop.f32.mrb[0].mxu0
    %2043 = vmatprep.mubr.bf16.mxu0 0
    %2044 = vmatmul.mubr.bf16.gmra.mrb[0].mxu0 %v1989
    %v2045 = vpop.f32.mrb[0].mxu0
    %v2046 = vadd.f32 0.0, %v2045
    %v2047 = vpop.f32.mrb[0].mxu0
    %v2048 = vpop.f32.mrb[0].mxu0
    %v2049 = vadd.f32 0.0, %v2048
    %v2050 = vpop.f32.mrb[0].mxu0
    %2051 = vmatprep.mubr.bf16.mxu0 0
    %2052 = vmatmul.mubr.bf16.gmra.mrb[0].mxu0 %v1992
    %v2053 = vpop.f32.mrb[0].mxu0
    %v2054 = vadd.f32 0.0, %v2053
    %v2055 = vpop.f32.mrb[0].mxu0
    %v2056 = vpop.f32.mrb[0].mxu0
    %v2057 = vadd.f32 0.0, %v2056
    %v2058 = vpop.f32.mrb[0].mxu0
    %2059 = vmatprep.mubr.bf16.mxu0 0
    %2060 = vmatmul.mubr.bf16.gmra.mrb[0].mxu0 %v1995
    %v2061 = vpop.f32.mrb[0].mxu0
    %v2062 = vadd.f32 0.0, %v2061
    %v2063 = vpop.f32.mrb[0].mxu0
    %v2064 = vpop.f32.mrb[0].mxu0
    %v2065 = vadd.f32 0.0, %v2064
    %v2066 = vpop.f32.mrb[0].mxu0
    %2067 = vmatprep.mubr.bf16.mxu0 0
    %2068 = vmatmul.mubr.bf16.gmra.mrb[0].mxu0 %v1998
    %v2069 = vpop.f32.mrb[0].mxu0
    %v2070 = vadd.f32 0.0, %v2069
    %v2071 = vpop.f32.mrb[0].mxu0
    %v2072 = vpop.f32.mrb[0].mxu0
    %v2073 = vadd.f32 0.0, %v2072
    %v2074 = vpop.f32.mrb[0].mxu0
    %2075 = vmatprep.mubr.bf16.mxu0 0
    %2076 = vmatmul.mubr.bf16.gmra.mrb[0].mxu0 %v2001
    %v2077 = vpop.f32.mrb[0].mxu0
    %v2078 = vadd.f32 0.0, %v2077
    %v2079 = vpop.f32.mrb[0].mxu0
    %v2080 = vpop.f32.mrb[0].mxu0
    %v2081 = vadd.f32 0.0, %v2080
    %v2082 = vpop.f32.mrb[0].mxu0
    %2083 = vdwg.mxu0
    %v2084 = vadd.f32 %v1439, %v2038
    %v2085 = vadd.f32 %v1440, %v2041
    %v2086 = vadd.f32 %v1441, %v2046
    %v2087 = vadd.f32 %v1442, %v2049
    %v2088 = vadd.f32 %v1443, %v2054
    %v2089 = vadd.f32 %v1444, %v2057
    %v2090 = vadd.f32 %v1445, %v2062
    %v2091 = vadd.f32 %v1446, %v2065
    %v2092 = vadd.f32 %v1447, %v2070
    %v2093 = vadd.f32 %v1448, %v2073
    %v2094 = vadd.f32 %v1449, %v2078
    %v2095 = vadd.f32 %v1450, %v2081
    %v2096 = vld [vmem:[%s0] sm:$0xc]
    %v2097 = vld [vmem:[%s0 + $0x4] sm:$0xf]
    %v2098 = vld [vmem:[%s0 + $0xc] sm:$0xc]
    %v2099 = vld [vmem:[%s0 + $0x10] sm:$0xf]
    %v2100 = vld [vmem:[%s0 + $0x18] sm:$0xc]
    %v2101 = vld [vmem:[%s0 + $0x1c] sm:$0xf]
    %v2102 = vld [vmem:[%s0 + $0x24] sm:$0xc]
    %v2103 = vld [vmem:[%s0 + $0x28] sm:$0xf]
    %v2104 = vld [vmem:[%s0 + $0x30] sm:$0xc]
    %v2105 = vld [vmem:[%s0 + $0x34] sm:$0xf]
    %v2106 = vld [vmem:[%s0 + $0x3c] sm:$0xc]
    %v2107 = vld [vmem:[%s0 + $0x40] sm:$0xf]
    %v2108 = vld [vmem:[%s0 + $0x48] sm:$0xc]
    %v2109 = vld [vmem:[%s0 + $0x4c] sm:$0xf]
    %v2110 = vld [vmem:[%s0 + $0x54] sm:$0xc]
    %v2111 = vld [vmem:[%s0 + $0x58] sm:$0xf]
    %v2129 = vunpack.c.l.s4 1983009808
    %v2130 = vunpack.c.0.s8 %v2129
    %v2131 = vlaneseq
    %v2132 = vshrl.u32 %v2131, 7
    %v2133 = vsub.s32 %v2130, %v2132
    %v2134 = vrot.slane %v2096, %v2133
    %v2135 = vcombine.high %v2134, %v2134
    %v2137 = vunpack.c.l.s4 1983009808
    %v2138 = vunpack.c.0.s8 %v2137
    %v2139 = vlaneseq
    %v2140 = vshrl.u32 %v2139, 7
    %v2141 = vsub.s32 %v2138, %v2140
    %v2142 = vrot.slane %v2097, %v2141
    %v2143 = vcombine.high %v2142, %v2142
    %v2145 = vunpack.c.l.s4 1983009808
    %v2146 = vunpack.c.0.s8 %v2145
    %v2147 = vlaneseq
    %v2148 = vshrl.u32 %v2147, 7
    %v2149 = vsub.s32 %v2146, %v2148
    %v2150 = vrot.slane %v2098, %v2149
    %v2151 = vcombine.high %v2150, %v2150
    %v2153 = vunpack.c.l.s4 1983009808
    %v2154 = vunpack.c.0.s8 %v2153
    %v2155 = vlaneseq
    %v2156 = vshrl.u32 %v2155, 7
    %v2157 = vsub.s32 %v2154, %v2156
    %v2158 = vrot.slane %v2099, %v2157
    %v2159 = vcombine.high %v2158, %v2158
    %v2161 = vunpack.c.l.s4 1983009808
    %v2162 = vunpack.c.0.s8 %v2161
    %v2163 = vlaneseq
    %v2164 = vshrl.u32 %v2163, 7
    %v2165 = vsub.s32 %v2162, %v2164
    %v2166 = vrot.slane %v2100, %v2165
    %v2167 = vcombine.high %v2166, %v2166
    %v2169 = vunpack.c.l.s4 1983009808
    %v2170 = vunpack.c.0.s8 %v2169
    %v2171 = vlaneseq
    %v2172 = vshrl.u32 %v2171, 7
    %v2173 = vsub.s32 %v2170, %v2172
    %v2174 = vrot.slane %v2101, %v2173
    %v2175 = vcombine.high %v2174, %v2174
    %v2177 = vunpack.c.l.s4 1983009808
    %v2178 = vunpack.c.0.s8 %v2177
    %v2179 = vlaneseq
    %v2180 = vshrl.u32 %v2179, 7
    %v2181 = vsub.s32 %v2178, %v2180
    %v2182 = vrot.slane %v2102, %v2181
    %v2183 = vcombine.high %v2182, %v2182
    %v2185 = vunpack.c.l.s4 1983009808
    %v2186 = vunpack.c.0.s8 %v2185
    %v2187 = vlaneseq
    %v2188 = vshrl.u32 %v2187, 7
    %v2189 = vsub.s32 %v2186, %v2188
    %v2190 = vrot.slane %v2103, %v2189
    %v2191 = vcombine.high %v2190, %v2190
    %v2193 = vunpack.c.l.s4 1983009808
    %v2194 = vunpack.c.0.s8 %v2193
    %v2195 = vlaneseq
    %v2196 = vshrl.u32 %v2195, 7
    %v2197 = vsub.s32 %v2194, %v2196
    %v2198 = vrot.slane %v2104, %v2197
    %v2199 = vcombine.high %v2198, %v2198
    %v2201 = vunpack.c.l.s4 1983009808
    %v2202 = vunpack.c.0.s8 %v2201
    %v2203 = vlaneseq
    %v2204 = vshrl.u32 %v2203, 7
    %v2205 = vsub.s32 %v2202, %v2204
    %v2206 = vrot.slane %v2105, %v2205
    %v2207 = vcombine.high %v2206, %v2206
    %v2209 = vunpack.c.l.s4 1983009808
    %v2210 = vunpack.c.0.s8 %v2209
    %v2211 = vlaneseq
    %v2212 = vshrl.u32 %v2211, 7
    %v2213 = vsub.s32 %v2210, %v2212
    %v2214 = vrot.slane %v2106, %v2213
    %v2215 = vcombine.high %v2214, %v2214
    %v2217 = vunpack.c.l.s4 1983009808
    %v2218 = vunpack.c.0.s8 %v2217
    %v2219 = vlaneseq
    %v2220 = vshrl.u32 %v2219, 7
    %v2221 = vsub.s32 %v2218, %v2220
    %v2222 = vrot.slane %v2107, %v2221
    %v2223 = vcombine.high %v2222, %v2222
    %v2225 = vunpack.c.l.s4 1983009808
    %v2226 = vunpack.c.0.s8 %v2225
    %v2227 = vlaneseq
    %v2228 = vshrl.u32 %v2227, 7
    %v2229 = vsub.s32 %v2226, %v2228
    %v2230 = vrot.slane %v2108, %v2229
    %v2231 = vcombine.high %v2230, %v2230
    %v2233 = vunpack.c.l.s4 1983009808
    %v2234 = vunpack.c.0.s8 %v2233
    %v2235 = vlaneseq
    %v2236 = vshrl.u32 %v2235, 7
    %v2237 = vsub.s32 %v2234, %v2236
    %v2238 = vrot.slane %v2109, %v2237
    %v2239 = vcombine.high %v2238, %v2238
    %v2241 = vunpack.c.l.s4 1983009808
    %v2242 = vunpack.c.0.s8 %v2241
    %v2243 = vlaneseq
    %v2244 = vshrl.u32 %v2243, 7
    %v2245 = vsub.s32 %v2242, %v2244
    %v2246 = vrot.slane %v2110, %v2245
    %v2247 = vcombine.high %v2246, %v2246
    %v2249 = vunpack.c.l.s4 1983009808
    %v2250 = vunpack.c.0.s8 %v2249
    %v2251 = vlaneseq
    %v2252 = vshrl.u32 %v2251, 7
    %v2253 = vsub.s32 %v2250, %v2252
    %v2254 = vrot.slane %v2111, %v2253
    %v2255 = vcombine.high %v2254, %v2254
    %s2256 = scalar_lea.vmem %s1, 64
    %v2257 = vld [vmem:[%s2256] sm:$0xf]
    %v2258 = vld [vmem:[%s2256 + $0x4] sm:$0xf]
    %v2259 = vld [vmem:[%s2256 + $0x8] sm:$0xf]
    %v2260 = vld [vmem:[%s2256 + $0xc] sm:$0xf]
    %v2261 = vcombine.low %v2135, %v2142
    %v2262 = vcombine.low %v2143, %v2151
    %v2264 = vunpack.c.l.s4 1983009808
    %v2265 = vunpack.c.0.s8 %v2264
    %v2266 = vlaneseq
    %v2267 = vshrl.u32 %v2266, 7
    %v2268 = vsub.s32 %v2265, %v2267
    %v2269 = vrot.slane %v2261, %v2268
    %v2271 = vunpack.c.l.s4 1983009808
    %v2272 = vunpack.c.0.s8 %v2271
    %v2273 = vlaneseq
    %v2274 = vshrl.u32 %v2273, 7
    %v2275 = vsub.s32 %v2272, %v2274
    %v2276 = vrot.slane %v2262, %v2275
    %v2277 = vcombine.low %v2269, %v2276
    %v2278 = vcombine.low %v2158, %v2159
    %v2279 = vcombine.low %v2167, %v2174
    %v2281 = vunpack.c.l.s4 1983009808
    %v2282 = vunpack.c.0.s8 %v2281
    %v2283 = vlaneseq
    %v2284 = vshrl.u32 %v2283, 7
    %v2285 = vsub.s32 %v2282, %v2284
    %v2286 = vrot.slane %v2278, %v2285
    %v2288 = vunpack.c.l.s4 1983009808
    %v2289 = vunpack.c.0.s8 %v2288
    %v2290 = vlaneseq
    %v2291 = vshrl.u32 %v2290, 7
    %v2292 = vsub.s32 %v2289, %v2291
    %v2293 = vrot.slane %v2279, %v2292
    %v2294 = vcombine.low %v2286, %v2293
    %v2295 = vcombine.low %v2175, %v2183
    %v2296 = vcombine.low %v2190, %v2191
    %v2298 = vunpack.c.l.s4 1983009808
    %v2299 = vunpack.c.0.s8 %v2298
    %v2300 = vlaneseq
    %v2301 = vshrl.u32 %v2300, 7
    %v2302 = vsub.s32 %v2299, %v2301
    %v2303 = vrot.slane %v2295, %v2302
    %v2305 = vunpack.c.l.s4 1983009808
    %v2306 = vunpack.c.0.s8 %v2305
    %v2307 = vlaneseq
    %v2308 = vshrl.u32 %v2307, 7
    %v2309 = vsub.s32 %v2306, %v2308
    %v2310 = vrot.slane %v2296, %v2309
    %v2311 = vcombine.low %v2303, %v2310
    %v2312 = vcombine.low %v2199, %v2206
    %v2313 = vcombine.low %v2207, %v2215
    %v2315 = vunpack.c.l.s4 1983009808
    %v2316 = vunpack.c.0.s8 %v2315
    %v2317 = vlaneseq
    %v2318 = vshrl.u32 %v2317, 7
    %v2319 = vsub.s32 %v2316, %v2318
    %v2320 = vrot.slane %v2312, %v2319
    %v2322 = vunpack.c.l.s4 1983009808
    %v2323 = vunpack.c.0.s8 %v2322
    %v2324 = vlaneseq
    %v2325 = vshrl.u32 %v2324, 7
    %v2326 = vsub.s32 %v2323, %v2325
    %v2327 = vrot.slane %v2313, %v2326
    %v2328 = vcombine.low %v2320, %v2327
    %v2329 = vcombine.low %v2222, %v2223
    %v2330 = vcombine.low %v2231, %v2238
    %v2332 = vunpack.c.l.s4 1983009808
    %v2333 = vunpack.c.0.s8 %v2332
    %v2334 = vlaneseq
    %v2335 = vshrl.u32 %v2334, 7
    %v2336 = vsub.s32 %v2333, %v2335
    %v2337 = vrot.slane %v2329, %v2336
    %v2339 = vunpack.c.l.s4 1983009808
    %v2340 = vunpack.c.0.s8 %v2339
    %v2341 = vlaneseq
    %v2342 = vshrl.u32 %v2341, 7
    %v2343 = vsub.s32 %v2340, %v2342
    %v2344 = vrot.slane %v2330, %v2343
    %v2345 = vcombine.low %v2337, %v2344
    %v2346 = vcombine.low %v2239, %v2247
    %v2347 = vcombine.low %v2254, %v2255
    %v2349 = vunpack.c.l.s4 1983009808
    %v2350 = vunpack.c.0.s8 %v2349
    %v2351 = vlaneseq
    %v2352 = vshrl.u32 %v2351, 7
    %v2353 = vsub.s32 %v2350, %v2352
    %v2354 = vrot.slane %v2346, %v2353
    %v2356 = vunpack.c.l.s4 1983009808
    %v2357 = vunpack.c.0.s8 %v2356
    %v2358 = vlaneseq
    %v2359 = vshrl.u32 %v2358, 7
    %v2360 = vsub.s32 %v2357, %v2359
    %v2361 = vrot.slane %v2347, %v2360
    %v2362 = vcombine.low %v2354, %v2361
    %v2367 = vunpack.c.l.b16 %v2257
    %v2368 = vunpack.c.l.b16 %v2258
    %v2369 = vunpack.c.l.b16 %v2259
    %v2370 = vunpack.c.l.b16 %v2260
    %v2371 = vpack.c.b16 %v2368, %v2367
    %v2372 = vpack.c.b16 %v2370, %v2369
    %v2376 = vsel %vm661, %v2277, 0
    %v2379 = vsel %vm661, %v2294, 0
    %v2382 = vsel %vm661, %v2311, 0
    %v2385 = vsel %vm661, %v2328, 0
    %v2388 = vsel %vm661, %v2345, 0
    %v2391 = vsel %vm661, %v2362, 0
    %2393 = vmatprep.subr.bf16.mxu0 0
    %2394 = vmatpush1.bf16.msra.mxu0 %v2371
    %2395 = vmatprep.subr.bf16.mxu0 0
    %2396 = vmatpush1.bf16.msra.mxu0 %v2372
    %2397 = vmatprep.subr.bf16.mxu0 0
    %2398 = vmatpush1.bf16.msra.mxu0 0
    %2399 = vmatprep.subr.bf16.mxu0 0
    %2400 = vmatpush1.bf16.msra.mxu0 0
    %2401 = vmatprep.subr.bf16.mxu0 0
    %2402 = vmatpush1.bf16.msra.mxu0 0
    %2403 = vmatprep.subr.bf16.mxu0 0
    %2404 = vmatpush1.bf16.msra.mxu0 0
    %2405 = vmatprep.subr.bf16.mxu0 0
    %2406 = vmatpush1.bf16.msra.mxu0 0
    %2407 = vmatprep.subr.bf16.mxu0 0
    %2408 = vmatpush1.bf16.msra.mxu0 0
    %2409 = vmatprep.subr.bf16.mxu0 0
    %2410 = vmatpush1.bf16.msra.mxu0 0
    %2411 = vmatprep.subr.bf16.mxu0 0
    %2412 = vmatpush1.bf16.msra.mxu0 0
    %2413 = vmatprep.subr.bf16.mxu0 0
    %2414 = vmatpush1.bf16.msra.mxu0 0
    %2415 = vmatprep.subr.bf16.mxu0 0
    %2416 = vmatpush1.bf16.msra.mxu0 0
    %2417 = vmatprep.subr.bf16.mxu0 0
    %2418 = vmatpush1.bf16.msra.mxu0 0
    %2419 = vmatprep.subr.bf16.mxu0 0
    %2420 = vmatpush1.bf16.msra.mxu0 0
    %2421 = vmatprep.subr.bf16.mxu0 0
    %2422 = vmatpush1.bf16.msra.mxu0 0
    %2423 = vmatprep.subr.bf16.mxu0 0
    %2424 = vmatpush1.bf16.msra.mxu0 0
    %2425 = vmatprep.mubr.bf16.mxu0 0
    %2426 = vmatmul.mubr.bf16.gmra.mrb[0].mxu0 %v2376
    %v2427 = vpop.f32.mrb[0].mxu0
    %v2428 = vadd.f32 0.0, %v2427
    %v2429 = vpop.f32.mrb[0].mxu0
    %v2430 = vpop.f32.mrb[0].mxu0
    %v2431 = vadd.f32 0.0, %v2430
    %v2432 = vpop.f32.mrb[0].mxu0
    %2433 = vmatprep.mubr.bf16.mxu0 0
    %2434 = vmatmul.mubr.bf16.gmra.mrb[0].mxu0 %v2379
    %v2435 = vpop.f32.mrb[0].mxu0
    %v2436 = vadd.f32 0.0, %v2435
    %v2437 = vpop.f32.mrb[0].mxu0
    %v2438 = vpop.f32.mrb[0].mxu0
    %v2439 = vadd.f32 0.0, %v2438
    %v2440 = vpop.f32.mrb[0].mxu0
    %2441 = vmatprep.mubr.bf16.mxu0 0
    %2442 = vmatmul.mubr.bf16.gmra.mrb[0].mxu0 %v2382
    %v2443 = vpop.f32.mrb[0].mxu0
    %v2444 = vadd.f32 0.0, %v2443
    %v2445 = vpop.f32.mrb[0].mxu0
    %v2446 = vpop.f32.mrb[0].mxu0
    %v2447 = vadd.f32 0.0, %v2446
    %v2448 = vpop.f32.mrb[0].mxu0
    %2449 = vmatprep.mubr.bf16.mxu0 0
    %2450 = vmatmul.mubr.bf16.gmra.mrb[0].mxu0 %v2385
    %v2451 = vpop.f32.mrb[0].mxu0
    %v2452 = vadd.f32 0.0, %v2451
    %v2453 = vpop.f32.mrb[0].mxu0
    %v2454 = vpop.f32.mrb[0].mxu0
    %v2455 = vadd.f32 0.0, %v2454
    %v2456 = vpop.f32.mrb[0].mxu0
    %2457 = vmatprep.mubr.bf16.mxu0 0
    %2458 = vmatmul.mubr.bf16.gmra.mrb[0].mxu0 %v2388
    %v2459 = vpop.f32.mrb[0].mxu0
    %v2460 = vadd.f32 0.0, %v2459
    %v2461 = vpop.f32.mrb[0].mxu0
    %v2462 = vpop.f32.mrb[0].mxu0
    %v2463 = vadd.f32 0.0, %v2462
    %v2464 = vpop.f32.mrb[0].mxu0
    %2465 = vmatprep.mubr.bf16.mxu0 0
    %2466 = vmatmul.mubr.bf16.gmra.mrb[0].mxu0 %v2391
    %v2467 = vpop.f32.mrb[0].mxu0
    %v2468 = vadd.f32 0.0, %v2467
    %v2469 = vpop.f32.mrb[0].mxu0
    %v2470 = vpop.f32.mrb[0].mxu0
    %v2471 = vadd.f32 0.0, %v2470
    %v2472 = vpop.f32.mrb[0].mxu0
    %2473 = vdwg.mxu0
    %v2474 = vadd.f32 %v2084, %v2428
    %v2475 = vadd.f32 %v2085, %v2431
    %v2476 = vadd.f32 %v2086, %v2436
    %v2477 = vadd.f32 %v2087, %v2439
    %v2478 = vadd.f32 %v2088, %v2444
    %v2479 = vadd.f32 %v2089, %v2447
    %v2480 = vadd.f32 %v2090, %v2452
    %v2481 = vadd.f32 %v2091, %v2455
    %v2482 = vadd.f32 %v2092, %v2460
    %v2483 = vadd.f32 %v2093, %v2463
    %v2484 = vadd.f32 %v2094, %v2468
    %v2485 = vadd.f32 %v2095, %v2471
    %v2498 = vcombine.high %v2474, %v2474
    %v2499 = vcombine.high %v2475, %v2475
    %v2500 = vcombine.high %v2476, %v2476
    %v2501 = vcombine.high %v2477, %v2477
    %v2502 = vcombine.high %v2478, %v2478
    %v2503 = vcombine.high %v2479, %v2479
    %v2504 = vcombine.high %v2480, %v2480
    %v2505 = vcombine.high %v2481, %v2481
    %v2506 = vcombine.high %v2482, %v2482
    %v2507 = vcombine.high %v2483, %v2483
    %v2508 = vcombine.high %v2484, %v2484
    %v2509 = vcombine.high %v2485, %v2485
    %v2514 = vcombine.low %v2474, %v2498
    %v2515 = vcombine.low %v2499, %v2476
    %v2516 = vcombine.low %v2477, %v2501
    %v2517 = vcombine.low %v2502, %v2479
    %v2518 = vcombine.low %v2480, %v2504
    %v2519 = vcombine.low %v2505, %v2482
    %v2520 = vcombine.low %v2483, %v2507
    %v2521 = vcombine.low %v2508, %v2485
    %v2530 = vpack.c.bf16 %v2475, %v2514
    %v2531 = vpack.c.bf16 %v2500, %v2515
    %v2532 = vpack.c.bf16 %v2478, %v2516
    %v2533 = vpack.c.bf16 %v2503, %v2517
    %v2534 = vpack.c.bf16 %v2481, %v2518
    %v2535 = vpack.c.bf16 %v2506, %v2519
    %v2536 = vpack.c.bf16 %v2484, %v2520
    %v2537 = vpack.c.bf16 %v2509, %v2521
    %v2539 = vpack.i.b16 %v26, %v26
    %v2541 = vlaneseq
    %v2542 = vshrl.u32 %v2541, 7
    %v2543 = vsub.s32 0, %v2542
    %v2544 = vrot.slane %v2539, %v2543
    %v2545 = vadd.bf16 %v2530, %v2544
    %v2546 = vadd.bf16 %v2531, %v2544
    %v2547 = vadd.bf16 %v2532, %v2544
    %v2548 = vadd.bf16 %v2533, %v2544
    %v2549 = vadd.bf16 %v2534, %v2544
    %v2550 = vadd.bf16 %v2535, %v2544
    %v2551 = vadd.bf16 %v2536, %v2544
    %v2552 = vadd.bf16 %v2537, %v2544
    %v2553 = vmax.bf16 %v2545, 0
    %v2554 = vmax.bf16 %v2546, 0
    %v2555 = vmax.bf16 %v2547, 0
    %v2556 = vmax.bf16 %v2548, 0
    %v2557 = vmax.bf16 %v2549, 0
    %v2558 = vmax.bf16 %v2550, 0
    %v2559 = vmax.bf16 %v2551, 0
    %v2560 = vmax.bf16 %v2552, 0
    %vm2561 = vcmask 1045504
    %v2564 = vsel %vm2561, %v2553, 4286644096
    %v2566 = vunpack.i.l.bf16 %v2564
    %v2567 = vunpack.i.h.bf16 %v2564
    %v2568 = vmax.f32 %v2566, %v2567
    %v2569 = vrot.slane %v2568, 4
    %v2570 = vmax.f32 %v2568, %v2569
    %v2571 = vrot.slane %v2570, 2
    %v2572 = vmax.f32 %v2570, %v2571
    %v2573 = vrot.slane %v2572, 1
    %v2574 = vmax.f32 %v2572, %v2573
    %v2575 = vpack.i.bf16 %v2574, %v2574
    %v2577 = vsel %vm2561, %v2554, 4286644096
    %v2579 = vunpack.i.l.bf16 %v2577
    %v2580 = vunpack.i.h.bf16 %v2577
    %v2581 = vmax.f32 %v2579, %v2580
    %v2582 = vrot.slane %v2581, 4
    %v2583 = vmax.f32 %v2581, %v2582
    %v2584 = vrot.slane %v2583, 2
    %v2585 = vmax.f32 %v2583, %v2584
    %v2586 = vrot.slane %v2585, 1
    %v2587 = vmax.f32 %v2585, %v2586
    %v2588 = vpack.i.bf16 %v2587, %v2587
    %v2590 = vsel %vm2561, %v2555, 4286644096
    %v2592 = vunpack.i.l.bf16 %v2590
    %v2593 = vunpack.i.h.bf16 %v2590
    %v2594 = vmax.f32 %v2592, %v2593
    %v2595 = vrot.slane %v2594, 4
    %v2596 = vmax.f32 %v2594, %v2595
    %v2597 = vrot.slane %v2596, 2
    %v2598 = vmax.f32 %v2596, %v2597
    %v2599 = vrot.slane %v2598, 1
    %v2600 = vmax.f32 %v2598, %v2599
    %v2601 = vpack.i.bf16 %v2600, %v2600
    %v2603 = vsel %vm2561, %v2556, 4286644096
    %v2605 = vunpack.i.l.bf16 %v2603
    %v2606 = vunpack.i.h.bf16 %v2603
    %v2607 = vmax.f32 %v2605, %v2606
    %v2608 = vrot.slane %v2607, 4
    %v2609 = vmax.f32 %v2607, %v2608
    %v2610 = vrot.slane %v2609, 2
    %v2611 = vmax.f32 %v2609, %v2610
    %v2612 = vrot.slane %v2611, 1
    %v2613 = vmax.f32 %v2611, %v2612
    %v2614 = vpack.i.bf16 %v2613, %v2613
    %v2616 = vsel %vm2561, %v2557, 4286644096
    %v2618 = vunpack.i.l.bf16 %v2616
    %v2619 = vunpack.i.h.bf16 %v2616
    %v2620 = vmax.f32 %v2618, %v2619
    %v2621 = vrot.slane %v2620, 4
    %v2622 = vmax.f32 %v2620, %v2621
    %v2623 = vrot.slane %v2622, 2
    %v2624 = vmax.f32 %v2622, %v2623
    %v2625 = vrot.slane %v2624, 1
    %v2626 = vmax.f32 %v2624, %v2625
    %v2627 = vpack.i.bf16 %v2626, %v2626
    %v2629 = vsel %vm2561, %v2558, 4286644096
    %v2631 = vunpack.i.l.bf16 %v2629
    %v2632 = vunpack.i.h.bf16 %v2629
    %v2633 = vmax.f32 %v2631, %v2632
    %v2634 = vrot.slane %v2633, 4
    %v2635 = vmax.f32 %v2633, %v2634
    %v2636 = vrot.slane %v2635, 2
    %v2637 = vmax.f32 %v2635, %v2636
    %v2638 = vrot.slane %v2637, 1
    %v2639 = vmax.f32 %v2637, %v2638
    %v2640 = vpack.i.bf16 %v2639, %v2639
    %v2642 = vsel %vm2561, %v2559, 4286644096
    %v2644 = vunpack.i.l.bf16 %v2642
    %v2645 = vunpack.i.h.bf16 %v2642
    %v2646 = vmax.f32 %v2644, %v2645
    %v2647 = vrot.slane %v2646, 4
    %v2648 = vmax.f32 %v2646, %v2647
    %v2649 = vrot.slane %v2648, 2
    %v2650 = vmax.f32 %v2648, %v2649
    %v2651 = vrot.slane %v2650, 1
    %v2652 = vmax.f32 %v2650, %v2651
    %v2653 = vpack.i.bf16 %v2652, %v2652
    %v2655 = vsel %vm2561, %v2560, 4286644096
    %v2657 = vunpack.i.l.bf16 %v2655
    %v2658 = vunpack.i.h.bf16 %v2655
    %v2659 = vmax.f32 %v2657, %v2658
    %v2660 = vrot.slane %v2659, 4
    %v2661 = vmax.f32 %v2659, %v2660
    %v2662 = vrot.slane %v2661, 2
    %v2663 = vmax.f32 %v2661, %v2662
    %v2664 = vrot.slane %v2663, 1
    %v2665 = vmax.f32 %v2663, %v2664
    %v2666 = vpack.i.bf16 %v2665, %v2665
    %v2667 = vmax.bf16 %v2575, 0
    %v2668 = vmax.bf16 %v2588, 0
    %v2669 = vmax.bf16 %v2601, 0
    %v2670 = vmax.bf16 %v2614, 0
    %v2671 = vmax.bf16 %v2627, 0
    %v2672 = vmax.bf16 %v2640, 0
    %v2673 = vmax.bf16 %v2653, 0
    %v2674 = vmax.bf16 %v2666, 0
    %v2675 = vld [vmem:[%s0 + $0x4] sm:$0xc]
    %v2676 = vld [vmem:[%s0 + $0x10] sm:$0xc]
    %v2677 = vld [vmem:[%s0 + $0x1c] sm:$0xc]
    %v2678 = vld [vmem:[%s0 + $0x28] sm:$0xc]
    %v2679 = vld [vmem:[%s0 + $0x34] sm:$0xc]
    %v2680 = vld [vmem:[%s0 + $0x40] sm:$0xc]
    %v2681 = vld [vmem:[%s0 + $0x4c] sm:$0xc]
    %v2682 = vld [vmem:[%s0 + $0x58] sm:$0xc]
    %v2692 = vunpack.c.l.s4 1983009808
    %v2693 = vunpack.c.0.s8 %v2692
    %v2694 = vlaneseq
    %v2695 = vshrl.u32 %v2694, 7
    %v2696 = vsub.s32 %v2693, %v2695
    %v2697 = vrot.slane %v2675, %v2696
    %v2698 = vcombine.high %v2697, %v2697
    %v2700 = vunpack.c.l.s4 1983009808
    %v2701 = vunpack.c.0.s8 %v2700
    %v2702 = vlaneseq
    %v2703 = vshrl.u32 %v2702, 7
    %v2704 = vsub.s32 %v2701, %v2703
    %v2705 = vrot.slane %v2676, %v2704
    %v2706 = vcombine.high %v2705, %v2705
    %v2708 = vunpack.c.l.s4 1983009808
    %v2709 = vunpack.c.0.s8 %v2708
    %v2710 = vlaneseq
    %v2711 = vshrl.u32 %v2710, 7
    %v2712 = vsub.s32 %v2709, %v2711
    %v2713 = vrot.slane %v2677, %v2712
    %v2714 = vcombine.high %v2713, %v2713
    %v2716 = vunpack.c.l.s4 1983009808
    %v2717 = vunpack.c.0.s8 %v2716
    %v2718 = vlaneseq
    %v2719 = vshrl.u32 %v2718, 7
    %v2720 = vsub.s32 %v2717, %v2719
    %v2721 = vrot.slane %v2678, %v2720
    %v2722 = vcombine.high %v2721, %v2721
    %v2724 = vunpack.c.l.s4 1983009808
    %v2725 = vunpack.c.0.s8 %v2724
    %v2726 = vlaneseq
    %v2727 = vshrl.u32 %v2726, 7
    %v2728 = vsub.s32 %v2725, %v2727
    %v2729 = vrot.slane %v2679, %v2728
    %v2730 = vcombine.high %v2729, %v2729
    %v2732 = vunpack.c.l.s4 1983009808
    %v2733 = vunpack.c.0.s8 %v2732
    %v2734 = vlaneseq
    %v2735 = vshrl.u32 %v2734, 7
    %v2736 = vsub.s32 %v2733, %v2735
    %v2737 = vrot.slane %v2680, %v2736
    %v2738 = vcombine.high %v2737, %v2737
    %v2740 = vunpack.c.l.s4 1983009808
    %v2741 = vunpack.c.0.s8 %v2740
    %v2742 = vlaneseq
    %v2743 = vshrl.u32 %v2742, 7
    %v2744 = vsub.s32 %v2741, %v2743
    %v2745 = vrot.slane %v2681, %v2744
    %v2746 = vcombine.high %v2745, %v2745
    %v2748 = vunpack.c.l.s4 1983009808
    %v2749 = vunpack.c.0.s8 %v2748
    %v2750 = vlaneseq
    %v2751 = vshrl.u32 %v2750, 7
    %v2752 = vsub.s32 %v2749, %v2751
    %v2753 = vrot.slane %v2682, %v2752
    %v2754 = vcombine.high %v2753, %v2753
    %v2755 = vld [vmem:[%s0 + $0x8] sm:$0x1]
    %v2756 = vld [vmem:[%s0 + $0x14] sm:$0x1]
    %v2757 = vld [vmem:[%s0 + $0x20] sm:$0x1]
    %v2758 = vld [vmem:[%s0 + $0x2c] sm:$0x1]
    %v2759 = vld [vmem:[%s0 + $0x38] sm:$0x1]
    %v2760 = vld [vmem:[%s0 + $0x44] sm:$0x1]
    %v2761 = vld [vmem:[%s0 + $0x50] sm:$0x1]
    %v2762 = vld [vmem:[%s0 + $0x5c] sm:$0x1]
    %v2772 = vunpack.c.l.s4 1983009808
    %v2773 = vunpack.c.0.s8 %v2772
    %v2774 = vlaneseq
    %v2775 = vshrl.u32 %v2774, 7
    %v2776 = vsub.s32 %v2773, %v2775
    %v2777 = vrot.slane %v2755, %v2776
    %v2779 = vunpack.c.l.s4 1983009808
    %v2780 = vunpack.c.0.s8 %v2779
    %v2781 = vlaneseq
    %v2782 = vshrl.u32 %v2781, 7
    %v2783 = vsub.s32 %v2780, %v2782
    %v2784 = vrot.slane %v2756, %v2783
    %v2786 = vunpack.c.l.s4 1983009808
    %v2787 = vunpack.c.0.s8 %v2786
    %v2788 = vlaneseq
    %v2789 = vshrl.u32 %v2788, 7
    %v2790 = vsub.s32 %v2787, %v2789
    %v2791 = vrot.slane %v2757, %v2790
    %v2793 = vunpack.c.l.s4 1983009808
    %v2794 = vunpack.c.0.s8 %v2793
    %v2795 = vlaneseq
    %v2796 = vshrl.u32 %v2795, 7
    %v2797 = vsub.s32 %v2794, %v2796
    %v2798 = vrot.slane %v2758, %v2797
    %v2800 = vunpack.c.l.s4 1983009808
    %v2801 = vunpack.c.0.s8 %v2800
    %v2802 = vlaneseq
    %v2803 = vshrl.u32 %v2802, 7
    %v2804 = vsub.s32 %v2801, %v2803
    %v2805 = vrot.slane %v2759, %v2804
    %v2807 = vunpack.c.l.s4 1983009808
    %v2808 = vunpack.c.0.s8 %v2807
    %v2809 = vlaneseq
    %v2810 = vshrl.u32 %v2809, 7
    %v2811 = vsub.s32 %v2808, %v2810
    %v2812 = vrot.slane %v2760, %v2811
    %v2814 = vunpack.c.l.s4 1983009808
    %v2815 = vunpack.c.0.s8 %v2814
    %v2816 = vlaneseq
    %v2817 = vshrl.u32 %v2816, 7
    %v2818 = vsub.s32 %v2815, %v2817
    %v2819 = vrot.slane %v2761, %v2818
    %v2821 = vunpack.c.l.s4 1983009808
    %v2822 = vunpack.c.0.s8 %v2821
    %v2823 = vlaneseq
    %v2824 = vshrl.u32 %v2823, 7
    %v2825 = vsub.s32 %v2822, %v2824
    %v2826 = vrot.slane %v2762, %v2825
    %v2828 = vshrl.u32 %v2698, 16
    %v2830 = vrot.slane %v2828, 6
    %v2831 = vshll.u32 %v2698, 16
    %v2833 = vrot.slane %v2831, 7
    %v2834 = vor.u32 %v2830, %v2833
    %v2835 = vrot.slane %v2834, 2
    %v2837 = vshll.u32 %v2777, 16
    %v2839 = vrot.slane %v2837, 7
    %v2840 = vsel %vm269, %v2835, %v2839
    %v2842 = vshrl.u32 %v2706, 16
    %v2844 = vrot.slane %v2842, 6
    %v2845 = vshll.u32 %v2706, 16
    %v2847 = vrot.slane %v2845, 7
    %v2848 = vor.u32 %v2844, %v2847
    %v2849 = vrot.slane %v2848, 2
    %v2851 = vshll.u32 %v2784, 16
    %v2853 = vrot.slane %v2851, 7
    %v2854 = vsel %vm269, %v2849, %v2853
    %v2856 = vshrl.u32 %v2714, 16
    %v2858 = vrot.slane %v2856, 6
    %v2859 = vshll.u32 %v2714, 16
    %v2861 = vrot.slane %v2859, 7
    %v2862 = vor.u32 %v2858, %v2861
    %v2863 = vrot.slane %v2862, 2
    %v2865 = vshll.u32 %v2791, 16
    %v2867 = vrot.slane %v2865, 7
    %v2868 = vsel %vm269, %v2863, %v2867
    %v2870 = vshrl.u32 %v2722, 16
    %v2872 = vrot.slane %v2870, 6
    %v2873 = vshll.u32 %v2722, 16
    %v2875 = vrot.slane %v2873, 7
    %v2876 = vor.u32 %v2872, %v2875
    %v2877 = vrot.slane %v2876, 2
    %v2879 = vshll.u32 %v2798, 16
    %v2881 = vrot.slane %v2879, 7
    %v2882 = vsel %vm269, %v2877, %v2881
    %v2884 = vshrl.u32 %v2730, 16
    %v2886 = vrot.slane %v2884, 6
    %v2887 = vshll.u32 %v2730, 16
    %v2889 = vrot.slane %v2887, 7
    %v2890 = vor.u32 %v2886, %v2889
    %v2891 = vrot.slane %v2890, 2
    %v2893 = vshll.u32 %v2805, 16
    %v2895 = vrot.slane %v2893, 7
    %v2896 = vsel %vm269, %v2891, %v2895
    %v2898 = vshrl.u32 %v2738, 16
    %v2900 = vrot.slane %v2898, 6
    %v2901 = vshll.u32 %v2738, 16
    %v2903 = vrot.slane %v2901, 7
    %v2904 = vor.u32 %v2900, %v2903
    %v2905 = vrot.slane %v2904, 2
    %v2907 = vshll.u32 %v2812, 16
    %v2909 = vrot.slane %v2907, 7
    %v2910 = vsel %vm269, %v2905, %v2909
    %v2912 = vshrl.u32 %v2746, 16
    %v2914 = vrot.slane %v2912, 6
    %v2915 = vshll.u32 %v2746, 16
    %v2917 = vrot.slane %v2915, 7
    %v2918 = vor.u32 %v2914, %v2917
    %v2919 = vrot.slane %v2918, 2
    %v2921 = vshll.u32 %v2819, 16
    %v2923 = vrot.slane %v2921, 7
    %v2924 = vsel %vm269, %v2919, %v2923
    %v2926 = vshrl.u32 %v2754, 16
    %v2928 = vrot.slane %v2926, 6
    %v2929 = vshll.u32 %v2754, 16
    %v2931 = vrot.slane %v2929, 7
    %v2932 = vor.u32 %v2928, %v2931
    %v2933 = vrot.slane %v2932, 2
    %v2935 = vshll.u32 %v2826, 16
    %v2937 = vrot.slane %v2935, 7
    %v2938 = vsel %vm269, %v2933, %v2937
    %v2939 = vcombine.low %v2840, %v2854
    %v2940 = vcombine.low %v2868, %v2882
    %v2942 = vunpack.c.l.s4 1983009808
    %v2943 = vunpack.c.0.s8 %v2942
    %v2944 = vlaneseq
    %v2945 = vshrl.u32 %v2944, 7
    %v2946 = vsub.s32 %v2943, %v2945
    %v2947 = vrot.slane %v2939, %v2946
    %v2949 = vunpack.c.l.s4 1983009808
    %v2950 = vunpack.c.0.s8 %v2949
    %v2951 = vlaneseq
    %v2952 = vshrl.u32 %v2951, 7
    %v2953 = vsub.s32 %v2950, %v2952
    %v2954 = vrot.slane %v2940, %v2953
    %v2955 = vcombine.low %v2947, %v2954
    %v2956 = vcombine.low %v2896, %v2910
    %v2957 = vcombine.low %v2924, %v2938
    %v2959 = vunpack.c.l.s4 1983009808
    %v2960 = vunpack.c.0.s8 %v2959
    %v2961 = vlaneseq
    %v2962 = vshrl.u32 %v2961, 7
    %v2963 = vsub.s32 %v2960, %v2962
    %v2964 = vrot.slane %v2956, %v2963
    %v2966 = vunpack.c.l.s4 1983009808
    %v2967 = vunpack.c.0.s8 %v2966
    %v2968 = vlaneseq
    %v2969 = vshrl.u32 %v2968, 7
    %v2970 = vsub.s32 %v2967, %v2969
    %v2971 = vrot.slane %v2957, %v2970
    %v2972 = vcombine.low %v2964, %v2971
    %v2974 = vsel %vm661, %v2955, 0
    %v2977 = vsel %vm661, %v2972, 0
    %2979 = vmatprep.subr.bf16.mxu0 0
    %2980 = vmatpush1.bf16.msra.mxu0 %v657
    %2981 = vmatprep.subr.bf16.mxu0 0
    %2982 = vmatpush1.bf16.msra.mxu0 %v658
    %2983 = vmatprep.subr.bf16.mxu0 0
    %2984 = vmatpush1.bf16.msra.mxu0 0
    %2985 = vmatprep.subr.bf16.mxu0 0
    %2986 = vmatpush1.bf16.msra.mxu0 0
    %2987 = vmatprep.subr.bf16.mxu0 0
    %2988 = vmatpush1.bf16.msra.mxu0 0
    %2989 = vmatprep.subr.bf16.mxu0 0
    %2990 = vmatpush1.bf16.msra.mxu0 0
    %2991 = vmatprep.subr.bf16.mxu0 0
    %2992 = vmatpush1.bf16.msra.mxu0 0
    %2993 = vmatprep.subr.bf16.mxu0 0
    %2994 = vmatpush1.bf16.msra.mxu0 0
    %2995 = vmatprep.subr.bf16.mxu0 0
    %2996 = vmatpush1.bf16.msra.mxu0 0
    %2997 = vmatprep.subr.bf16.mxu0 0
    %2998 = vmatpush1.bf16.msra.mxu0 0
    %2999 = vmatprep.subr.bf16.mxu0 0
    %3000 = vmatpush1.bf16.msra.mxu0 0
    %3001 = vmatprep.subr.bf16.mxu0 0
    %3002 = vmatpush1.bf16.msra.mxu0 0
    %3003 = vmatprep.subr.bf16.mxu0 0
    %3004 = vmatpush1.bf16.msra.mxu0 0
    %3005 = vmatprep.subr.bf16.mxu0 0
    %3006 = vmatpush1.bf16.msra.mxu0 0
    %3007 = vmatprep.subr.bf16.mxu0 0
    %3008 = vmatpush1.bf16.msra.mxu0 0
    %3009 = vmatprep.subr.bf16.mxu0 0
    %3010 = vmatpush1.bf16.msra.mxu0 0
    %3011 = vmatprep.mubr.bf16.mxu0 0
    %3012 = vmatmul.mubr.bf16.gmra.mrb[0].mxu0 %v2974
    %v3013 = vpop.f32.mrb[0].mxu0
    %v3014 = vadd.f32 0.0, %v3013
    %v3015 = vpop.f32.mrb[0].mxu0
    %v3016 = vpop.f32.mrb[0].mxu0
    %v3017 = vadd.f32 0.0, %v3016
    %v3018 = vpop.f32.mrb[0].mxu0
    %3019 = vmatprep.mubr.bf16.mxu0 0
    %3020 = vmatmul.mubr.bf16.gmra.mrb[0].mxu0 %v2977
    %v3021 = vpop.f32.mrb[0].mxu0
    %v3022 = vadd.f32 0.0, %v3021
    %v3023 = vpop.f32.mrb[0].mxu0
    %v3024 = vpop.f32.mrb[0].mxu0
    %v3025 = vadd.f32 0.0, %v3024
    %v3026 = vpop.f32.mrb[0].mxu0
    %3027 = vdwg.mxu0
    %v3028 = vcombine.low %v2698, %v2706
    %v3029 = vcombine.low %v2714, %v2722
    %v3031 = vunpack.c.l.s4 1983009808
    %v3032 = vunpack.c.0.s8 %v3031
    %v3033 = vlaneseq
    %v3034 = vshrl.u32 %v3033, 7
    %v3035 = vsub.s32 %v3032, %v3034
    %v3036 = vrot.slane %v3028, %v3035
    %v3038 = vunpack.c.l.s4 1983009808
    %v3039 = vunpack.c.0.s8 %v3038
    %v3040 = vlaneseq
    %v3041 = vshrl.u32 %v3040, 7
    %v3042 = vsub.s32 %v3039, %v3041
    %v3043 = vrot.slane %v3029, %v3042
    %v3044 = vcombine.low %v3036, %v3043
    %v3045 = vcombine.low %v2730, %v2738
    %v3046 = vcombine.low %v2746, %v2754
    %v3048 = vunpack.c.l.s4 1983009808
    %v3049 = vunpack.c.0.s8 %v3048
    %v3050 = vlaneseq
    %v3051 = vshrl.u32 %v3050, 7
    %v3052 = vsub.s32 %v3049, %v3051
    %v3053 = vrot.slane %v3045, %v3052
    %v3055 = vunpack.c.l.s4 1983009808
    %v3056 = vunpack.c.0.s8 %v3055
    %v3057 = vlaneseq
    %v3058 = vshrl.u32 %v3057, 7
    %v3059 = vsub.s32 %v3056, %v3058
    %v3060 = vrot.slane %v3046, %v3059
    %v3061 = vcombine.low %v3053, %v3060
    %v3063 = vsel %vm661, %v3044, 0
    %v3066 = vsel %vm661, %v3061, 0
    %3068 = vmatprep.subr.bf16.mxu0 0
    %3069 = vmatpush1.bf16.msra.mxu0 %v871
    %3070 = vmatprep.subr.bf16.mxu0 0
    %3071 = vmatpush1.bf16.msra.mxu0 %v872
    %3072 = vmatprep.subr.bf16.mxu0 0
    %3073 = vmatpush1.bf16.msra.mxu0 0
    %3074 = vmatprep.subr.bf16.mxu0 0
    %3075 = vmatpush1.bf16.msra.mxu0 0
    %3076 = vmatprep.subr.bf16.mxu0 0
    %3077 = vmatpush1.bf16.msra.mxu0 0
    %3078 = vmatprep.subr.bf16.mxu0 0
    %3079 = vmatpush1.bf16.msra.mxu0 0
    %3080 = vmatprep.subr.bf16.mxu0 0
    %3081 = vmatpush1.bf16.msra.mxu0 0
    %3082 = vmatprep.subr.bf16.mxu0 0
    %3083 = vmatpush1.bf16.msra.mxu0 0
    %3084 = vmatprep.subr.bf16.mxu0 0
    %3085 = vmatpush1.bf16.msra.mxu0 0
    %3086 = vmatprep.subr.bf16.mxu0 0
    %3087 = vmatpush1.bf16.msra.mxu0 0
    %3088 = vmatprep.subr.bf16.mxu0 0
    %3089 = vmatpush1.bf16.msra.mxu0 0
    %3090 = vmatprep.subr.bf16.mxu0 0
    %3091 = vmatpush1.bf16.msra.mxu0 0
    %3092 = vmatprep.subr.bf16.mxu0 0
    %3093 = vmatpush1.bf16.msra.mxu0 0
    %3094 = vmatprep.subr.bf16.mxu0 0
    %3095 = vmatpush1.bf16.msra.mxu0 0
    %3096 = vmatprep.subr.bf16.mxu0 0
    %3097 = vmatpush1.bf16.msra.mxu0 0
    %3098 = vmatprep.subr.bf16.mxu0 0
    %3099 = vmatpush1.bf16.msra.mxu0 0
    %3100 = vmatprep.mubr.bf16.mxu0 0
    %3101 = vmatmul.mubr.bf16.gmra.mrb[0].mxu0 %v3063
    %v3102 = vpop.f32.mrb[0].mxu0
    %v3103 = vadd.f32 %v3014, %v3102
    %v3104 = vpop.f32.mrb[0].mxu0
    %v3105 = vpop.f32.mrb[0].mxu0
    %v3106 = vadd.f32 %v3017, %v3105
    %v3107 = vpop.f32.mrb[0].mxu0
    %3108 = vmatprep.mubr.bf16.mxu0 0
    %3109 = vmatmul.mubr.bf16.gmra.mrb[0].mxu0 %v3066
    %v3110 = vpop.f32.mrb[0].mxu0
    %v3111 = vadd.f32 %v3022, %v3110
    %v3112 = vpop.f32.mrb[0].mxu0
    %v3113 = vpop.f32.mrb[0].mxu0
    %v3114 = vadd.f32 %v3025, %v3113
    %v3115 = vpop.f32.mrb[0].mxu0
    %3116 = vdwg.mxu0
    %v3117 = vld [vmem:[%s0 + $0x4] sm:$0x8]
    %v3118 = vld [vmem:[%s0 + $0x8] sm:$0x1]
    %v3119 = vld [vmem:[%s0 + $0x10] sm:$0x8]
    %v3120 = vld [vmem:[%s0 + $0x14] sm:$0x1]
    %v3121 = vld [vmem:[%s0 + $0x1c] sm:$0x8]
    %v3122 = vld [vmem:[%s0 + $0x20] sm:$0x1]
    %v3123 = vld [vmem:[%s0 + $0x28] sm:$0x8]
    %v3124 = vld [vmem:[%s0 + $0x2c] sm:$0x1]
    %v3125 = vld [vmem:[%s0 + $0x34] sm:$0x8]
    %v3126 = vld [vmem:[%s0 + $0x38] sm:$0x1]
    %v3127 = vld [vmem:[%s0 + $0x40] sm:$0x8]
    %v3128 = vld [vmem:[%s0 + $0x44] sm:$0x1]
    %v3129 = vld [vmem:[%s0 + $0x4c] sm:$0x8]
    %v3130 = vld [vmem:[%s0 + $0x50] sm:$0x1]
    %v3131 = vld [vmem:[%s0 + $0x58] sm:$0x8]
    %v3132 = vld [vmem:[%s0 + $0x5c] sm:$0x1]
    %v3150 = vunpack.c.l.s4 1983009808
    %v3151 = vunpack.c.0.s8 %v3150
    %v3152 = vlaneseq
    %v3153 = vshrl.u32 %v3152, 7
    %v3154 = vsub.s32 %v3151, %v3153
    %v3155 = vrot.slane %v3117, %v3154
    %v3156 = vcombine.high %v3155, %v3155
    %v3158 = vunpack.c.l.s4 1983009808
    %v3159 = vunpack.c.0.s8 %v3158
    %v3160 = vlaneseq
    %v3161 = vshrl.u32 %v3160, 7
    %v3162 = vsub.s32 %v3159, %v3161
    %v3163 = vrot.slane %v3118, %v3162
    %v3165 = vunpack.c.l.s4 1983009808
    %v3166 = vunpack.c.0.s8 %v3165
    %v3167 = vlaneseq
    %v3168 = vshrl.u32 %v3167, 7
    %v3169 = vsub.s32 %v3166, %v3168
    %v3170 = vrot.slane %v3119, %v3169
    %v3171 = vcombine.high %v3170, %v3170
    %v3173 = vunpack.c.l.s4 1983009808
    %v3174 = vunpack.c.0.s8 %v3173
    %v3175 = vlaneseq
    %v3176 = vshrl.u32 %v3175, 7
    %v3177 = vsub.s32 %v3174, %v3176
    %v3178 = vrot.slane %v3120, %v3177
    %v3180 = vunpack.c.l.s4 1983009808
    %v3181 = vunpack.c.0.s8 %v3180
    %v3182 = vlaneseq
    %v3183 = vshrl.u32 %v3182, 7
    %v3184 = vsub.s32 %v3181, %v3183
    %v3185 = vrot.slane %v3121, %v3184
    %v3186 = vcombine.high %v3185, %v3185
    %v3188 = vunpack.c.l.s4 1983009808
    %v3189 = vunpack.c.0.s8 %v3188
    %v3190 = vlaneseq
    %v3191 = vshrl.u32 %v3190, 7
    %v3192 = vsub.s32 %v3189, %v3191
    %v3193 = vrot.slane %v3122, %v3192
    %v3195 = vunpack.c.l.s4 1983009808
    %v3196 = vunpack.c.0.s8 %v3195
    %v3197 = vlaneseq
    %v3198 = vshrl.u32 %v3197, 7
    %v3199 = vsub.s32 %v3196, %v3198
    %v3200 = vrot.slane %v3123, %v3199
    %v3201 = vcombine.high %v3200, %v3200
    %v3203 = vunpack.c.l.s4 1983009808
    %v3204 = vunpack.c.0.s8 %v3203
    %v3205 = vlaneseq
    %v3206 = vshrl.u32 %v3205, 7
    %v3207 = vsub.s32 %v3204, %v3206
    %v3208 = vrot.slane %v3124, %v3207
    %v3210 = vunpack.c.l.s4 1983009808
    %v3211 = vunpack.c.0.s8 %v3210
    %v3212 = vlaneseq
    %v3213 = vshrl.u32 %v3212, 7
    %v3214 = vsub.s32 %v3211, %v3213
    %v3215 = vrot.slane %v3125, %v3214
    %v3216 = vcombine.high %v3215, %v3215
    %v3218 = vunpack.c.l.s4 1983009808
    %v3219 = vunpack.c.0.s8 %v3218
    %v3220 = vlaneseq
    %v3221 = vshrl.u32 %v3220, 7
    %v3222 = vsub.s32 %v3219, %v3221
    %v3223 = vrot.slane %v3126, %v3222
    %v3225 = vunpack.c.l.s4 1983009808
    %v3226 = vunpack.c.0.s8 %v3225
    %v3227 = vlaneseq
    %v3228 = vshrl.u32 %v3227, 7
    %v3229 = vsub.s32 %v3226, %v3228
    %v3230 = vrot.slane %v3127, %v3229
    %v3231 = vcombine.high %v3230, %v3230
    %v3233 = vunpack.c.l.s4 1983009808
    %v3234 = vunpack.c.0.s8 %v3233
    %v3235 = vlaneseq
    %v3236 = vshrl.u32 %v3235, 7
    %v3237 = vsub.s32 %v3234, %v3236
    %v3238 = vrot.slane %v3128, %v3237
    %v3240 = vunpack.c.l.s4 1983009808
    %v3241 = vunpack.c.0.s8 %v3240
    %v3242 = vlaneseq
    %v3243 = vshrl.u32 %v3242, 7
    %v3244 = vsub.s32 %v3241, %v3243
    %v3245 = vrot.slane %v3129, %v3244
    %v3246 = vcombine.high %v3245, %v3245
    %v3248 = vunpack.c.l.s4 1983009808
    %v3249 = vunpack.c.0.s8 %v3248
    %v3250 = vlaneseq
    %v3251 = vshrl.u32 %v3250, 7
    %v3252 = vsub.s32 %v3249, %v3251
    %v3253 = vrot.slane %v3130, %v3252
    %v3255 = vunpack.c.l.s4 1983009808
    %v3256 = vunpack.c.0.s8 %v3255
    %v3257 = vlaneseq
    %v3258 = vshrl.u32 %v3257, 7
    %v3259 = vsub.s32 %v3256, %v3258
    %v3260 = vrot.slane %v3131, %v3259
    %v3261 = vcombine.high %v3260, %v3260
    %v3263 = vunpack.c.l.s4 1983009808
    %v3264 = vunpack.c.0.s8 %v3263
    %v3265 = vlaneseq
    %v3266 = vshrl.u32 %v3265, 7
    %v3267 = vsub.s32 %v3264, %v3266
    %v3268 = vrot.slane %v3132, %v3267
    %v3269 = vrot.slane %v3156, 7
    %v3270 = vrot.slane %v3269, 2
    %v3271 = vrot.slane %v3163, 7
    %v3272 = vsel %vm1140, %v3270, %v3271
    %v3273 = vrot.slane %v3171, 7
    %v3274 = vrot.slane %v3273, 2
    %v3275 = vrot.slane %v3178, 7
    %v3276 = vsel %vm1140, %v3274, %v3275
    %v3277 = vrot.slane %v3186, 7
    %v3278 = vrot.slane %v3277, 2
    %v3279 = vrot.slane %v3193, 7
    %v3280 = vsel %vm1140, %v3278, %v3279
    %v3281 = vrot.slane %v3201, 7
    %v3282 = vrot.slane %v3281, 2
    %v3283 = vrot.slane %v3208, 7
    %v3284 = vsel %vm1140, %v3282, %v3283
    %v3285 = vrot.slane %v3216, 7
    %v3286 = vrot.slane %v3285, 2
    %v3287 = vrot.slane %v3223, 7
    %v3288 = vsel %vm1140, %v3286, %v3287
    %v3289 = vrot.slane %v3231, 7
    %v3290 = vrot.slane %v3289, 2
    %v3291 = vrot.slane %v3238, 7
    %v3292 = vsel %vm1140, %v3290, %v3291
    %v3293 = vrot.slane %v3246, 7
    %v3294 = vrot.slane %v3293, 2
    %v3295 = vrot.slane %v3253, 7
    %v3296 = vsel %vm1140, %v3294, %v3295
    %v3297 = vrot.slane %v3261, 7
    %v3298 = vrot.slane %v3297, 2
    %v3299 = vrot.slane %v3268, 7
    %v3300 = vsel %vm1140, %v3298, %v3299
    %v3301 = vcombine.low %v3272, %v3276
    %v3302 = vcombine.low %v3280, %v3284
    %v3304 = vunpack.c.l.s4 1983009808
    %v3305 = vunpack.c.0.s8 %v3304
    %v3306 = vlaneseq
    %v3307 = vshrl.u32 %v3306, 7
    %v3308 = vsub.s32 %v3305, %v3307
    %v3309 = vrot.slane %v3301, %v3308
    %v3311 = vunpack.c.l.s4 1983009808
    %v3312 = vunpack.c.0.s8 %v3311
    %v3313 = vlaneseq
    %v3314 = vshrl.u32 %v3313, 7
    %v3315 = vsub.s32 %v3312, %v3314
    %v3316 = vrot.slane %v3302, %v3315
    %v3317 = vcombine.low %v3309, %v3316
    %v3318 = vcombine.low %v3288, %v3292
    %v3319 = vcombine.low %v3296, %v3300
    %v3321 = vunpack.c.l.s4 1983009808
    %v3322 = vunpack.c.0.s8 %v3321
    %v3323 = vlaneseq
    %v3324 = vshrl.u32 %v3323, 7
    %v3325 = vsub.s32 %v3322, %v3324
    %v3326 = vrot.slane %v3318, %v3325
    %v3328 = vunpack.c.l.s4 1983009808
    %v3329 = vunpack.c.0.s8 %v3328
    %v3330 = vlaneseq
    %v3331 = vshrl.u32 %v3330, 7
    %v3332 = vsub.s32 %v3329, %v3331
    %v3333 = vrot.slane %v3319, %v3332
    %v3334 = vcombine.low %v3326, %v3333
    %v3336 = vsel %vm661, %v3317, 0
    %v3339 = vsel %vm661, %v3334, 0
    %3341 = vmatprep.subr.bf16.mxu0 0
    %3342 = vmatpush1.bf16.msra.mxu0 %v1336
    %3343 = vmatprep.subr.bf16.mxu0 0
    %3344 = vmatpush1.bf16.msra.mxu0 %v1337
    %3345 = vmatprep.subr.bf16.mxu0 0
    %3346 = vmatpush1.bf16.msra.mxu0 0
    %3347 = vmatprep.subr.bf16.mxu0 0
    %3348 = vmatpush1.bf16.msra.mxu0 0
    %3349 = vmatprep.subr.bf16.mxu0 0
    %3350 = vmatpush1.bf16.msra.mxu0 0
    %3351 = vmatprep.subr.bf16.mxu0 0
    %3352 = vmatpush1.bf16.msra.mxu0 0
    %3353 = vmatprep.subr.bf16.mxu0 0
    %3354 = vmatpush1.bf16.msra.mxu0 0
    %3355 = vmatprep.subr.bf16.mxu0 0
    %3356 = vmatpush1.bf16.msra.mxu0 0
    %3357 = vmatprep.subr.bf16.mxu0 0
    %3358 = vmatpush1.bf16.msra.mxu0 0
    %3359 = vmatprep.subr.bf16.mxu0 0
    %3360 = vmatpush1.bf16.msra.mxu0 0
    %3361 = vmatprep.subr.bf16.mxu0 0
    %3362 = vmatpush1.bf16.msra.mxu0 0
    %3363 = vmatprep.subr.bf16.mxu0 0
    %3364 = vmatpush1.bf16.msra.mxu0 0
    %3365 = vmatprep.subr.bf16.mxu0 0
    %3366 = vmatpush1.bf16.msra.mxu0 0
    %3367 = vmatprep.subr.bf16.mxu0 0
    %3368 = vmatpush1.bf16.msra.mxu0 0
    %3369 = vmatprep.subr.bf16.mxu0 0
    %3370 = vmatpush1.bf16.msra.mxu0 0
    %3371 = vmatprep.subr.bf16.mxu0 0
    %3372 = vmatpush1.bf16.msra.mxu0 0
    %3373 = vmatprep.mubr.bf16.mxu0 0
    %3374 = vmatmul.mubr.bf16.gmra.mrb[0].mxu0 %v3336
    %v3375 = vpop.f32.mrb[0].mxu0
    %v3376 = vadd.f32 0.0, %v3375
    %v3377 = vpop.f32.mrb[0].mxu0
    %v3378 = vpop.f32.mrb[0].mxu0
    %v3379 = vadd.f32 0.0, %v3378
    %v3380 = vpop.f32.mrb[0].mxu0
    %3381 = vmatprep.mubr.bf16.mxu0 0
    %3382 = vmatmul.mubr.bf16.gmra.mrb[0].mxu0 %v3339
    %v3383 = vpop.f32.mrb[0].mxu0
    %v3384 = vadd.f32 0.0, %v3383
    %v3385 = vpop.f32.mrb[0].mxu0
    %v3386 = vpop.f32.mrb[0].mxu0
    %v3387 = vadd.f32 0.0, %v3386
    %v3388 = vpop.f32.mrb[0].mxu0
    %3389 = vdwg.mxu0
    %v3390 = vadd.f32 %v3103, %v3376
    %v3391 = vadd.f32 %v3106, %v3379
    %v3392 = vadd.f32 %v3111, %v3384
    %v3393 = vadd.f32 %v3114, %v3387
    %v3394 = vld [vmem:[%s0 + $0x4] sm:$0x8]
    %v3395 = vld [vmem:[%s0 + $0x8] sm:$0x3]
    %v3396 = vld [vmem:[%s0 + $0x10] sm:$0x8]
    %v3397 = vld [vmem:[%s0 + $0x14] sm:$0x3]
    %v3398 = vld [vmem:[%s0 + $0x1c] sm:$0x8]
    %v3399 = vld [vmem:[%s0 + $0x20] sm:$0x3]
    %v3400 = vld [vmem:[%s0 + $0x28] sm:$0x8]
    %v3401 = vld [vmem:[%s0 + $0x2c] sm:$0x3]
    %v3402 = vld [vmem:[%s0 + $0x34] sm:$0x8]
    %v3403 = vld [vmem:[%s0 + $0x38] sm:$0x3]
    %v3404 = vld [vmem:[%s0 + $0x40] sm:$0x8]
    %v3405 = vld [vmem:[%s0 + $0x44] sm:$0x3]
    %v3406 = vld [vmem:[%s0 + $0x4c] sm:$0x8]
    %v3407 = vld [vmem:[%s0 + $0x50] sm:$0x3]
    %v3408 = vld [vmem:[%s0 + $0x58] sm:$0x8]
    %v3409 = vld [vmem:[%s0 + $0x5c] sm:$0x3]
    %v3427 = vunpack.c.l.s4 1983009808
    %v3428 = vunpack.c.0.s8 %v3427
    %v3429 = vlaneseq
    %v3430 = vshrl.u32 %v3429, 7
    %v3431 = vsub.s32 %v3428, %v3430
    %v3432 = vrot.slane %v3394, %v3431
    %v3433 = vcombine.high %v3432, %v3432
    %v3435 = vunpack.c.l.s4 1983009808
    %v3436 = vunpack.c.0.s8 %v3435
    %v3437 = vlaneseq
    %v3438 = vshrl.u32 %v3437, 7
    %v3439 = vsub.s32 %v3436, %v3438
    %v3440 = vrot.slane %v3395, %v3439
    %v3442 = vunpack.c.l.s4 1983009808
    %v3443 = vunpack.c.0.s8 %v3442
    %v3444 = vlaneseq
    %v3445 = vshrl.u32 %v3444, 7
    %v3446 = vsub.s32 %v3443, %v3445
    %v3447 = vrot.slane %v3396, %v3446
    %v3448 = vcombine.high %v3447, %v3447
    %v3450 = vunpack.c.l.s4 1983009808
    %v3451 = vunpack.c.0.s8 %v3450
    %v3452 = vlaneseq
    %v3453 = vshrl.u32 %v3452, 7
    %v3454 = vsub.s32 %v3451, %v3453
    %v3455 = vrot.slane %v3397, %v3454
    %v3457 = vunpack.c.l.s4 1983009808
    %v3458 = vunpack.c.0.s8 %v3457
    %v3459 = vlaneseq
    %v3460 = vshrl.u32 %v3459, 7
    %v3461 = vsub.s32 %v3458, %v3460
    %v3462 = vrot.slane %v3398, %v3461
    %v3463 = vcombine.high %v3462, %v3462
    %v3465 = vunpack.c.l.s4 1983009808
    %v3466 = vunpack.c.0.s8 %v3465
    %v3467 = vlaneseq
    %v3468 = vshrl.u32 %v3467, 7
    %v3469 = vsub.s32 %v3466, %v3468
    %v3470 = vrot.slane %v3399, %v3469
    %v3472 = vunpack.c.l.s4 1983009808
    %v3473 = vunpack.c.0.s8 %v3472
    %v3474 = vlaneseq
    %v3475 = vshrl.u32 %v3474, 7
    %v3476 = vsub.s32 %v3473, %v3475
    %v3477 = vrot.slane %v3400, %v3476
    %v3478 = vcombine.high %v3477, %v3477
    %v3480 = vunpack.c.l.s4 1983009808
    %v3481 = vunpack.c.0.s8 %v3480
    %v3482 = vlaneseq
    %v3483 = vshrl.u32 %v3482, 7
    %v3484 = vsub.s32 %v3481, %v3483
    %v3485 = vrot.slane %v3401, %v3484
    %v3487 = vunpack.c.l.s4 1983009808
    %v3488 = vunpack.c.0.s8 %v3487
    %v3489 = vlaneseq
    %v3490 = vshrl.u32 %v3489, 7
    %v3491 = vsub.s32 %v3488, %v3490
    %v3492 = vrot.slane %v3402, %v3491
    %v3493 = vcombine.high %v3492, %v3492
    %v3495 = vunpack.c.l.s4 1983009808
    %v3496 = vunpack.c.0.s8 %v3495
    %v3497 = vlaneseq
    %v3498 = vshrl.u32 %v3497, 7
    %v3499 = vsub.s32 %v3496, %v3498
    %v3500 = vrot.slane %v3403, %v3499
    %v3502 = vunpack.c.l.s4 1983009808
    %v3503 = vunpack.c.0.s8 %v3502
    %v3504 = vlaneseq
    %v3505 = vshrl.u32 %v3504, 7
    %v3506 = vsub.s32 %v3503, %v3505
    %v3507 = vrot.slane %v3404, %v3506
    %v3508 = vcombine.high %v3507, %v3507
    %v3510 = vunpack.c.l.s4 1983009808
    %v3511 = vunpack.c.0.s8 %v3510
    %v3512 = vlaneseq
    %v3513 = vshrl.u32 %v3512, 7
    %v3514 = vsub.s32 %v3511, %v3513
    %v3515 = vrot.slane %v3405, %v3514
    %v3517 = vunpack.c.l.s4 1983009808
    %v3518 = vunpack.c.0.s8 %v3517
    %v3519 = vlaneseq
    %v3520 = vshrl.u32 %v3519, 7
    %v3521 = vsub.s32 %v3518, %v3520
    %v3522 = vrot.slane %v3406, %v3521
    %v3523 = vcombine.high %v3522, %v3522
    %v3525 = vunpack.c.l.s4 1983009808
    %v3526 = vunpack.c.0.s8 %v3525
    %v3527 = vlaneseq
    %v3528 = vshrl.u32 %v3527, 7
    %v3529 = vsub.s32 %v3526, %v3528
    %v3530 = vrot.slane %v3407, %v3529
    %v3532 = vunpack.c.l.s4 1983009808
    %v3533 = vunpack.c.0.s8 %v3532
    %v3534 = vlaneseq
    %v3535 = vshrl.u32 %v3534, 7
    %v3536 = vsub.s32 %v3533, %v3535
    %v3537 = vrot.slane %v3408, %v3536
    %v3538 = vcombine.high %v3537, %v3537
    %v3540 = vunpack.c.l.s4 1983009808
    %v3541 = vunpack.c.0.s8 %v3540
    %v3542 = vlaneseq
    %v3543 = vshrl.u32 %v3542, 7
    %v3544 = vsub.s32 %v3541, %v3543
    %v3545 = vrot.slane %v3409, %v3544
    %v3547 = vshrl.u32 %v3433, 16
    %v3549 = vrot.slane %v3547, 7
    %v3550 = vrot.slane %v3549, 2
    %v3552 = vshrl.u32 %v3440, 16
    %v3554 = vrot.slane %v3552, 7
    %v3555 = vshll.u32 %v3440, 16
    %v3557 = vor.u32 %v3554, %v3555
    %v3558 = vsel %vm1617, %v3550, %v3557
    %v3560 = vshrl.u32 %v3448, 16
    %v3562 = vrot.slane %v3560, 7
    %v3563 = vrot.slane %v3562, 2
    %v3565 = vshrl.u32 %v3455, 16
    %v3567 = vrot.slane %v3565, 7
    %v3568 = vshll.u32 %v3455, 16
    %v3570 = vor.u32 %v3567, %v3568
    %v3571 = vsel %vm1617, %v3563, %v3570
    %v3573 = vshrl.u32 %v3463, 16
    %v3575 = vrot.slane %v3573, 7
    %v3576 = vrot.slane %v3575, 2
    %v3578 = vshrl.u32 %v3470, 16
    %v3580 = vrot.slane %v3578, 7
    %v3581 = vshll.u32 %v3470, 16
    %v3583 = vor.u32 %v3580, %v3581
    %v3584 = vsel %vm1617, %v3576, %v3583
    %v3586 = vshrl.u32 %v3478, 16
    %v3588 = vrot.slane %v3586, 7
    %v3589 = vrot.slane %v3588, 2
    %v3591 = vshrl.u32 %v3485, 16
    %v3593 = vrot.slane %v3591, 7
    %v3594 = vshll.u32 %v3485, 16
    %v3596 = vor.u32 %v3593, %v3594
    %v3597 = vsel %vm1617, %v3589, %v3596
    %v3599 = vshrl.u32 %v3493, 16
    %v3601 = vrot.slane %v3599, 7
    %v3602 = vrot.slane %v3601, 2
    %v3604 = vshrl.u32 %v3500, 16
    %v3606 = vrot.slane %v3604, 7
    %v3607 = vshll.u32 %v3500, 16
    %v3609 = vor.u32 %v3606, %v3607
    %v3610 = vsel %vm1617, %v3602, %v3609
    %v3612 = vshrl.u32 %v3508, 16
    %v3614 = vrot.slane %v3612, 7
    %v3615 = vrot.slane %v3614, 2
    %v3617 = vshrl.u32 %v3515, 16
    %v3619 = vrot.slane %v3617, 7
    %v3620 = vshll.u32 %v3515, 16
    %v3622 = vor.u32 %v3619, %v3620
    %v3623 = vsel %vm1617, %v3615, %v3622
    %v3625 = vshrl.u32 %v3523, 16
    %v3627 = vrot.slane %v3625, 7
    %v3628 = vrot.slane %v3627, 2
    %v3630 = vshrl.u32 %v3530, 16
    %v3632 = vrot.slane %v3630, 7
    %v3633 = vshll.u32 %v3530, 16
    %v3635 = vor.u32 %v3632, %v3633
    %v3636 = vsel %vm1617, %v3628, %v3635
    %v3638 = vshrl.u32 %v3538, 16
    %v3640 = vrot.slane %v3638, 7
    %v3641 = vrot.slane %v3640, 2
    %v3643 = vshrl.u32 %v3545, 16
    %v3645 = vrot.slane %v3643, 7
    %v3646 = vshll.u32 %v3545, 16
    %v3648 = vor.u32 %v3645, %v3646
    %v3649 = vsel %vm1617, %v3641, %v3648
    %v3650 = vcombine.low %v3558, %v3571
    %v3651 = vcombine.low %v3584, %v3597
    %v3653 = vunpack.c.l.s4 1983009808
    %v3654 = vunpack.c.0.s8 %v3653
    %v3655 = vlaneseq
    %v3656 = vshrl.u32 %v3655, 7
    %v3657 = vsub.s32 %v3654, %v3656
    %v3658 = vrot.slane %v3650, %v3657
    %v3660 = vunpack.c.l.s4 1983009808
    %v3661 = vunpack.c.0.s8 %v3660
    %v3662 = vlaneseq
    %v3663 = vshrl.u32 %v3662, 7
    %v3664 = vsub.s32 %v3661, %v3663
    %v3665 = vrot.slane %v3651, %v3664
    %v3666 = vcombine.low %v3658, %v3665
    %v3667 = vcombine.low %v3610, %v3623
    %v3668 = vcombine.low %v3636, %v3649
    %v3670 = vunpack.c.l.s4 1983009808
    %v3671 = vunpack.c.0.s8 %v3670
    %v3672 = vlaneseq
    %v3673 = vshrl.u32 %v3672, 7
    %v3674 = vsub.s32 %v3671, %v3673
    %v3675 = vrot.slane %v3667, %v3674
    %v3677 = vunpack.c.l.s4 1983009808
    %v3678 = vunpack.c.0.s8 %v3677
    %v3679 = vlaneseq
    %v3680 = vshrl.u32 %v3679, 7
    %v3681 = vsub.s32 %v3678, %v3680
    %v3682 = vrot.slane %v3668, %v3681
    %v3683 = vcombine.low %v3675, %v3682
    %v3685 = vsel %vm661, %v3666, 0
    %v3688 = vsel %vm661, %v3683, 0
    %3690 = vmatprep.subr.bf16.mxu0 0
    %3691 = vmatpush1.bf16.msra.mxu0 %v1981
    %3692 = vmatprep.subr.bf16.mxu0 0
    %3693 = vmatpush1.bf16.msra.mxu0 %v1982
    %3694 = vmatprep.subr.bf16.mxu0 0
    %3695 = vmatpush1.bf16.msra.mxu0 0
    %3696 = vmatprep.subr.bf16.mxu0 0
    %3697 = vmatpush1.bf16.msra.mxu0 0
    %3698 = vmatprep.subr.bf16.mxu0 0
    %3699 = vmatpush1.bf16.msra.mxu0 0
    %3700 = vmatprep.subr.bf16.mxu0 0
    %3701 = vmatpush1.bf16.msra.mxu0 0
    %3702 = vmatprep.subr.bf16.mxu0 0
    %3703 = vmatpush1.bf16.msra.mxu0 0
    %3704 = vmatprep.subr.bf16.mxu0 0
    %3705 = vmatpush1.bf16.msra.mxu0 0
    %3706 = vmatprep.subr.bf16.mxu0 0
    %3707 = vmatpush1.bf16.msra.mxu0 0
    %3708 = vmatprep.subr.bf16.mxu0 0
    %3709 = vmatpush1.bf16.msra.mxu0 0
    %3710 = vmatprep.subr.bf16.mxu0 0
    %3711 = vmatpush1.bf16.msra.mxu0 0
    %3712 = vmatprep.subr.bf16.mxu0 0
    %3713 = vmatpush1.bf16.msra.mxu0 0
    %3714 = vmatprep.subr.bf16.mxu0 0
    %3715 = vmatpush1.bf16.msra.mxu0 0
    %3716 = vmatprep.subr.bf16.mxu0 0
    %3717 = vmatpush1.bf16.msra.mxu0 0
    %3718 = vmatprep.subr.bf16.mxu0 0
    %3719 = vmatpush1.bf16.msra.mxu0 0
    %3720 = vmatprep.subr.bf16.mxu0 0
    %3721 = vmatpush1.bf16.msra.mxu0 0
    %3722 = vmatprep.mubr.bf16.mxu0 0
    %3723 = vmatmul.mubr.bf16.gmra.mrb[0].mxu0 %v3685
    %v3724 = vpop.f32.mrb[0].mxu0
    %v3725 = vadd.f32 0.0, %v3724
    %v3726 = vpop.f32.mrb[0].mxu0
    %v3727 = vpop.f32.mrb[0].mxu0
    %v3728 = vadd.f32 0.0, %v3727
    %v3729 = vpop.f32.mrb[0].mxu0
    %3730 = vmatprep.mubr.bf16.mxu0 0
    %3731 = vmatmul.mubr.bf16.gmra.mrb[0].mxu0 %v3688
    %v3732 = vpop.f32.mrb[0].mxu0
    %v3733 = vadd.f32 0.0, %v3732
    %v3734 = vpop.f32.mrb[0].mxu0
    %v3735 = vpop.f32.mrb[0].mxu0
    %v3736 = vadd.f32 0.0, %v3735
    %v3737 = vpop.f32.mrb[0].mxu0
    %3738 = vdwg.mxu0
    %v3739 = vadd.f32 %v3390, %v3725
    %v3740 = vadd.f32 %v3391, %v3728
    %v3741 = vadd.f32 %v3392, %v3733
    %v3742 = vadd.f32 %v3393, %v3736
    %v3743 = vld [vmem:[%s0 + $0x8] sm:$0x3]
    %v3744 = vld [vmem:[%s0 + $0x14] sm:$0x3]
    %v3745 = vld [vmem:[%s0 + $0x20] sm:$0x3]
    %v3746 = vld [vmem:[%s0 + $0x2c] sm:$0x3]
    %v3747 = vld [vmem:[%s0 + $0x38] sm:$0x3]
    %v3748 = vld [vmem:[%s0 + $0x44] sm:$0x3]
    %v3749 = vld [vmem:[%s0 + $0x50] sm:$0x3]
    %v3750 = vld [vmem:[%s0 + $0x5c] sm:$0x3]
    %v3759 = vcombine.low %v3743, %v3744
    %v3760 = vcombine.low %v3745, %v3746
    %v3762 = vunpack.c.l.s4 1983009808
    %v3763 = vunpack.c.0.s8 %v3762
    %v3764 = vlaneseq
    %v3765 = vshrl.u32 %v3764, 7
    %v3766 = vsub.s32 %v3763, %v3765
    %v3767 = vrot.slane %v3759, %v3766
    %v3769 = vunpack.c.l.s4 1983009808
    %v3770 = vunpack.c.0.s8 %v3769
    %v3771 = vlaneseq
    %v3772 = vshrl.u32 %v3771, 7
    %v3773 = vsub.s32 %v3770, %v3772
    %v3774 = vrot.slane %v3760, %v3773
    %v3775 = vcombine.low %v3767, %v3774
    %v3776 = vcombine.low %v3747, %v3748
    %v3777 = vcombine.low %v3749, %v3750
    %v3779 = vunpack.c.l.s4 1983009808
    %v3780 = vunpack.c.0.s8 %v3779
    %v3781 = vlaneseq
    %v3782 = vshrl.u32 %v3781, 7
    %v3783 = vsub.s32 %v3780, %v3782
    %v3784 = vrot.slane %v3776, %v3783
    %v3786 = vunpack.c.l.s4 1983009808
    %v3787 = vunpack.c.0.s8 %v3786
    %v3788 = vlaneseq
    %v3789 = vshrl.u32 %v3788, 7
    %v3790 = vsub.s32 %v3787, %v3789
    %v3791 = vrot.slane %v3777, %v3790
    %v3792 = vcombine.low %v3784, %v3791
    %v3794 = vsel %vm661, %v3775, 0
    %v3797 = vsel %vm661, %v3792, 0
    %3799 = vmatprep.subr.bf16.mxu0 0
    %3800 = vmatpush1.bf16.msra.mxu0 %v2371
    %3801 = vmatprep.subr.bf16.mxu0 0
    %3802 = vmatpush1.bf16.msra.mxu0 %v2372
    %3803 = vmatprep.subr.bf16.mxu0 0
    %3804 = vmatpush1.bf16.msra.mxu0 0
    %3805 = vmatprep.subr.bf16.mxu0 0
    %3806 = vmatpush1.bf16.msra.mxu0 0
    %3807 = vmatprep.subr.bf16.mxu0 0
    %3808 = vmatpush1.bf16.msra.mxu0 0
    %3809 = vmatprep.subr.bf16.mxu0 0
    %3810 = vmatpush1.bf16.msra.mxu0 0
    %3811 = vmatprep.subr.bf16.mxu0 0
    %3812 = vmatpush1.bf16.msra.mxu0 0
    %3813 = vmatprep.subr.bf16.mxu0 0
    %3814 = vmatpush1.bf16.msra.mxu0 0
    %3815 = vmatprep.subr.bf16.mxu0 0
    %3816 = vmatpush1.bf16.msra.mxu0 0
    %3817 = vmatprep.subr.bf16.mxu0 0
    %3818 = vmatpush1.bf16.msra.mxu0 0
    %3819 = vmatprep.subr.bf16.mxu0 0
    %3820 = vmatpush1.bf16.msra.mxu0 0
    %3821 = vmatprep.subr.bf16.mxu0 0
    %3822 = vmatpush1.bf16.msra.mxu0 0
    %3823 = vmatprep.subr.bf16.mxu0 0
    %3824 = vmatpush1.bf16.msra.mxu0 0
    %3825 = vmatprep.subr.bf16.mxu0 0
    %3826 = vmatpush1.bf16.msra.mxu0 0
    %3827 = vmatprep.subr.bf16.mxu0 0
    %3828 = vmatpush1.bf16.msra.mxu0 0
    %3829 = vmatprep.subr.bf16.mxu0 0
    %3830 = vmatpush1.bf16.msra.mxu0 0
    %3831 = vmatprep.mubr.bf16.mxu0 0
    %3832 = vmatmul.mubr.bf16.gmra.mrb[0].mxu0 %v3794
    %v3833 = vpop.f32.mrb[0].mxu0
    %v3834 = vadd.f32 0.0, %v3833
    %v3835 = vpop.f32.mrb[0].mxu0
    %v3836 = vpop.f32.mrb[0].mxu0
    %v3837 = vadd.f32 0.0, %v3836
    %v3838 = vpop.f32.mrb[0].mxu0
    %3839 = vmatprep.mubr.bf16.mxu0 0
    %3840 = vmatmul.mubr.bf16.gmra.mrb[0].mxu0 %v3797
    %v3841 = vpop.f32.mrb[0].mxu0
    %v3842 = vadd.f32 0.0, %v3841
    %v3843 = vpop.f32.mrb[0].mxu0
    %v3844 = vpop.f32.mrb[0].mxu0
    %v3845 = vadd.f32 0.0, %v3844
    %v3846 = vpop.f32.mrb[0].mxu0
    %3847 = vdwg.mxu0
    %v3848 = vadd.f32 %v3739, %v3834
    %v3849 = vadd.f32 %v3740, %v3837
    %v3850 = vadd.f32 %v3741, %v3842
    %v3851 = vadd.f32 %v3742, %v3845
    %v3856 = vcombine.high %v3848, %v3848
    %v3857 = vcombine.high %v3849, %v3849
    %v3858 = vcombine.high %v3850, %v3850
    %v3859 = vcombine.high %v3851, %v3851
    %v3864 = vpack.c.bf16 %v3848, %v3848
    %v3865 = vpack.c.bf16 %v3856, %v3856
    %v3866 = vpack.c.bf16 %v3849, %v3849
    %v3867 = vpack.c.bf16 %v3857, %v3857
    %v3868 = vpack.c.bf16 %v3850, %v3850
    %v3869 = vpack.c.bf16 %v3858, %v3858
    %v3870 = vpack.c.bf16 %v3851, %v3851
    %v3871 = vpack.c.bf16 %v3859, %v3859
    %v3872 = vadd.bf16 %v3864, %v2544
    %v3873 = vadd.bf16 %v3865, %v2544
    %v3874 = vadd.bf16 %v3866, %v2544
    %v3875 = vadd.bf16 %v3867, %v2544
    %v3876 = vadd.bf16 %v3868, %v2544
    %v3877 = vadd.bf16 %v3869, %v2544
    %v3878 = vadd.bf16 %v3870, %v2544
    %v3879 = vadd.bf16 %v3871, %v2544
    %v3880 = vmax.bf16 %v3872, 0
    %v3881 = vmax.bf16 %v3873, 0
    %v3882 = vmax.bf16 %v3874, 0
    %v3883 = vmax.bf16 %v3875, 0
    %v3884 = vmax.bf16 %v3876, 0
    %v3885 = vmax.bf16 %v3877, 0
    %v3886 = vmax.bf16 %v3878, 0
    %v3887 = vmax.bf16 %v3879, 0
    %v3888 = vlaneseq
    %v3889 = vshrl.u32 %v3888, 7
    %v3890 = vadd.s32 %v3889, 12
    %v3891 = vld [vmem:[%s3] sm:$0x1]
    %v3892 = vlaneseq
    %v3893 = vshrl.u32 %v3892, 7
    %v3894 = vsub.s32 0, %v3893
    %v3895 = vrot.slane %v3891, %v3894
    %vm3896 = vcmp.le.s32.totalorder %v3890, %v3895
    %v3897 = vsel %vm3896, 1, 0
    %vm3898 = vcmp.eq.s32.totalorder %v3897, 1
    %vm3899 = vmpackc.low %vm3898, %vm3898
    %v3900 = vsel %vm3899, %v3880, 0
    %v3901 = vsel %vm3899, %v3881, 0
    %v3902 = vsel %vm3899, %v3882, 0
    %v3903 = vsel %vm3899, %v3883, 0
    %v3904 = vsel %vm3899, %v3884, 0
    %v3905 = vsel %vm3899, %v3885, 0
    %v3906 = vsel %vm3899, %v3886, 0
    %v3907 = vsel %vm3899, %v3887, 0
    %vm3908 = vcmask 1041408
    %v3910 = vsel %vm3908, %v3900, 4286644096
    %v3912 = vunpack.i.l.bf16 %v3910
    %v3913 = vunpack.i.h.bf16 %v3910
    %v3914 = vmax.f32 %v3912, %v3913
    %v3915 = vrot.slane %v3914, 4
    %v3916 = vmax.f32 %v3914, %v3915
    %v3917 = vrot.slane %v3916, 2
    %v3918 = vmax.f32 %v3916, %v3917
    %v3919 = vrot.slane %v3918, 1
    %v3920 = vmax.f32 %v3918, %v3919
    %v3921 = vpack.i.bf16 %v3920, %v3920
    %v3923 = vsel %vm3908, %v3901, 4286644096
    %v3925 = vunpack.i.l.bf16 %v3923
    %v3926 = vunpack.i.h.bf16 %v3923
    %v3927 = vmax.f32 %v3925, %v3926
    %v3928 = vrot.slane %v3927, 4
    %v3929 = vmax.f32 %v3927, %v3928
    %v3930 = vrot.slane %v3929, 2
    %v3931 = vmax.f32 %v3929, %v3930
    %v3932 = vrot.slane %v3931, 1
    %v3933 = vmax.f32 %v3931, %v3932
    %v3934 = vpack.i.bf16 %v3933, %v3933
    %v3936 = vsel %vm3908, %v3902, 4286644096
    %v3938 = vunpack.i.l.bf16 %v3936
    %v3939 = vunpack.i.h.bf16 %v3936
    %v3940 = vmax.f32 %v3938, %v3939
    %v3941 = vrot.slane %v3940, 4
    %v3942 = vmax.f32 %v3940, %v3941
    %v3943 = vrot.slane %v3942, 2
    %v3944 = vmax.f32 %v3942, %v3943
    %v3945 = vrot.slane %v3944, 1
    %v3946 = vmax.f32 %v3944, %v3945
    %v3947 = vpack.i.bf16 %v3946, %v3946
    %v3949 = vsel %vm3908, %v3903, 4286644096
    %v3951 = vunpack.i.l.bf16 %v3949
    %v3952 = vunpack.i.h.bf16 %v3949
    %v3953 = vmax.f32 %v3951, %v3952
    %v3954 = vrot.slane %v3953, 4
    %v3955 = vmax.f32 %v3953, %v3954
    %v3956 = vrot.slane %v3955, 2
    %v3957 = vmax.f32 %v3955, %v3956
    %v3958 = vrot.slane %v3957, 1
    %v3959 = vmax.f32 %v3957, %v3958
    %v3960 = vpack.i.bf16 %v3959, %v3959
    %v3962 = vsel %vm3908, %v3904, 4286644096
    %v3964 = vunpack.i.l.bf16 %v3962
    %v3965 = vunpack.i.h.bf16 %v3962
    %v3966 = vmax.f32 %v3964, %v3965
    %v3967 = vrot.slane %v3966, 4
    %v3968 = vmax.f32 %v3966, %v3967
    %v3969 = vrot.slane %v3968, 2
    %v3970 = vmax.f32 %v3968, %v3969
    %v3971 = vrot.slane %v3970, 1
    %v3972 = vmax.f32 %v3970, %v3971
    %v3973 = vpack.i.bf16 %v3972, %v3972
    %v3975 = vsel %vm3908, %v3905, 4286644096
    %v3977 = vunpack.i.l.bf16 %v3975
    %v3978 = vunpack.i.h.bf16 %v3975
    %v3979 = vmax.f32 %v3977, %v3978
    %v3980 = vrot.slane %v3979, 4
    %v3981 = vmax.f32 %v3979, %v3980
    %v3982 = vrot.slane %v3981, 2
    %v3983 = vmax.f32 %v3981, %v3982
    %v3984 = vrot.slane %v3983, 1
    %v3985 = vmax.f32 %v3983, %v3984
    %v3986 = vpack.i.bf16 %v3985, %v3985
    %v3988 = vsel %vm3908, %v3906, 4286644096
    %v3990 = vunpack.i.l.bf16 %v3988
    %v3991 = vunpack.i.h.bf16 %v3988
    %v3992 = vmax.f32 %v3990, %v3991
    %v3993 = vrot.slane %v3992, 4
    %v3994 = vmax.f32 %v3992, %v3993
    %v3995 = vrot.slane %v3994, 2
    %v3996 = vmax.f32 %v3994, %v3995
    %v3997 = vrot.slane %v3996, 1
    %v3998 = vmax.f32 %v3996, %v3997
    %v3999 = vpack.i.bf16 %v3998, %v3998
    %v4001 = vsel %vm3908, %v3907, 4286644096
    %v4003 = vunpack.i.l.bf16 %v4001
    %v4004 = vunpack.i.h.bf16 %v4001
    %v4005 = vmax.f32 %v4003, %v4004
    %v4006 = vrot.slane %v4005, 4
    %v4007 = vmax.f32 %v4005, %v4006
    %v4008 = vrot.slane %v4007, 2
    %v4009 = vmax.f32 %v4007, %v4008
    %v4010 = vrot.slane %v4009, 1
    %v4011 = vmax.f32 %v4009, %v4010
    %v4012 = vpack.i.bf16 %v4011, %v4011
    %v4013 = vmax.bf16 %v2667, %v3921
    %v4014 = vmax.bf16 %v2668, %v3934
    %v4015 = vmax.bf16 %v2669, %v3947
    %v4016 = vmax.bf16 %v2670, %v3960
    %v4017 = vmax.bf16 %v2671, %v3973
    %v4018 = vmax.bf16 %v2672, %v3986
    %v4019 = vmax.bf16 %v2673, %v3999
    %v4020 = vmax.bf16 %v2674, %v4012
    %v4021 = vld [vmem:[%s4] sm:$0xf]
    %v4022 = vld [vmem:[%s4 + $0x4] sm:$0xf]
    %v4023 = vld [vmem:[%s4 + $0x8] sm:$0xf]
    %v4024 = vld [vmem:[%s4 + $0xc] sm:$0xf]
    %v4025 = vld [vmem:[%s4 + $0x10] sm:$0xf]
    %v4026 = vld [vmem:[%s4 + $0x14] sm:$0xf]
    %v4027 = vld [vmem:[%s4 + $0x18] sm:$0xf]
    %v4028 = vld [vmem:[%s4 + $0x1c] sm:$0xf]
    %v4029 = vld [vmem:[%s4 + $0x20] sm:$0xf]
    %v4030 = vld [vmem:[%s4 + $0x24] sm:$0xf]
    %v4031 = vld [vmem:[%s4 + $0x28] sm:$0xf]
    %v4032 = vld [vmem:[%s4 + $0x2c] sm:$0xf]
    %v4033 = vld [vmem:[%s4 + $0x30] sm:$0xf]
    %v4034 = vld [vmem:[%s4 + $0x34] sm:$0xf]
    %v4035 = vld [vmem:[%s4 + $0x38] sm:$0xf]
    %v4036 = vld [vmem:[%s4 + $0x3c] sm:$0xf]
    %v4037 = vld [vmem:[%s5] sm:$0x1]
    %v4039 = vlaneseq
    %v4040 = vshrl.u32 %v4039, 7
    %v4041 = vsub.s32 0, %v4040
    %v4042 = vrot.slane %v4037, %v4041
    %v4052 = vunpack.c.l.b16 %v4013
    %v4053 = vunpack.c.l.b16 %v4014
    %v4054 = vunpack.c.l.b16 %v4015
    %v4055 = vunpack.c.l.b16 %v4016
    %v4056 = vunpack.c.l.b16 %v4017
    %v4057 = vunpack.c.l.b16 %v4018
    %v4058 = vunpack.c.l.b16 %v4019
    %v4059 = vunpack.c.l.b16 %v4020
    %vm4060 = vcmask 1041409
    %v4061 = vsel %vm4060, %v4053, %v4052
    %vm4062 = vcmask 1042434
    %v4063 = vsel %vm4062, %v4054, %v4061
    %vm4064 = vcmask 1043459
    %v4065 = vsel %vm4064, %v4055, %v4063
    %vm4066 = vcmask 1044484
    %v4067 = vsel %vm4066, %v4056, %v4065
    %vm4068 = vcmask 1045509
    %v4069 = vsel %vm4068, %v4057, %v4067
    %vm4070 = vcmask 1046534
    %v4071 = vsel %vm4070, %v4058, %v4069
    %vm4072 = vcmask 1047559
    %v4073 = vsel %vm4072, %v4059, %v4071
    %v4074 = vpack.c.b16 %v4073, %v4073
    %v4092 = vunpack.c.l.b16 %v4021
    %v4093 = vunpack.c.l.b16 %v4022
    %v4094 = vunpack.c.l.b16 %v4023
    %v4095 = vunpack.c.l.b16 %v4024
    %v4096 = vunpack.c.l.b16 %v4025
    %v4097 = vunpack.c.l.b16 %v4026
    %v4098 = vunpack.c.l.b16 %v4027
    %v4099 = vunpack.c.l.b16 %v4028
    %v4100 = vunpack.c.l.b16 %v4029
    %v4101 = vunpack.c.l.b16 %v4030
    %v4102 = vunpack.c.l.b16 %v4031
    %v4103 = vunpack.c.l.b16 %v4032
    %v4104 = vunpack.c.l.b16 %v4033
    %v4105 = vunpack.c.l.b16 %v4034
    %v4106 = vunpack.c.l.b16 %v4035
    %v4107 = vunpack.c.l.b16 %v4036
    %v4108 = vpack.c.b16 %v4093, %v4092
    %v4109 = vpack.c.b16 %v4095, %v4094
    %v4110 = vpack.c.b16 %v4097, %v4096
    %v4111 = vpack.c.b16 %v4099, %v4098
    %v4112 = vpack.c.b16 %v4101, %v4100
    %v4113 = vpack.c.b16 %v4103, %v4102
    %v4114 = vpack.c.b16 %v4105, %v4104
    %v4115 = vpack.c.b16 %v4107, %v4106
    %4124 = vmatprep.subr.bf16.mxu0 0
    %4125 = vmatpush1.bf16.msra.mxu0 %v4108
    %4126 = vmatprep.subr.bf16.mxu0 0
    %4127 = vmatpush1.bf16.msra.mxu0 %v4109
    %4128 = vmatprep.subr.bf16.mxu0 0
    %4129 = vmatpush1.bf16.msra.mxu0 %v4110
    %4130 = vmatprep.subr.bf16.mxu0 0
    %4131 = vmatpush1.bf16.msra.mxu0 %v4111
    %4132 = vmatprep.subr.bf16.mxu0 0
    %4133 = vmatpush1.bf16.msra.mxu0 %v4112
    %4134 = vmatprep.subr.bf16.mxu0 0
    %4135 = vmatpush1.bf16.msra.mxu0 %v4113
    %4136 = vmatprep.subr.bf16.mxu0 0
    %4137 = vmatpush1.bf16.msra.mxu0 %v4114
    %4138 = vmatprep.subr.bf16.mxu0 0
    %4139 = vmatpush1.bf16.msra.mxu0 %v4115
    %4140 = vmatprep.subr.bf16.mxu0 0
    %4141 = vmatpush1.bf16.msra.mxu0 0
    %4142 = vmatprep.subr.bf16.mxu0 0
    %4143 = vmatpush1.bf16.msra.mxu0 0
    %4144 = vmatprep.subr.bf16.mxu0 0
    %4145 = vmatpush1.bf16.msra.mxu0 0
    %4146 = vmatprep.subr.bf16.mxu0 0
    %4147 = vmatpush1.bf16.msra.mxu0 0
    %4148 = vmatprep.subr.bf16.mxu0 0
    %4149 = vmatpush1.bf16.msra.mxu0 0
    %4150 = vmatprep.subr.bf16.mxu0 0
    %4151 = vmatpush1.bf16.msra.mxu0 0
    %4152 = vmatprep.subr.bf16.mxu0 0
    %4153 = vmatpush1.bf16.msra.mxu0 0
    %4154 = vmatprep.subr.bf16.mxu0 0
    %4155 = vmatpush1.bf16.msra.mxu0 0
    %4156 = vmatprep.mubr.bf16.mxu0 0
    %4157 = vmatmul.mubr.bf16.gmra.mrb[0].mxu0 %v4074
    %v4158 = vpop.f32.mrb[0].mxu0
    %v4159 = vadd.f32 %v4042, %v4158
    %v4160 = vpop.f32.mrb[0].mxu0
    %v4161 = vpop.f32.mrb[0].mxu0
    %v4162 = vpop.f32.mrb[0].mxu0
    %4163 = vdwg.mxu0
    %4164 = vst [vmem:[#allocation2] sm:$0xff] %v4159
    // Predicated region
    $region26: #{tpu_custom_call.1} parent=1 // pred_check
      _
    $region27: #{tpu_custom_call.1} parent=1 // pred_check_branch
      %4166 = sbr.rel (0) target = $region29
    $region28: #{tpu_custom_call.1} parent=1 // pred_region
      %s4168 = ssub.s32 128, 128
      %4169 = vsyncadd [#allocation3], %s4168
      %s4171 = sshll.u32 [#allocation2], 4
      %s4172 = int_to_ptr.vmem [resolvable:$true] %s4171
      %4174 = dma.vmem_to_hbm [thread:$0]  %s4172, 128, %s6, [#allocation3]
    $region29: #{tpu_custom_call.1} parent=1 // pred_fallthru
      _
    // Predicated region
    $region30: #{tpu_custom_call.1} parent=1 // pred_check
      _
    $region31: #{tpu_custom_call.1} parent=1 // pred_check_branch
      %4176 = sbr.rel (0) target = $region33
    $region32: #{tpu_custom_call.1} parent=1 // pred_region
      %4177 = dma.done [#allocation3], 128
    $region33: #{tpu_custom_call.1} parent=1 // pred_fallthru
      _
    %4178 = vsyncpa [#allocation3], 1

</llo_original>
